<compile_context>
chip_gen: v7x
topology: tpu7x:2x2x1
jax: 0.10.0
libtpu: 0.0.40
codegen_flags: <defaults>
</compile_context>

<pallas_src>
import functools

import jax
import jax.numpy as jnp
from jax.experimental import pallas as pl
from jax.experimental.pallas import tpu as pltpu

# ----------------------------- configuration --------------------------------
B = 2            # batch
N = 16           # tokens per batch element
C = 32           # embed_dims
H = 64           # FFN hidden_channels
NUM_HEADS = 4
HEAD_DIM = C // NUM_HEADS
SCALE = HEAD_DIM ** (-0.5)
LN_EPS = 1e-5
BN = B * N


def _erf(x):
    """erf via Abramowitz & Stegun 7.1.26 (|err| < 1.5e-7); exp/VPU ops only."""
    p = 0.3275911
    a1, a2, a3, a4, a5 = (0.254829592, -0.284496736, 1.421413741,
                          -1.453152027, 1.061405429)
    ax = jnp.abs(x)
    t = 1.0 / (1.0 + p * ax)
    poly = ((((a5 * t + a4) * t + a3) * t + a2) * t + a1) * t
    y = 1.0 - poly * jnp.exp(-ax * ax)
    return jnp.where(x >= 0, y, -y)


def _gelu_exact(x):
    # PyTorch nn.GELU() default (erf-based, not the tanh approximation).
    return 0.5 * x * (1.0 + _erf(x * 0.7071067811865476))


def _layernorm(x, gamma, beta):
    mean = jnp.mean(x, axis=-1, keepdims=True)
    xc = x - mean
    var = jnp.mean(xc * xc, axis=-1, keepdims=True)
    return xc * jax.lax.rsqrt(var + LN_EPS) * gamma + beta


def _block_kernel(x_ref, g1_ref, bt1_ref,
                  wqv_ref, bqv_ref, wk_ref, bk_ref, wpj_ref, bpj_ref,
                  g2_ref, bt2_ref, w1_ref, bf1_ref, w2_ref, bf2_ref,
                  out_ref):
    """Whole BasicTransformerBlock on the flattened (B*N, C) slab.

    x_ref   : (B*N, C)
    g1/bt1  : (1, C)      LayerNorm1 affine
    wqv_ref : (C, 2C)     [W_q ; W_v]^T   (x @ W^T layout)
    bqv_ref : (1, 2C)
    wk_ref  : (C, C)      W_k, UNtransposed (out_dim x in_dim)
    bk_ref  : (C, 1)
    wpj_ref : (C, C)      W_proj^T
    bpj_ref : (1, C)
    g2/bt2  : (1, C)      LayerNorm2 affine
    w1_ref  : (C, H)      FFN W1^T
    bf1_ref : (1, H)
    w2_ref  : (H, C)      FFN W2^T
    bf2_ref : (1, C)
    out_ref : (B*N, C)
    """
    x = x_ref[...].astype(jnp.float32)                               # (BN, C)

    # ---------------- PreNorm 1 ----------------
    xn = _layernorm(x, g1_ref[...], bt1_ref[...])                    # (BN, C)

    # ---------- q/v projection + pre-transposed k projection ----------
    # (At larger C/N: cast xn and weights to bf16 here, keep f32 accumulation.)
    qv = jnp.dot(xn, wqv_ref[...],
                 preferred_element_type=jnp.float32) + bqv_ref[...]  # (BN, 2C)
    xnT = xn.T                                                       # (C, BN), single XLU transpose
    kT = jnp.dot(wk_ref[...], xnT,
                 preferred_element_type=jnp.float32) + bk_ref[...]   # (C, BN)

    # ---------------- attention, unrolled per (batch, head) ----------------
    wpj = wpj_ref[...]                                               # hoisted (C, C)
    attn_rows = []
    for b in range(B):
        r0 = b * N
        acc = None                                                   # (N, C) partial projection
        for h in range(NUM_HEADS):
            c0 = h * HEAD_DIM
            q_bh = qv[r0:r0 + N, c0:c0 + HEAD_DIM]                   # (N, hd)
            v_bh = qv[r0:r0 + N, C + c0:C + c0 + HEAD_DIM]           # (N, hd)
            kT_bh = kT[c0:c0 + HEAD_DIM, r0:r0 + N]                  # (hd, N) free row slice

            s = jnp.dot(q_bh, kT_bh,
                        preferred_element_type=jnp.float32) * SCALE  # (N, N)
            s = s - jnp.max(s, axis=-1, keepdims=True)
            p = jnp.exp(s)
            p = p * pl.reciprocal(jnp.sum(p, axis=-1, keepdims=True),
                                  approx=True)                       # EUP vrcp
            o_bh = jnp.dot(p, v_bh,
                           preferred_element_type=jnp.float32)       # (N, hd)

            # accumulate the output projection per head (no lane concat)
            part = jnp.dot(o_bh, wpj[c0:c0 + HEAD_DIM, :],
                           preferred_element_type=jnp.float32)       # (N, C)
            acc = part if acc is None else acc + part
        attn_rows.append(acc)

    attn_out = jnp.concatenate(attn_rows, axis=0) + bpj_ref[...]     # (BN, C)
    y = x + attn_out                                                 # residual 1

    # ---------------- PreNorm 2 + FFN (exact GELU) ----------------
    yn = _layernorm(y, g2_ref[...], bt2_ref[...])                    # (BN, C)
    h1 = jnp.dot(yn, w1_ref[...],
                 preferred_element_type=jnp.float32) + bf1_ref[...]  # (BN, H)
    h1 = _gelu_exact(h1)
    ffn = jnp.dot(h1, w2_ref[...],
                  preferred_element_type=jnp.float32) + bf2_ref[...] # (BN, C)

    out_ref[...] = (y + ffn).astype(out_ref.dtype)                   # residual 2


@jax.jit
def basic_transformer_block(x, g1, bt1, w_qkv, b_qkv, w_proj, b_proj,
                            g2, bt2, w1, bf1, w2, bf2):
    """x: (B, N, C). Torch-layout params: w_qkv (3C, C), w_proj (C, C),
    w1 (H, C), w2 (C, H); biases 1-D."""
    bsz, n, c = x.shape

    # Repack weights for the kernel: q/v pre-transposed & packed, k untransposed.
    w_q, w_k, w_v = w_qkv[:C], w_qkv[C:2 * C], w_qkv[2 * C:]
    b_q, b_k, b_v = b_qkv[:C], b_qkv[C:2 * C], b_qkv[2 * C:]
    w_qv_t = jnp.concatenate([w_q, w_v], axis=0).T                   # (C, 2C)
    b_qv = jnp.concatenate([b_q, b_v]).reshape(1, 2 * C)

    vmem = functools.partial(pl.BlockSpec, memory_space=pltpu.MemorySpace.VMEM)

    out = pl.pallas_call(
        _block_kernel,
        out_shape=jax.ShapeDtypeStruct((bsz * n, c), x.dtype),
        # Grid collapsed: one invocation over the whole (B*N, C) slab.
        in_specs=[vmem()] * 15,
        out_specs=vmem(),
    )(x.reshape(bsz * n, c),
      g1.reshape(1, C), bt1.reshape(1, C),
      w_qv_t, b_qv,
      w_k, b_k.reshape(C, 1),
      w_proj.T, b_proj.reshape(1, C),
      g2.reshape(1, C), bt2.reshape(1, C),
      w1.T, bf1.reshape(1, H),
      w2.T, bf2.reshape(1, C))
    # NOTE: if the block is scaled up, present a lane-dense output layout
    # (last dim a multiple of 128) instead of the C=32-wide masked stores.
    return out.reshape(bsz, n, c)


def _reference(x, g1, bt1, w_qkv, b_qkv, w_proj, b_proj, g2, bt2, w1, bf1, w2, bf2):
    """Pure-JAX reference mirroring the PyTorch module (eval mode, dpr=0)."""
    # MultiheadAttentionWithPreNorm
    xn = _layernorm(x, g1, bt1)
    qkv = xn @ w_qkv.T + b_qkv                                       # (B, N, 3C)
    qkv = qkv.reshape(B, N, 3, NUM_HEADS, HEAD_DIM).transpose(2, 0, 3, 1, 4)
    q, k, v = qkv[0], qkv[1], qkv[2]                                 # (B, Hh, N, hd)
    attn = jnp.einsum("bhnd,bhmd->bhnm", q, k) * SCALE
    attn = jax.nn.softmax(attn, axis=-1)
    o = jnp.einsum("bhnm,bhmd->bhnd", attn, v)
    o = o.transpose(0, 2, 1, 3).reshape(B, N, C)
    y = x + (o @ w_proj.T + b_proj)
    # FFNWithPreNorm (2 layers, exact GELU)
    yn = _layernorm(y, g2, bt2)
    h1 = jax.nn.gelu(yn @ w1.T + bf1, approximate=False)
    return y + (h1 @ w2.T + bf2)


if __name__ == "__main__":
    key = jax.random.PRNGKey(0)
    ks = jax.random.split(key, 13)

    x = jax.random.normal(ks[0], (B, N, C), jnp.float32)

    g1 = 1.0 + 0.05 * jax.random.normal(ks[1], (C,), jnp.float32)
    bt1 = 0.05 * jax.random.normal(ks[2], (C,), jnp.float32)
    w_qkv = 0.05 * jax.random.normal(ks[3], (3 * C, C), jnp.float32)
    b_qkv = 0.05 * jax.random.normal(ks[4], (3 * C,), jnp.float32)
    w_proj = 0.05 * jax.random.normal(ks[5], (C, C), jnp.float32)
    b_proj = 0.05 * jax.random.normal(ks[6], (C,), jnp.float32)
    g2 = 1.0 + 0.05 * jax.random.normal(ks[7], (C,), jnp.float32)
    bt2 = 0.05 * jax.random.normal(ks[8], (C,), jnp.float32)
    w1 = 0.05 * jax.random.normal(ks[9], (H, C), jnp.float32)
    bf1 = 0.05 * jax.random.normal(ks[10], (H,), jnp.float32)
    w2 = 0.05 * jax.random.normal(ks[11], (C, H), jnp.float32)
    bf2 = 0.05 * jax.random.normal(ks[12], (C,), jnp.float32)

    args = (x, g1, bt1, w_qkv, b_qkv, w_proj, b_proj, g2, bt2, w1, bf1, w2, bf2)

    out = jax.block_until_ready(basic_transformer_block(*args))
    ref = _reference(*args)

    assert out.shape == (B, N, C)
    max_diff = float(jnp.max(jnp.abs(out - ref)))
    assert jnp.allclose(out, ref, atol=2e-3, rtol=2e-3), (
        f"mismatch vs reference: max abs diff {max_diff:.3e}")

    print("KERNEL_OK")
</pallas_src>

<mosaic_0001>
module attributes {stable_mosaic.version = 11 : i64} {
  func.func @_block_kernel(%arg0: memref<32x32xf32, #tpu.memory_space<vmem>>, %arg1: memref<1x32xf32, #tpu.memory_space<vmem>>, %arg2: memref<1x32xf32, #tpu.memory_space<vmem>>, %arg3: memref<32x64xf32, #tpu.memory_space<vmem>>, %arg4: memref<1x64xf32, #tpu.memory_space<vmem>>, %arg5: memref<32x32xf32, #tpu.memory_space<vmem>>, %arg6: memref<32x1xf32, #tpu.memory_space<vmem>>, %arg7: memref<32x32xf32, #tpu.memory_space<vmem>>, %arg8: memref<1x32xf32, #tpu.memory_space<vmem>>, %arg9: memref<1x32xf32, #tpu.memory_space<vmem>>, %arg10: memref<1x32xf32, #tpu.memory_space<vmem>>, %arg11: memref<32x64xf32, #tpu.memory_space<vmem>>, %arg12: memref<1x64xf32, #tpu.memory_space<vmem>>, %arg13: memref<64x32xf32, #tpu.memory_space<vmem>>, %arg14: memref<1x32xf32, #tpu.memory_space<vmem>>, %arg15: memref<32x32xf32, #tpu.memory_space<vmem>>) attributes {dimension_semantics = [], scalar_prefetch = 0 : i64, scratch_operands = 0 : i64, tpu.core_type = #tpu.core_type<tc>} {
    %c0 = arith.constant 0 : index
    %c0_0 = arith.constant 0 : index
    %0 = vector.load %arg0[%c0, %c0_0] : memref<32x32xf32, #tpu.memory_space<vmem>>, vector<32x32xf32>
    %c0_1 = arith.constant 0 : index
    %c0_2 = arith.constant 0 : index
    %1 = vector.load %arg1[%c0_1, %c0_2] : memref<1x32xf32, #tpu.memory_space<vmem>>, vector<1x32xf32>
    %c0_3 = arith.constant 0 : index
    %c0_4 = arith.constant 0 : index
    %2 = vector.load %arg2[%c0_3, %c0_4] : memref<1x32xf32, #tpu.memory_space<vmem>>, vector<1x32xf32>
    %cst = arith.constant dense<0.000000e+00> : vector<32xf32>
    %3 = vector.multi_reduction <add>, %0, %cst [1] : vector<32x32xf32> to vector<32xf32>
    %4 = vector.shape_cast %3 : vector<32xf32> to vector<32x1xf32>
    %cst_5 = arith.constant 3.200000e+01 : f32
    %5 = vector.broadcast %cst_5 : f32 to vector<32x1xf32>
    %6 = arith.divf %4, %5 : vector<32x1xf32>
    %7 = vector.broadcast %6 : vector<32x1xf32> to vector<32x32xf32>
    %8 = arith.subf %0, %7 : vector<32x32xf32>
    %9 = arith.mulf %8, %8 : vector<32x32xf32>
    %cst_6 = arith.constant dense<0.000000e+00> : vector<32xf32>
    %10 = vector.multi_reduction <add>, %9, %cst_6 [1] : vector<32x32xf32> to vector<32xf32>
    %11 = vector.shape_cast %10 : vector<32xf32> to vector<32x1xf32>
    %cst_7 = arith.constant 3.200000e+01 : f32
    %12 = vector.broadcast %cst_7 : f32 to vector<32x1xf32>
    %13 = arith.divf %11, %12 : vector<32x1xf32>
    %cst_8 = arith.constant 9.99999974E-6 : f32
    %14 = vector.broadcast %cst_8 : f32 to vector<32x1xf32>
    %15 = arith.addf %13, %14 : vector<32x1xf32>
    %16 = math.rsqrt %15 : vector<32x1xf32>
    %17 = vector.broadcast %16 : vector<32x1xf32> to vector<32x32xf32>
    %18 = arith.mulf %8, %17 : vector<32x32xf32>
    %19 = vector.broadcast %1 : vector<1x32xf32> to vector<32x32xf32>
    %20 = arith.mulf %18, %19 : vector<32x32xf32>
    %21 = vector.broadcast %2 : vector<1x32xf32> to vector<32x32xf32>
    %22 = arith.addf %20, %21 : vector<32x32xf32>
    %c0_9 = arith.constant 0 : index
    %c0_10 = arith.constant 0 : index
    %23 = vector.load %arg3[%c0_9, %c0_10] : memref<32x64xf32, #tpu.memory_space<vmem>>, vector<32x64xf32>
    %cst_11 = arith.constant dense<0.000000e+00> : vector<32x64xf32>
    %24 = tpu.matmul %22, %23, %cst_11 {dimension_numbers = #tpu.dot_dimension_numbers<[1], [0], [0], [1], [0, 0, 1, 1], [], []>} : vector<32x32xf32>, vector<32x64xf32>, vector<32x64xf32> -> vector<32x64xf32>
    %c0_12 = arith.constant 0 : index
    %c0_13 = arith.constant 0 : index
    %25 = vector.load %arg4[%c0_12, %c0_13] : memref<1x64xf32, #tpu.memory_space<vmem>>, vector<1x64xf32>
    %26 = vector.broadcast %25 : vector<1x64xf32> to vector<32x64xf32>
    %27 = arith.addf %24, %26 : vector<32x64xf32>
    %28 = tpu.transpose %22, [1, 0] : vector<32x32xf32> -> vector<32x32xf32>
    %c0_14 = arith.constant 0 : index
    %c0_15 = arith.constant 0 : index
    %29 = vector.load %arg5[%c0_14, %c0_15] : memref<32x32xf32, #tpu.memory_space<vmem>>, vector<32x32xf32>
    %cst_16 = arith.constant dense<0.000000e+00> : vector<32x32xf32>
    %30 = tpu.matmul %29, %28, %cst_16 {dimension_numbers = #tpu.dot_dimension_numbers<[1], [0], [0], [1], [0, 0, 1, 1], [], []>} : vector<32x32xf32>, vector<32x32xf32>, vector<32x32xf32> -> vector<32x32xf32>
    %c0_17 = arith.constant 0 : index
    %c0_18 = arith.constant 0 : index
    %31 = vector.load %arg6[%c0_17, %c0_18] : memref<32x1xf32, #tpu.memory_space<vmem>>, vector<32x1xf32>
    %32 = vector.broadcast %31 : vector<32x1xf32> to vector<32x32xf32>
    %33 = arith.addf %30, %32 : vector<32x32xf32>
    %c0_19 = arith.constant 0 : index
    %c0_20 = arith.constant 0 : index
    %34 = vector.load %arg7[%c0_19, %c0_20] : memref<32x32xf32, #tpu.memory_space<vmem>>, vector<32x32xf32>
    %35 = vector.extract_strided_slice %27 {offsets = [0, 0], sizes = [16, 8], strides = [1, 1]} : vector<32x64xf32> to vector<16x8xf32>
    %36 = vector.extract_strided_slice %27 {offsets = [0, 32], sizes = [16, 8], strides = [1, 1]} : vector<32x64xf32> to vector<16x8xf32>
    %37 = vector.extract_strided_slice %33 {offsets = [0, 0], sizes = [8, 16], strides = [1, 1]} : vector<32x32xf32> to vector<8x16xf32>
    %cst_21 = arith.constant dense<0.000000e+00> : vector<16x16xf32>
    %38 = tpu.matmul %35, %37, %cst_21 {dimension_numbers = #tpu.dot_dimension_numbers<[1], [0], [0], [1], [0, 0, 1, 1], [], []>} : vector<16x8xf32>, vector<8x16xf32>, vector<16x16xf32> -> vector<16x16xf32>
    %cst_22 = arith.constant 0.353553385 : f32
    %39 = vector.broadcast %cst_22 : f32 to vector<16x16xf32>
    %40 = arith.mulf %38, %39 : vector<16x16xf32>
    %cst_23 = arith.constant dense<0xFF800000> : vector<16xf32>
    %41 = vector.multi_reduction <maximumf>, %40, %cst_23 [1] : vector<16x16xf32> to vector<16xf32>
    %42 = vector.shape_cast %41 : vector<16xf32> to vector<16x1xf32>
    %43 = vector.broadcast %42 : vector<16x1xf32> to vector<16x16xf32>
    %44 = arith.subf %40, %43 : vector<16x16xf32>
    %45 = math.exp %44 : vector<16x16xf32>
    %cst_24 = arith.constant dense<0.000000e+00> : vector<16xf32>
    %46 = vector.multi_reduction <add>, %45, %cst_24 [1] : vector<16x16xf32> to vector<16xf32>
    %47 = vector.shape_cast %46 : vector<16xf32> to vector<16x1xf32>
    %48 = tpu.reciprocal %47 {approx = true} : vector<16x1xf32> -> vector<16x1xf32>
    %49 = vector.broadcast %48 : vector<16x1xf32> to vector<16x16xf32>
    %50 = arith.mulf %45, %49 : vector<16x16xf32>
    %cst_25 = arith.constant dense<0.000000e+00> : vector<16x8xf32>
    %51 = tpu.matmul %50, %36, %cst_25 {dimension_numbers = #tpu.dot_dimension_numbers<[1], [0], [0], [1], [0, 0, 1, 1], [], []>} : vector<16x16xf32>, vector<16x8xf32>, vector<16x8xf32> -> vector<16x8xf32>
    %52 = vector.extract_strided_slice %34 {offsets = [0, 0], sizes = [8, 32], strides = [1, 1]} : vector<32x32xf32> to vector<8x32xf32>
    %cst_26 = arith.constant dense<0.000000e+00> : vector<16x32xf32>
    %53 = tpu.matmul %51, %52, %cst_26 {dimension_numbers = #tpu.dot_dimension_numbers<[1], [0], [0], [1], [0, 0, 1, 1], [], []>} : vector<16x8xf32>, vector<8x32xf32>, vector<16x32xf32> -> vector<16x32xf32>
    %54 = vector.extract_strided_slice %27 {offsets = [0, 8], sizes = [16, 8], strides = [1, 1]} : vector<32x64xf32> to vector<16x8xf32>
    %55 = vector.extract_strided_slice %27 {offsets = [0, 40], sizes = [16, 8], strides = [1, 1]} : vector<32x64xf32> to vector<16x8xf32>
    %56 = vector.extract_strided_slice %33 {offsets = [8, 0], sizes = [8, 16], strides = [1, 1]} : vector<32x32xf32> to vector<8x16xf32>
    %cst_27 = arith.constant dense<0.000000e+00> : vector<16x16xf32>
    %57 = tpu.matmul %54, %56, %cst_27 {dimension_numbers = #tpu.dot_dimension_numbers<[1], [0], [0], [1], [0, 0, 1, 1], [], []>} : vector<16x8xf32>, vector<8x16xf32>, vector<16x16xf32> -> vector<16x16xf32>
    %cst_28 = arith.constant 0.353553385 : f32
    %58 = vector.broadcast %cst_28 : f32 to vector<16x16xf32>
    %59 = arith.mulf %57, %58 : vector<16x16xf32>
    %cst_29 = arith.constant dense<0xFF800000> : vector<16xf32>
    %60 = vector.multi_reduction <maximumf>, %59, %cst_29 [1] : vector<16x16xf32> to vector<16xf32>
    %61 = vector.shape_cast %60 : vector<16xf32> to vector<16x1xf32>
    %62 = vector.broadcast %61 : vector<16x1xf32> to vector<16x16xf32>
    %63 = arith.subf %59, %62 : vector<16x16xf32>
    %64 = math.exp %63 : vector<16x16xf32>
    %cst_30 = arith.constant dense<0.000000e+00> : vector<16xf32>
    %65 = vector.multi_reduction <add>, %64, %cst_30 [1] : vector<16x16xf32> to vector<16xf32>
    %66 = vector.shape_cast %65 : vector<16xf32> to vector<16x1xf32>
    %67 = tpu.reciprocal %66 {approx = true} : vector<16x1xf32> -> vector<16x1xf32>
    %68 = vector.broadcast %67 : vector<16x1xf32> to vector<16x16xf32>
    %69 = arith.mulf %64, %68 : vector<16x16xf32>
    %cst_31 = arith.constant dense<0.000000e+00> : vector<16x8xf32>
    %70 = tpu.matmul %69, %55, %cst_31 {dimension_numbers = #tpu.dot_dimension_numbers<[1], [0], [0], [1], [0, 0, 1, 1], [], []>} : vector<16x16xf32>, vector<16x8xf32>, vector<16x8xf32> -> vector<16x8xf32>
    %71 = vector.extract_strided_slice %34 {offsets = [8, 0], sizes = [8, 32], strides = [1, 1]} : vector<32x32xf32> to vector<8x32xf32>
    %cst_32 = arith.constant dense<0.000000e+00> : vector<16x32xf32>
    %72 = tpu.matmul %70, %71, %cst_32 {dimension_numbers = #tpu.dot_dimension_numbers<[1], [0], [0], [1], [0, 0, 1, 1], [], []>} : vector<16x8xf32>, vector<8x32xf32>, vector<16x32xf32> -> vector<16x32xf32>
    %73 = arith.addf %53, %72 : vector<16x32xf32>
    %74 = vector.extract_strided_slice %27 {offsets = [0, 16], sizes = [16, 8], strides = [1, 1]} : vector<32x64xf32> to vector<16x8xf32>
    %75 = vector.extract_strided_slice %27 {offsets = [0, 48], sizes = [16, 8], strides = [1, 1]} : vector<32x64xf32> to vector<16x8xf32>
    %76 = vector.extract_strided_slice %33 {offsets = [16, 0], sizes = [8, 16], strides = [1, 1]} : vector<32x32xf32> to vector<8x16xf32>
    %cst_33 = arith.constant dense<0.000000e+00> : vector<16x16xf32>
    %77 = tpu.matmul %74, %76, %cst_33 {dimension_numbers = #tpu.dot_dimension_numbers<[1], [0], [0], [1], [0, 0, 1, 1], [], []>} : vector<16x8xf32>, vector<8x16xf32>, vector<16x16xf32> -> vector<16x16xf32>
    %cst_34 = arith.constant 0.353553385 : f32
    %78 = vector.broadcast %cst_34 : f32 to vector<16x16xf32>
    %79 = arith.mulf %77, %78 : vector<16x16xf32>
    %cst_35 = arith.constant dense<0xFF800000> : vector<16xf32>
    %80 = vector.multi_reduction <maximumf>, %79, %cst_35 [1] : vector<16x16xf32> to vector<16xf32>
    %81 = vector.shape_cast %80 : vector<16xf32> to vector<16x1xf32>
    %82 = vector.broadcast %81 : vector<16x1xf32> to vector<16x16xf32>
    %83 = arith.subf %79, %82 : vector<16x16xf32>
    %84 = math.exp %83 : vector<16x16xf32>
    %cst_36 = arith.constant dense<0.000000e+00> : vector<16xf32>
    %85 = vector.multi_reduction <add>, %84, %cst_36 [1] : vector<16x16xf32> to vector<16xf32>
    %86 = vector.shape_cast %85 : vector<16xf32> to vector<16x1xf32>
    %87 = tpu.reciprocal %86 {approx = true} : vector<16x1xf32> -> vector<16x1xf32>
    %88 = vector.broadcast %87 : vector<16x1xf32> to vector<16x16xf32>
    %89 = arith.mulf %84, %88 : vector<16x16xf32>
    %cst_37 = arith.constant dense<0.000000e+00> : vector<16x8xf32>
    %90 = tpu.matmul %89, %75, %cst_37 {dimension_numbers = #tpu.dot_dimension_numbers<[1], [0], [0], [1], [0, 0, 1, 1], [], []>} : vector<16x16xf32>, vector<16x8xf32>, vector<16x8xf32> -> vector<16x8xf32>
    %91 = vector.extract_strided_slice %34 {offsets = [16, 0], sizes = [8, 32], strides = [1, 1]} : vector<32x32xf32> to vector<8x32xf32>
    %cst_38 = arith.constant dense<0.000000e+00> : vector<16x32xf32>
    %92 = tpu.matmul %90, %91, %cst_38 {dimension_numbers = #tpu.dot_dimension_numbers<[1], [0], [0], [1], [0, 0, 1, 1], [], []>} : vector<16x8xf32>, vector<8x32xf32>, vector<16x32xf32> -> vector<16x32xf32>
    %93 = arith.addf %73, %92 : vector<16x32xf32>
    %94 = vector.extract_strided_slice %27 {offsets = [0, 24], sizes = [16, 8], strides = [1, 1]} : vector<32x64xf32> to vector<16x8xf32>
    %95 = vector.extract_strided_slice %27 {offsets = [0, 56], sizes = [16, 8], strides = [1, 1]} : vector<32x64xf32> to vector<16x8xf32>
    %96 = vector.extract_strided_slice %33 {offsets = [24, 0], sizes = [8, 16], strides = [1, 1]} : vector<32x32xf32> to vector<8x16xf32>
    %cst_39 = arith.constant dense<0.000000e+00> : vector<16x16xf32>
    %97 = tpu.matmul %94, %96, %cst_39 {dimension_numbers = #tpu.dot_dimension_numbers<[1], [0], [0], [1], [0, 0, 1, 1], [], []>} : vector<16x8xf32>, vector<8x16xf32>, vector<16x16xf32> -> vector<16x16xf32>
    %cst_40 = arith.constant 0.353553385 : f32
    %98 = vector.broadcast %cst_40 : f32 to vector<16x16xf32>
    %99 = arith.mulf %97, %98 : vector<16x16xf32>
    %cst_41 = arith.constant dense<0xFF800000> : vector<16xf32>
    %100 = vector.multi_reduction <maximumf>, %99, %cst_41 [1] : vector<16x16xf32> to vector<16xf32>
    %101 = vector.shape_cast %100 : vector<16xf32> to vector<16x1xf32>
    %102 = vector.broadcast %101 : vector<16x1xf32> to vector<16x16xf32>
    %103 = arith.subf %99, %102 : vector<16x16xf32>
    %104 = math.exp %103 : vector<16x16xf32>
    %cst_42 = arith.constant dense<0.000000e+00> : vector<16xf32>
    %105 = vector.multi_reduction <add>, %104, %cst_42 [1] : vector<16x16xf32> to vector<16xf32>
    %106 = vector.shape_cast %105 : vector<16xf32> to vector<16x1xf32>
    %107 = tpu.reciprocal %106 {approx = true} : vector<16x1xf32> -> vector<16x1xf32>
    %108 = vector.broadcast %107 : vector<16x1xf32> to vector<16x16xf32>
    %109 = arith.mulf %104, %108 : vector<16x16xf32>
    %cst_43 = arith.constant dense<0.000000e+00> : vector<16x8xf32>
    %110 = tpu.matmul %109, %95, %cst_43 {dimension_numbers = #tpu.dot_dimension_numbers<[1], [0], [0], [1], [0, 0, 1, 1], [], []>} : vector<16x16xf32>, vector<16x8xf32>, vector<16x8xf32> -> vector<16x8xf32>
    %111 = vector.extract_strided_slice %34 {offsets = [24, 0], sizes = [8, 32], strides = [1, 1]} : vector<32x32xf32> to vector<8x32xf32>
    %cst_44 = arith.constant dense<0.000000e+00> : vector<16x32xf32>
    %112 = tpu.matmul %110, %111, %cst_44 {dimension_numbers = #tpu.dot_dimension_numbers<[1], [0], [0], [1], [0, 0, 1, 1], [], []>} : vector<16x8xf32>, vector<8x32xf32>, vector<16x32xf32> -> vector<16x32xf32>
    %113 = arith.addf %93, %112 : vector<16x32xf32>
    %114 = vector.extract_strided_slice %27 {offsets = [16, 0], sizes = [16, 8], strides = [1, 1]} : vector<32x64xf32> to vector<16x8xf32>
    %115 = vector.extract_strided_slice %27 {offsets = [16, 32], sizes = [16, 8], strides = [1, 1]} : vector<32x64xf32> to vector<16x8xf32>
    %116 = vector.extract_strided_slice %33 {offsets = [0, 16], sizes = [8, 16], strides = [1, 1]} : vector<32x32xf32> to vector<8x16xf32>
    %cst_45 = arith.constant dense<0.000000e+00> : vector<16x16xf32>
    %117 = tpu.matmul %114, %116, %cst_45 {dimension_numbers = #tpu.dot_dimension_numbers<[1], [0], [0], [1], [0, 0, 1, 1], [], []>} : vector<16x8xf32>, vector<8x16xf32>, vector<16x16xf32> -> vector<16x16xf32>
    %cst_46 = arith.constant 0.353553385 : f32
    %118 = vector.broadcast %cst_46 : f32 to vector<16x16xf32>
    %119 = arith.mulf %117, %118 : vector<16x16xf32>
    %cst_47 = arith.constant dense<0xFF800000> : vector<16xf32>
    %120 = vector.multi_reduction <maximumf>, %119, %cst_47 [1] : vector<16x16xf32> to vector<16xf32>
    %121 = vector.shape_cast %120 : vector<16xf32> to vector<16x1xf32>
    %122 = vector.broadcast %121 : vector<16x1xf32> to vector<16x16xf32>
    %123 = arith.subf %119, %122 : vector<16x16xf32>
    %124 = math.exp %123 : vector<16x16xf32>
    %cst_48 = arith.constant dense<0.000000e+00> : vector<16xf32>
    %125 = vector.multi_reduction <add>, %124, %cst_48 [1] : vector<16x16xf32> to vector<16xf32>
    %126 = vector.shape_cast %125 : vector<16xf32> to vector<16x1xf32>
    %127 = tpu.reciprocal %126 {approx = true} : vector<16x1xf32> -> vector<16x1xf32>
    %128 = vector.broadcast %127 : vector<16x1xf32> to vector<16x16xf32>
    %129 = arith.mulf %124, %128 : vector<16x16xf32>
    %cst_49 = arith.constant dense<0.000000e+00> : vector<16x8xf32>
    %130 = tpu.matmul %129, %115, %cst_49 {dimension_numbers = #tpu.dot_dimension_numbers<[1], [0], [0], [1], [0, 0, 1, 1], [], []>} : vector<16x16xf32>, vector<16x8xf32>, vector<16x8xf32> -> vector<16x8xf32>
    %131 = vector.extract_strided_slice %34 {offsets = [0, 0], sizes = [8, 32], strides = [1, 1]} : vector<32x32xf32> to vector<8x32xf32>
    %cst_50 = arith.constant dense<0.000000e+00> : vector<16x32xf32>
    %132 = tpu.matmul %130, %131, %cst_50 {dimension_numbers = #tpu.dot_dimension_numbers<[1], [0], [0], [1], [0, 0, 1, 1], [], []>} : vector<16x8xf32>, vector<8x32xf32>, vector<16x32xf32> -> vector<16x32xf32>
    %133 = vector.extract_strided_slice %27 {offsets = [16, 8], sizes = [16, 8], strides = [1, 1]} : vector<32x64xf32> to vector<16x8xf32>
    %134 = vector.extract_strided_slice %27 {offsets = [16, 40], sizes = [16, 8], strides = [1, 1]} : vector<32x64xf32> to vector<16x8xf32>
    %135 = vector.extract_strided_slice %33 {offsets = [8, 16], sizes = [8, 16], strides = [1, 1]} : vector<32x32xf32> to vector<8x16xf32>
    %cst_51 = arith.constant dense<0.000000e+00> : vector<16x16xf32>
    %136 = tpu.matmul %133, %135, %cst_51 {dimension_numbers = #tpu.dot_dimension_numbers<[1], [0], [0], [1], [0, 0, 1, 1], [], []>} : vector<16x8xf32>, vector<8x16xf32>, vector<16x16xf32> -> vector<16x16xf32>
    %cst_52 = arith.constant 0.353553385 : f32
    %137 = vector.broadcast %cst_52 : f32 to vector<16x16xf32>
    %138 = arith.mulf %136, %137 : vector<16x16xf32>
    %cst_53 = arith.constant dense<0xFF800000> : vector<16xf32>
    %139 = vector.multi_reduction <maximumf>, %138, %cst_53 [1] : vector<16x16xf32> to vector<16xf32>
    %140 = vector.shape_cast %139 : vector<16xf32> to vector<16x1xf32>
    %141 = vector.broadcast %140 : vector<16x1xf32> to vector<16x16xf32>
    %142 = arith.subf %138, %141 : vector<16x16xf32>
    %143 = math.exp %142 : vector<16x16xf32>
    %cst_54 = arith.constant dense<0.000000e+00> : vector<16xf32>
    %144 = vector.multi_reduction <add>, %143, %cst_54 [1] : vector<16x16xf32> to vector<16xf32>
    %145 = vector.shape_cast %144 : vector<16xf32> to vector<16x1xf32>
    %146 = tpu.reciprocal %145 {approx = true} : vector<16x1xf32> -> vector<16x1xf32>
    %147 = vector.broadcast %146 : vector<16x1xf32> to vector<16x16xf32>
    %148 = arith.mulf %143, %147 : vector<16x16xf32>
    %cst_55 = arith.constant dense<0.000000e+00> : vector<16x8xf32>
    %149 = tpu.matmul %148, %134, %cst_55 {dimension_numbers = #tpu.dot_dimension_numbers<[1], [0], [0], [1], [0, 0, 1, 1], [], []>} : vector<16x16xf32>, vector<16x8xf32>, vector<16x8xf32> -> vector<16x8xf32>
    %150 = vector.extract_strided_slice %34 {offsets = [8, 0], sizes = [8, 32], strides = [1, 1]} : vector<32x32xf32> to vector<8x32xf32>
    %cst_56 = arith.constant dense<0.000000e+00> : vector<16x32xf32>
    %151 = tpu.matmul %149, %150, %cst_56 {dimension_numbers = #tpu.dot_dimension_numbers<[1], [0], [0], [1], [0, 0, 1, 1], [], []>} : vector<16x8xf32>, vector<8x32xf32>, vector<16x32xf32> -> vector<16x32xf32>
    %152 = arith.addf %132, %151 : vector<16x32xf32>
    %153 = vector.extract_strided_slice %27 {offsets = [16, 16], sizes = [16, 8], strides = [1, 1]} : vector<32x64xf32> to vector<16x8xf32>
    %154 = vector.extract_strided_slice %27 {offsets = [16, 48], sizes = [16, 8], strides = [1, 1]} : vector<32x64xf32> to vector<16x8xf32>
    %155 = vector.extract_strided_slice %33 {offsets = [16, 16], sizes = [8, 16], strides = [1, 1]} : vector<32x32xf32> to vector<8x16xf32>
    %cst_57 = arith.constant dense<0.000000e+00> : vector<16x16xf32>
    %156 = tpu.matmul %153, %155, %cst_57 {dimension_numbers = #tpu.dot_dimension_numbers<[1], [0], [0], [1], [0, 0, 1, 1], [], []>} : vector<16x8xf32>, vector<8x16xf32>, vector<16x16xf32> -> vector<16x16xf32>
    %cst_58 = arith.constant 0.353553385 : f32
    %157 = vector.broadcast %cst_58 : f32 to vector<16x16xf32>
    %158 = arith.mulf %156, %157 : vector<16x16xf32>
    %cst_59 = arith.constant dense<0xFF800000> : vector<16xf32>
    %159 = vector.multi_reduction <maximumf>, %158, %cst_59 [1] : vector<16x16xf32> to vector<16xf32>
    %160 = vector.shape_cast %159 : vector<16xf32> to vector<16x1xf32>
    %161 = vector.broadcast %160 : vector<16x1xf32> to vector<16x16xf32>
    %162 = arith.subf %158, %161 : vector<16x16xf32>
    %163 = math.exp %162 : vector<16x16xf32>
    %cst_60 = arith.constant dense<0.000000e+00> : vector<16xf32>
    %164 = vector.multi_reduction <add>, %163, %cst_60 [1] : vector<16x16xf32> to vector<16xf32>
    %165 = vector.shape_cast %164 : vector<16xf32> to vector<16x1xf32>
    %166 = tpu.reciprocal %165 {approx = true} : vector<16x1xf32> -> vector<16x1xf32>
    %167 = vector.broadcast %166 : vector<16x1xf32> to vector<16x16xf32>
    %168 = arith.mulf %163, %167 : vector<16x16xf32>
    %cst_61 = arith.constant dense<0.000000e+00> : vector<16x8xf32>
    %169 = tpu.matmul %168, %154, %cst_61 {dimension_numbers = #tpu.dot_dimension_numbers<[1], [0], [0], [1], [0, 0, 1, 1], [], []>} : vector<16x16xf32>, vector<16x8xf32>, vector<16x8xf32> -> vector<16x8xf32>
    %170 = vector.extract_strided_slice %34 {offsets = [16, 0], sizes = [8, 32], strides = [1, 1]} : vector<32x32xf32> to vector<8x32xf32>
    %cst_62 = arith.constant dense<0.000000e+00> : vector<16x32xf32>
    %171 = tpu.matmul %169, %170, %cst_62 {dimension_numbers = #tpu.dot_dimension_numbers<[1], [0], [0], [1], [0, 0, 1, 1], [], []>} : vector<16x8xf32>, vector<8x32xf32>, vector<16x32xf32> -> vector<16x32xf32>
    %172 = arith.addf %152, %171 : vector<16x32xf32>
    %173 = vector.extract_strided_slice %27 {offsets = [16, 24], sizes = [16, 8], strides = [1, 1]} : vector<32x64xf32> to vector<16x8xf32>
    %174 = vector.extract_strided_slice %27 {offsets = [16, 56], sizes = [16, 8], strides = [1, 1]} : vector<32x64xf32> to vector<16x8xf32>
    %175 = vector.extract_strided_slice %33 {offsets = [24, 16], sizes = [8, 16], strides = [1, 1]} : vector<32x32xf32> to vector<8x16xf32>
    %cst_63 = arith.constant dense<0.000000e+00> : vector<16x16xf32>
    %176 = tpu.matmul %173, %175, %cst_63 {dimension_numbers = #tpu.dot_dimension_numbers<[1], [0], [0], [1], [0, 0, 1, 1], [], []>} : vector<16x8xf32>, vector<8x16xf32>, vector<16x16xf32> -> vector<16x16xf32>
    %cst_64 = arith.constant 0.353553385 : f32
    %177 = vector.broadcast %cst_64 : f32 to vector<16x16xf32>
    %178 = arith.mulf %176, %177 : vector<16x16xf32>
    %cst_65 = arith.constant dense<0xFF800000> : vector<16xf32>
    %179 = vector.multi_reduction <maximumf>, %178, %cst_65 [1] : vector<16x16xf32> to vector<16xf32>
    %180 = vector.shape_cast %179 : vector<16xf32> to vector<16x1xf32>
    %181 = vector.broadcast %180 : vector<16x1xf32> to vector<16x16xf32>
    %182 = arith.subf %178, %181 : vector<16x16xf32>
    %183 = math.exp %182 : vector<16x16xf32>
    %cst_66 = arith.constant dense<0.000000e+00> : vector<16xf32>
    %184 = vector.multi_reduction <add>, %183, %cst_66 [1] : vector<16x16xf32> to vector<16xf32>
    %185 = vector.shape_cast %184 : vector<16xf32> to vector<16x1xf32>
    %186 = tpu.reciprocal %185 {approx = true} : vector<16x1xf32> -> vector<16x1xf32>
    %187 = vector.broadcast %186 : vector<16x1xf32> to vector<16x16xf32>
    %188 = arith.mulf %183, %187 : vector<16x16xf32>
    %cst_67 = arith.constant dense<0.000000e+00> : vector<16x8xf32>
    %189 = tpu.matmul %188, %174, %cst_67 {dimension_numbers = #tpu.dot_dimension_numbers<[1], [0], [0], [1], [0, 0, 1, 1], [], []>} : vector<16x16xf32>, vector<16x8xf32>, vector<16x8xf32> -> vector<16x8xf32>
    %190 = vector.extract_strided_slice %34 {offsets = [24, 0], sizes = [8, 32], strides = [1, 1]} : vector<32x32xf32> to vector<8x32xf32>
    %cst_68 = arith.constant dense<0.000000e+00> : vector<16x32xf32>
    %191 = tpu.matmul %189, %190, %cst_68 {dimension_numbers = #tpu.dot_dimension_numbers<[1], [0], [0], [1], [0, 0, 1, 1], [], []>} : vector<16x8xf32>, vector<8x32xf32>, vector<16x32xf32> -> vector<16x32xf32>
    %192 = arith.addf %172, %191 : vector<16x32xf32>
    %193 = tpu.concatenate %113, %192 in 0 : vector<16x32xf32>, vector<16x32xf32> -> vector<32x32xf32>
    %c0_69 = arith.constant 0 : index
    %c0_70 = arith.constant 0 : index
    %194 = vector.load %arg8[%c0_69, %c0_70] : memref<1x32xf32, #tpu.memory_space<vmem>>, vector<1x32xf32>
    %195 = vector.broadcast %194 : vector<1x32xf32> to vector<32x32xf32>
    %196 = arith.addf %193, %195 : vector<32x32xf32>
    %197 = arith.addf %0, %196 : vector<32x32xf32>
    %c0_71 = arith.constant 0 : index
    %c0_72 = arith.constant 0 : index
    %198 = vector.load %arg9[%c0_71, %c0_72] : memref<1x32xf32, #tpu.memory_space<vmem>>, vector<1x32xf32>
    %c0_73 = arith.constant 0 : index
    %c0_74 = arith.constant 0 : index
    %199 = vector.load %arg10[%c0_73, %c0_74] : memref<1x32xf32, #tpu.memory_space<vmem>>, vector<1x32xf32>
    %cst_75 = arith.constant dense<0.000000e+00> : vector<32xf32>
    %200 = vector.multi_reduction <add>, %197, %cst_75 [1] : vector<32x32xf32> to vector<32xf32>
    %201 = vector.shape_cast %200 : vector<32xf32> to vector<32x1xf32>
    %cst_76 = arith.constant 3.200000e+01 : f32
    %202 = vector.broadcast %cst_76 : f32 to vector<32x1xf32>
    %203 = arith.divf %201, %202 : vector<32x1xf32>
    %204 = vector.broadcast %203 : vector<32x1xf32> to vector<32x32xf32>
    %205 = arith.subf %197, %204 : vector<32x32xf32>
    %206 = arith.mulf %205, %205 : vector<32x32xf32>
    %cst_77 = arith.constant dense<0.000000e+00> : vector<32xf32>
    %207 = vector.multi_reduction <add>, %206, %cst_77 [1] : vector<32x32xf32> to vector<32xf32>
    %208 = vector.shape_cast %207 : vector<32xf32> to vector<32x1xf32>
    %cst_78 = arith.constant 3.200000e+01 : f32
    %209 = vector.broadcast %cst_78 : f32 to vector<32x1xf32>
    %210 = arith.divf %208, %209 : vector<32x1xf32>
    %cst_79 = arith.constant 9.99999974E-6 : f32
    %211 = vector.broadcast %cst_79 : f32 to vector<32x1xf32>
    %212 = arith.addf %210, %211 : vector<32x1xf32>
    %213 = math.rsqrt %212 : vector<32x1xf32>
    %214 = vector.broadcast %213 : vector<32x1xf32> to vector<32x32xf32>
    %215 = arith.mulf %205, %214 : vector<32x32xf32>
    %216 = vector.broadcast %198 : vector<1x32xf32> to vector<32x32xf32>
    %217 = arith.mulf %215, %216 : vector<32x32xf32>
    %218 = vector.broadcast %199 : vector<1x32xf32> to vector<32x32xf32>
    %219 = arith.addf %217, %218 : vector<32x32xf32>
    %c0_80 = arith.constant 0 : index
    %c0_81 = arith.constant 0 : index
    %220 = vector.load %arg11[%c0_80, %c0_81] : memref<32x64xf32, #tpu.memory_space<vmem>>, vector<32x64xf32>
    %cst_82 = arith.constant dense<0.000000e+00> : vector<32x64xf32>
    %221 = tpu.matmul %219, %220, %cst_82 {dimension_numbers = #tpu.dot_dimension_numbers<[1], [0], [0], [1], [0, 0, 1, 1], [], []>} : vector<32x32xf32>, vector<32x64xf32>, vector<32x64xf32> -> vector<32x64xf32>
    %c0_83 = arith.constant 0 : index
    %c0_84 = arith.constant 0 : index
    %222 = vector.load %arg12[%c0_83, %c0_84] : memref<1x64xf32, #tpu.memory_space<vmem>>, vector<1x64xf32>
    %223 = vector.broadcast %222 : vector<1x64xf32> to vector<32x64xf32>
    %224 = arith.addf %221, %223 : vector<32x64xf32>
    %cst_85 = arith.constant 5.000000e-01 : f32
    %225 = vector.broadcast %cst_85 : f32 to vector<32x64xf32>
    %226 = arith.mulf %225, %224 : vector<32x64xf32>
    %cst_86 = arith.constant 0.707106769 : f32
    %227 = vector.broadcast %cst_86 : f32 to vector<32x64xf32>
    %228 = arith.mulf %224, %227 : vector<32x64xf32>
    %229 = math.absf %228 : vector<32x64xf32>
    %cst_87 = arith.constant 0.327591091 : f32
    %230 = vector.broadcast %cst_87 : f32 to vector<32x64xf32>
    %231 = arith.mulf %230, %229 : vector<32x64xf32>
    %cst_88 = arith.constant 1.000000e+00 : f32
    %232 = vector.broadcast %cst_88 : f32 to vector<32x64xf32>
    %233 = arith.addf %232, %231 : vector<32x64xf32>
    %cst_89 = arith.constant 1.000000e+00 : f32
    %234 = vector.broadcast %cst_89 : f32 to vector<32x64xf32>
    %235 = arith.divf %234, %233 : vector<32x64xf32>
    %cst_90 = arith.constant 1.06140542 : f32
    %236 = vector.broadcast %cst_90 : f32 to vector<32x64xf32>
    %237 = arith.mulf %236, %235 : vector<32x64xf32>
    %cst_91 = arith.constant -1.45315206 : f32
    %238 = vector.broadcast %cst_91 : f32 to vector<32x64xf32>
    %239 = arith.addf %237, %238 : vector<32x64xf32>
    %240 = arith.mulf %239, %235 : vector<32x64xf32>
    %cst_92 = arith.constant 1.42141378 : f32
    %241 = vector.broadcast %cst_92 : f32 to vector<32x64xf32>
    %242 = arith.addf %240, %241 : vector<32x64xf32>
    %243 = arith.mulf %242, %235 : vector<32x64xf32>
    %cst_93 = arith.constant -0.284496725 : f32
    %244 = vector.broadcast %cst_93 : f32 to vector<32x64xf32>
    %245 = arith.addf %243, %244 : vector<32x64xf32>
    %246 = arith.mulf %245, %235 : vector<32x64xf32>
    %cst_94 = arith.constant 0.254829586 : f32
    %247 = vector.broadcast %cst_94 : f32 to vector<32x64xf32>
    %248 = arith.addf %246, %247 : vector<32x64xf32>
    %249 = arith.mulf %248, %235 : vector<32x64xf32>
    %cst_95 = arith.constant 0.000000e+00 : f32
    %250 = vector.broadcast %cst_95 : f32 to vector<32x64xf32>
    %251 = arith.subf %250, %229 : vector<32x64xf32>
    %252 = arith.mulf %251, %229 : vector<32x64xf32>
    %253 = math.exp %252 : vector<32x64xf32>
    %254 = arith.mulf %249, %253 : vector<32x64xf32>
    %cst_96 = arith.constant 1.000000e+00 : f32
    %255 = vector.broadcast %cst_96 : f32 to vector<32x64xf32>
    %256 = arith.subf %255, %254 : vector<32x64xf32>
    %cst_97 = arith.constant 0.000000e+00 : f32
    %257 = vector.broadcast %cst_97 : f32 to vector<32x64xf32>
    %258 = arith.cmpf oge, %228, %257 : vector<32x64xf32>
    %cst_98 = arith.constant 0.000000e+00 : f32
    %259 = vector.broadcast %cst_98 : f32 to vector<32x64xf32>
    %260 = arith.subf %259, %256 : vector<32x64xf32>
    %261 = arith.select %258, %256, %260 : vector<32x64xi1>, vector<32x64xf32>
    %cst_99 = arith.constant 1.000000e+00 : f32
    %262 = vector.broadcast %cst_99 : f32 to vector<32x64xf32>
    %263 = arith.addf %262, %261 : vector<32x64xf32>
    %264 = arith.mulf %226, %263 : vector<32x64xf32>
    %c0_100 = arith.constant 0 : index
    %c0_101 = arith.constant 0 : index
    %265 = vector.load %arg13[%c0_100, %c0_101] : memref<64x32xf32, #tpu.memory_space<vmem>>, vector<64x32xf32>
    %cst_102 = arith.constant dense<0.000000e+00> : vector<32x32xf32>
    %266 = tpu.matmul %264, %265, %cst_102 {dimension_numbers = #tpu.dot_dimension_numbers<[1], [0], [0], [1], [0, 0, 1, 1], [], []>} : vector<32x64xf32>, vector<64x32xf32>, vector<32x32xf32> -> vector<32x32xf32>
    %c0_103 = arith.constant 0 : index
    %c0_104 = arith.constant 0 : index
    %267 = vector.load %arg14[%c0_103, %c0_104] : memref<1x32xf32, #tpu.memory_space<vmem>>, vector<1x32xf32>
    %268 = vector.broadcast %267 : vector<1x32xf32> to vector<32x32xf32>
    %269 = arith.addf %266, %268 : vector<32x32xf32>
    %270 = arith.addf %197, %269 : vector<32x32xf32>
    %c0_105 = arith.constant 0 : index
    %c0_106 = arith.constant 0 : index
    %271 = vector.load %arg15[%c0_105, %c0_106] : memref<32x32xf32, #tpu.memory_space<vmem>>, vector<32x32xf32>
    tpu.vector_store %arg15[%c0_105, %c0_106], %270 {strides = array<i32>} : memref<32x32xf32, #tpu.memory_space<vmem>>, vector<32x32xf32>,
    return
  }
}

</mosaic_0001>

<llo_original>
// kernel: basic_transformer_block.1
$region0: #{basic_transformer_block.1}
  #allocation0 [shape = 'u32[]', space=smem, size = 0x4, offset = 0x4, fixed_abs, tag = 'smem constant byte address 0x4 - core index']
  #allocation1 [shape = 'u32[144,128]{1,0:T(1,128)}', space=vmem, size = 0x12000, scoped, tag = 'internal scratch']
  %s0 = inlined_call_operand.vmem [shape: f32[32,32], index: 0, kind: input, shape index: {}]
  %s1 = inlined_call_operand.vmem [shape: f32[1,32], index: 1, kind: input, shape index: {}]
  %s2 = inlined_call_operand.vmem [shape: f32[1,32], index: 2, kind: input, shape index: {}]
  %s3 = inlined_call_operand.vmem [shape: f32[32,64], index: 3, kind: input, shape index: {}]
  %s4 = inlined_call_operand.vmem [shape: f32[1,64], index: 4, kind: input, shape index: {}]
  %s5 = inlined_call_operand.vmem [shape: f32[32,32], index: 5, kind: input, shape index: {}]
  %s6 = inlined_call_operand.vmem [shape: f32[32,1], index: 6, kind: input, shape index: {}]
  %s7 = inlined_call_operand.vmem [shape: f32[32,32], index: 7, kind: input, shape index: {}]
  %s8 = inlined_call_operand.vmem [shape: f32[1,32], index: 8, kind: input, shape index: {}]
  %s9 = inlined_call_operand.vmem [shape: f32[1,32], index: 9, kind: input, shape index: {}]
  %s10 = inlined_call_operand.vmem [shape: f32[1,32], index: 10, kind: input, shape index: {}]
  %s11 = inlined_call_operand.vmem [shape: f32[32,64], index: 11, kind: input, shape index: {}]
  %s12 = inlined_call_operand.vmem [shape: f32[1,64], index: 12, kind: input, shape index: {}]
  %s13 = inlined_call_operand.vmem [shape: f32[64,32], index: 13, kind: input, shape index: {}]
  %s14 = inlined_call_operand.vmem [shape: f32[1,32], index: 14, kind: input, shape index: {}]
  %s15 = inlined_call_operand.hbm [shape: f32[32,32], index: 15, kind: output, shape index: {}]
  %s16 = sld [smem:[#allocation0]]
  $region70: #{basic_transformer_block.1} parent=0
    _
  %s18 = ssub.s32 1, %s16
  %s19 = scalar_select 0, %s18, %s16
  $region1: #{basic_transformer_block.1} parent=0
    #allocation2 [shape = 'u8[16384]{0}', space=vmem, size = 0x4000, scoped, tag = 'output window, operand 0, single buffered']
    #allocation3 [shape = 's32[1]{0}', space=sflag, size = 0x4, scoped, tag = 'scoped memory for basic_transformer_block.1']
    %20 = vsyncpa [#allocation3], 0
    // Predicated region
    $region2: #{basic_transformer_block.1} parent=1 // pred_check
      _
    $region3: #{basic_transformer_block.1} parent=1 // pred_check_branch
      %22 = sbr.rel (0) target = $region5
    $region4: #{basic_transformer_block.1} parent=1 // pred_region
      _
    $region5: #{basic_transformer_block.1} parent=1 // pred_fallthru
      _
    // Predicated region
    $region6: #{basic_transformer_block.1} parent=1 // pred_check
      _
    $region7: #{basic_transformer_block.1} parent=1 // pred_check_branch
      %24 = sbr.rel (0) target = $region9
    $region8: #{basic_transformer_block.1} parent=1 // pred_region
      _
    $region9: #{basic_transformer_block.1} parent=1 // pred_fallthru
      _
    // Predicated region
    $region10: #{basic_transformer_block.1} parent=1 // pred_check
      _
    $region11: #{basic_transformer_block.1} parent=1 // pred_check_branch
      %26 = sbr.rel (0) target = $region13
    $region12: #{basic_transformer_block.1} parent=1 // pred_region
      _
    $region13: #{basic_transformer_block.1} parent=1 // pred_fallthru
      _
    // Predicated region
    $region14: #{basic_transformer_block.1} parent=1 // pred_check
      _
    $region15: #{basic_transformer_block.1} parent=1 // pred_check_branch
      %28 = sbr.rel (0) target = $region17
    $region16: #{basic_transformer_block.1} parent=1 // pred_region
      _
    $region17: #{basic_transformer_block.1} parent=1 // pred_fallthru
      _
    // Predicated region
    $region18: #{basic_transformer_block.1} parent=1 // pred_check
      _
    $region19: #{basic_transformer_block.1} parent=1 // pred_check_branch
      %30 = sbr.rel (0) target = $region21
    $region20: #{basic_transformer_block.1} parent=1 // pred_region
      _
    $region21: #{basic_transformer_block.1} parent=1 // pred_fallthru
      _
    // Predicated region
    $region22: #{basic_transformer_block.1} parent=1 // pred_check
      _
    $region23: #{basic_transformer_block.1} parent=1 // pred_check_branch
      %32 = sbr.rel (0) target = $region25
    $region24: #{basic_transformer_block.1} parent=1 // pred_region
      _
    $region25: #{basic_transformer_block.1} parent=1 // pred_fallthru
      _
    // Predicated region
    $region26: #{basic_transformer_block.1} parent=1 // pred_check
      _
    $region27: #{basic_transformer_block.1} parent=1 // pred_check_branch
      %34 = sbr.rel (0) target = $region29
    $region28: #{basic_transformer_block.1} parent=1 // pred_region
      _
    $region29: #{basic_transformer_block.1} parent=1 // pred_fallthru
      _
    // Predicated region
    $region30: #{basic_transformer_block.1} parent=1 // pred_check
      _
    $region31: #{basic_transformer_block.1} parent=1 // pred_check_branch
      %36 = sbr.rel (0) target = $region33
    $region32: #{basic_transformer_block.1} parent=1 // pred_region
      _
    $region33: #{basic_transformer_block.1} parent=1 // pred_fallthru
      _
    // Predicated region
    $region34: #{basic_transformer_block.1} parent=1 // pred_check
      _
    $region35: #{basic_transformer_block.1} parent=1 // pred_check_branch
      %38 = sbr.rel (0) target = $region37
    $region36: #{basic_transformer_block.1} parent=1 // pred_region
      _
    $region37: #{basic_transformer_block.1} parent=1 // pred_fallthru
      _
    // Predicated region
    $region38: #{basic_transformer_block.1} parent=1 // pred_check
      _
    $region39: #{basic_transformer_block.1} parent=1 // pred_check_branch
      %40 = sbr.rel (0) target = $region41
    $region40: #{basic_transformer_block.1} parent=1 // pred_region
      _
    $region41: #{basic_transformer_block.1} parent=1 // pred_fallthru
      _
    // Predicated region
    $region42: #{basic_transformer_block.1} parent=1 // pred_check
      _
    $region43: #{basic_transformer_block.1} parent=1 // pred_check_branch
      %42 = sbr.rel (0) target = $region45
    $region44: #{basic_transformer_block.1} parent=1 // pred_region
      _
    $region45: #{basic_transformer_block.1} parent=1 // pred_fallthru
      _
    // Predicated region
    $region46: #{basic_transformer_block.1} parent=1 // pred_check
      _
    $region47: #{basic_transformer_block.1} parent=1 // pred_check_branch
      %44 = sbr.rel (0) target = $region49
    $region48: #{basic_transformer_block.1} parent=1 // pred_region
      _
    $region49: #{basic_transformer_block.1} parent=1 // pred_fallthru
      _
    // Predicated region
    $region50: #{basic_transformer_block.1} parent=1 // pred_check
      _
    $region51: #{basic_transformer_block.1} parent=1 // pred_check_branch
      %46 = sbr.rel (0) target = $region53
    $region52: #{basic_transformer_block.1} parent=1 // pred_region
      _
    $region53: #{basic_transformer_block.1} parent=1 // pred_fallthru
      _
    // Predicated region
    $region54: #{basic_transformer_block.1} parent=1 // pred_check
      _
    $region55: #{basic_transformer_block.1} parent=1 // pred_check_branch
      %48 = sbr.rel (0) target = $region57
    $region56: #{basic_transformer_block.1} parent=1 // pred_region
      _
    $region57: #{basic_transformer_block.1} parent=1 // pred_fallthru
      _
    // Predicated region
    $region58: #{basic_transformer_block.1} parent=1 // pred_check
      _
    $region59: #{basic_transformer_block.1} parent=1 // pred_check_branch
      %50 = sbr.rel (0) target = $region61
    $region60: #{basic_transformer_block.1} parent=1 // pred_region
      _
    $region61: #{basic_transformer_block.1} parent=1 // pred_fallthru
      _
    %v51 = vld [vmem:[%s0] sm:$0xff]
    %v52 = vld [vmem:[%s0 + $0x8] sm:$0xff]
    %v53 = vld [vmem:[%s0 + $0x10] sm:$0xff]
    %v54 = vld [vmem:[%s0 + $0x18] sm:$0xff]
    %v55 = vld [vmem:[%s1] sm:$0x1]
    %v56 = vld [vmem:[%s2] sm:$0x1]
    %vm57 = vcmask 261120
    %v58 = vsel %vm57, %v51, 0.0
    %59 = vadd.xlane.f32.xlu0 %v58
    %v60 = vpop.xlane.xlu0 %59
    %v61 = vsel %vm57, %v52, 0.0
    %62 = vadd.xlane.f32.xlu0 %v61
    %v63 = vpop.xlane.xlu0 %62
    %v64 = vsel %vm57, %v53, 0.0
    %65 = vadd.xlane.f32.xlu0 %v64
    %v66 = vpop.xlane.xlu0 %65
    %v67 = vsel %vm57, %v54, 0.0
    %68 = vadd.xlane.f32.xlu0 %v67
    %v69 = vpop.xlane.xlu0 %68
    %v70 = vrcp.pop 32.0
    %v71 = vmul.f32 %v60, %v70
    %v72 = vmul.f32 %v63, %v70
    %v73 = vmul.f32 %v66, %v70
    %v74 = vmul.f32 %v69, %v70
    %v75 = vsub.f32 %v51, %v71
    %v76 = vsub.f32 %v52, %v72
    %v77 = vsub.f32 %v53, %v73
    %v78 = vsub.f32 %v54, %v74
    %v79 = vmul.f32 %v75, %v75
    %v80 = vmul.f32 %v76, %v76
    %v81 = vmul.f32 %v77, %v77
    %v82 = vmul.f32 %v78, %v78
    %v83 = vsel %vm57, %v79, 0.0
    %84 = vadd.xlane.f32.xlu0 %v83
    %v85 = vpop.xlane.xlu0 %84
    %v86 = vsel %vm57, %v80, 0.0
    %87 = vadd.xlane.f32.xlu0 %v86
    %v88 = vpop.xlane.xlu0 %87
    %v89 = vsel %vm57, %v81, 0.0
    %90 = vadd.xlane.f32.xlu0 %v89
    %v91 = vpop.xlane.xlu0 %90
    %v92 = vsel %vm57, %v82, 0.0
    %93 = vadd.xlane.f32.xlu0 %v92
    %v94 = vpop.xlane.xlu0 %93
    %v95 = vmul.f32 %v85, %v70
    %v96 = vmul.f32 %v88, %v70
    %v97 = vmul.f32 %v91, %v70
    %v98 = vmul.f32 %v94, %v70
    %v99 = vadd.f32 %v95, 1e-05
    %v100 = vadd.f32 %v96, 1e-05
    %v101 = vadd.f32 %v97, 1e-05
    %v102 = vadd.f32 %v98, 1e-05
    %v103 = vrsqrt.pop %v99
    %v104 = vrsqrt.pop %v100
    %v105 = vrsqrt.pop %v101
    %v106 = vrsqrt.pop %v102
    %v107 = vmul.f32 %v75, %v103
    %v108 = vmul.f32 %v76, %v104
    %v109 = vmul.f32 %v77, %v105
    %v110 = vmul.f32 %v78, %v106
    %v112 = vlaneseq
    %v113 = vshrl.u32 %v112, 7
    %v114 = vsub.s32 0, %v113
    %v115 = vrot.slane %v55, %v114
    %v117 = vmul.f32 %v107, %v115
    %v118 = vmul.f32 %v108, %v115
    %v119 = vmul.f32 %v109, %v115
    %v120 = vmul.f32 %v110, %v115
    %v122 = vlaneseq
    %v123 = vshrl.u32 %v122, 7
    %v124 = vsub.s32 0, %v123
    %v125 = vrot.slane %v56, %v124
    %v127 = vadd.f32 %v117, %v125
    %v128 = vadd.f32 %v118, %v125
    %v129 = vadd.f32 %v119, %v125
    %v130 = vadd.f32 %v120, %v125
    %v131 = vld [vmem:[%s3] sm:$0xff]
    %v132 = vld [vmem:[%s3 + $0x8] sm:$0xff]
    %v133 = vld [vmem:[%s3 + $0x10] sm:$0xff]
    %v134 = vld [vmem:[%s3 + $0x18] sm:$0xff]
    %v135 = vld [vmem:[%s4] sm:$0x1]
    %v137 = vlaneseq
    %v138 = vshrl.u32 %v137, 7
    %v139 = vsub.s32 0, %v138
    %v140 = vrot.slane %v135, %v139
    %v143 = vsel %vm57, %v127, 0
    %v146 = vsel %vm57, %v128, 0
    %v149 = vsel %vm57, %v129, 0
    %v152 = vsel %vm57, %v130, 0
    %154 = vmatprep.subr.mxu0 0.0
    %155 = vmatpush1.msra.mxu0 %v131
    %156 = vmatprep.subr.mxu0 0.0
    %157 = vmatpush1.msra.mxu0 %v132
    %158 = vmatprep.subr.mxu0 0.0
    %159 = vmatpush1.msra.mxu0 %v133
    %160 = vmatprep.subr.mxu0 0.0
    %161 = vmatpush1.msra.mxu0 %v134
    %162 = vmatprep.subr.mxu0 0.0
    %163 = vmatpush1.msra.mxu0 0.0
    %164 = vmatprep.subr.mxu0 0.0
    %165 = vmatpush1.msra.mxu0 0.0
    %166 = vmatprep.subr.mxu0 0.0
    %167 = vmatpush1.msra.mxu0 0.0
    %168 = vmatprep.subr.mxu0 0.0
    %169 = vmatpush1.msra.mxu0 0.0
    %170 = vmatprep.subr.mxu0 0.0
    %171 = vmatpush1.msra.mxu0 0.0
    %172 = vmatprep.subr.mxu0 0.0
    %173 = vmatpush1.msra.mxu0 0.0
    %174 = vmatprep.subr.mxu0 0.0
    %175 = vmatpush1.msra.mxu0 0.0
    %176 = vmatprep.subr.mxu0 0.0
    %177 = vmatpush1.msra.mxu0 0.0
    %178 = vmatprep.subr.mxu0 0.0
    %179 = vmatpush1.msra.mxu0 0.0
    %180 = vmatprep.subr.mxu0 0.0
    %181 = vmatpush1.msra.mxu0 0.0
    %182 = vmatprep.subr.mxu0 0.0
    %183 = vmatpush1.msra.mxu0 0.0
    %184 = vmatprep.subr.mxu0 0.0
    %185 = vmatpush1.msra.mxu0 0.0
    %186 = vmatprep.subr.mxu0 0.0
    %187 = vmatpush1.msra.mxu0 0.0
    %188 = vmatprep.subr.mxu0 0.0
    %189 = vmatpush1.msra.mxu0 0.0
    %190 = vmatprep.subr.mxu0 0.0
    %191 = vmatpush1.msra.mxu0 0.0
    %192 = vmatprep.subr.mxu0 0.0
    %193 = vmatpush1.msra.mxu0 0.0
    %194 = vmatprep.subr.mxu0 0.0
    %195 = vmatpush1.msra.mxu0 0.0
    %196 = vmatprep.subr.mxu0 0.0
    %197 = vmatpush1.msra.mxu0 0.0
    %198 = vmatprep.subr.mxu0 0.0
    %199 = vmatpush1.msra.mxu0 0.0
    %200 = vmatprep.subr.mxu0 0.0
    %201 = vmatpush1.msra.mxu0 0.0
    %202 = vmatprep.subr.mxu0 0.0
    %203 = vmatpush1.msra.mxu0 0.0
    %204 = vmatprep.subr.mxu0 0.0
    %205 = vmatpush1.msra.mxu0 0.0
    %206 = vmatprep.subr.mxu0 0.0
    %207 = vmatpush1.msra.mxu0 0.0
    %208 = vmatprep.subr.mxu0 0.0
    %209 = vmatpush1.msra.mxu0 0.0
    %210 = vmatprep.subr.mxu0 0.0
    %211 = vmatpush1.msra.mxu0 0.0
    %212 = vmatprep.subr.mxu0 0.0
    %213 = vmatpush1.msra.mxu0 0.0
    %214 = vmatprep.subr.mxu0 0.0
    %215 = vmatpush1.msra.mxu0 0.0
    %216 = vmatprep.subr.mxu0 0.0
    %217 = vmatpush1.msra.mxu0 0.0
    %218 = vmatprep.mubr.f32.mxu0 0.0
    %219 = vmatmul.mubr.f32.gmra.mrb[0].mxu0 %v143
    %v220 = vpop.f32.mrb[0].mxu0
    %v221 = vadd.f32 %v140, %v220
    %v222 = vpop.f32.mrb[0].mxu0
    %223 = vmatprep.mubr.f32.mxu0 0.0
    %224 = vmatmul.mubr.f32.gmra.mrb[0].mxu0 %v146
    %v225 = vpop.f32.mrb[0].mxu0
    %v226 = vadd.f32 %v140, %v225
    %v227 = vpop.f32.mrb[0].mxu0
    %228 = vmatprep.mubr.f32.mxu0 0.0
    %229 = vmatmul.mubr.f32.gmra.mrb[0].mxu0 %v149
    %v230 = vpop.f32.mrb[0].mxu0
    %v231 = vadd.f32 %v140, %v230
    %v232 = vpop.f32.mrb[0].mxu0
    %233 = vmatprep.mubr.f32.mxu0 0.0
    %234 = vmatmul.mubr.f32.gmra.mrb[0].mxu0 %v152
    %v235 = vpop.f32.mrb[0].mxu0
    %v236 = vadd.f32 %v140, %v235
    %v237 = vpop.f32.mrb[0].mxu0
    %238 = vdwg.mxu0
    %v239 = vld [vmem:[%s5] sm:$0xff]
    %v240 = vld [vmem:[%s5 + $0x8] sm:$0xff]
    %v241 = vld [vmem:[%s5 + $0x10] sm:$0xff]
    %v242 = vld [vmem:[%s5 + $0x18] sm:$0xff]
    %v243 = vld [vmem:[%s6] sm:$0xff]
    %v244 = vld [vmem:[%s6 + $0x8] sm:$0xff]
    %v245 = vld [vmem:[%s6 + $0x10] sm:$0xff]
    %v246 = vld [vmem:[%s6 + $0x18] sm:$0xff]
    %248 = vset.pattern.permute.xlu0 0
    %249 = vperm.xlu0 %248, %v243
    %v250 = vpop.permute.xlu0 %249
    %253 = vset.pattern.permute.xlu0 0
    %254 = vperm.xlu0 %253, %v244
    %v255 = vpop.permute.xlu0 %254
    %258 = vset.pattern.permute.xlu0 0
    %259 = vperm.xlu0 %258, %v245
    %v260 = vpop.permute.xlu0 %259
    %263 = vset.pattern.permute.xlu0 0
    %264 = vperm.xlu0 %263, %v246
    %v265 = vpop.permute.xlu0 %264
    %v268 = vsel %vm57, %v239, 0
    %v271 = vsel %vm57, %v240, 0
    %v274 = vsel %vm57, %v241, 0
    %v277 = vsel %vm57, %v242, 0
    %279 = vmatprep.subr.mxu0 0.0
    %280 = vmatpush1.xpose.msra.mxu0 %v143
    %281 = vmatprep.subr.mxu0 0.0
    %282 = vmatpush1.xpose.msra.mxu0 %v146
    %283 = vmatprep.subr.mxu0 0.0
    %284 = vmatpush1.xpose.msra.mxu0 %v149
    %285 = vmatprep.subr.mxu0 0.0
    %286 = vmatpush1.xpose.msra.mxu0 %v152
    %287 = vmatprep.subr.mxu0 0.0
    %288 = vmatpush1.xpose.msra.mxu0 0.0
    %289 = vmatprep.subr.mxu0 0.0
    %290 = vmatpush1.xpose.msra.mxu0 0.0
    %291 = vmatprep.subr.mxu0 0.0
    %292 = vmatpush1.xpose.msra.mxu0 0.0
    %293 = vmatprep.subr.mxu0 0.0
    %294 = vmatpush1.xpose.msra.mxu0 0.0
    %295 = vmatprep.subr.mxu0 0.0
    %296 = vmatpush1.xpose.msra.mxu0 0.0
    %297 = vmatprep.subr.mxu0 0.0
    %298 = vmatpush1.xpose.msra.mxu0 0.0
    %299 = vmatprep.subr.mxu0 0.0
    %300 = vmatpush1.xpose.msra.mxu0 0.0
    %301 = vmatprep.subr.mxu0 0.0
    %302 = vmatpush1.xpose.msra.mxu0 0.0
    %303 = vmatprep.subr.mxu0 0.0
    %304 = vmatpush1.xpose.msra.mxu0 0.0
    %305 = vmatprep.subr.mxu0 0.0
    %306 = vmatpush1.xpose.msra.mxu0 0.0
    %307 = vmatprep.subr.mxu0 0.0
    %308 = vmatpush1.xpose.msra.mxu0 0.0
    %309 = vmatprep.subr.mxu0 0.0
    %310 = vmatpush1.xpose.msra.mxu0 0.0
    %311 = vmatprep.subr.mxu0 0.0
    %312 = vmatpush1.xpose.msra.mxu0 0.0
    %313 = vmatprep.subr.mxu0 0.0
    %314 = vmatpush1.xpose.msra.mxu0 0.0
    %315 = vmatprep.subr.mxu0 0.0
    %316 = vmatpush1.xpose.msra.mxu0 0.0
    %317 = vmatprep.subr.mxu0 0.0
    %318 = vmatpush1.xpose.msra.mxu0 0.0
    %319 = vmatprep.subr.mxu0 0.0
    %320 = vmatpush1.xpose.msra.mxu0 0.0
    %321 = vmatprep.subr.mxu0 0.0
    %322 = vmatpush1.xpose.msra.mxu0 0.0
    %323 = vmatprep.subr.mxu0 0.0
    %324 = vmatpush1.xpose.msra.mxu0 0.0
    %325 = vmatprep.subr.mxu0 0.0
    %326 = vmatpush1.xpose.msra.mxu0 0.0
    %327 = vmatprep.subr.mxu0 0.0
    %328 = vmatpush1.xpose.msra.mxu0 0.0
    %329 = vmatprep.subr.mxu0 0.0
    %330 = vmatpush1.xpose.msra.mxu0 0.0
    %331 = vmatprep.subr.mxu0 0.0
    %332 = vmatpush1.xpose.msra.mxu0 0.0
    %333 = vmatprep.subr.mxu0 0.0
    %334 = vmatpush1.xpose.msra.mxu0 0.0
    %335 = vmatprep.subr.mxu0 0.0
    %336 = vmatpush1.xpose.msra.mxu0 0.0
    %337 = vmatprep.subr.mxu0 0.0
    %338 = vmatpush1.xpose.msra.mxu0 0.0
    %339 = vmatprep.subr.mxu0 0.0
    %340 = vmatpush1.xpose.msra.mxu0 0.0
    %341 = vmatprep.subr.mxu0 0.0
    %342 = vmatpush1.xpose.msra.mxu0 0.0
    %343 = vmatprep.mubr.f32.mxu0 0.0
    %344 = vmatmul.mubr.f32.gmra.mrb[0].mxu0 %v268
    %v345 = vpop.f32.mrb[0].mxu0
    %v346 = vadd.f32 %v250, %v345
    %v347 = vpop.f32.mrb[0].mxu0
    %348 = vmatprep.mubr.f32.mxu0 0.0
    %349 = vmatmul.mubr.f32.gmra.mrb[0].mxu0 %v271
    %v350 = vpop.f32.mrb[0].mxu0
    %v351 = vadd.f32 %v255, %v350
    %v352 = vpop.f32.mrb[0].mxu0
    %353 = vmatprep.mubr.f32.mxu0 0.0
    %354 = vmatmul.mubr.f32.gmra.mrb[0].mxu0 %v274
    %v355 = vpop.f32.mrb[0].mxu0
    %v356 = vadd.f32 %v260, %v355
    %v357 = vpop.f32.mrb[0].mxu0
    %358 = vmatprep.mubr.f32.mxu0 0.0
    %359 = vmatmul.mubr.f32.gmra.mrb[0].mxu0 %v277
    %v360 = vpop.f32.mrb[0].mxu0
    %v361 = vadd.f32 %v265, %v360
    %v362 = vpop.f32.mrb[0].mxu0
    %363 = vdwg.mxu0
    %v364 = vld [vmem:[%s7] sm:$0xff]
    %v365 = vld [vmem:[%s7 + $0x8] sm:$0xff]
    %v366 = vld [vmem:[%s7 + $0x10] sm:$0xff]
    %v367 = vld [vmem:[%s7 + $0x18] sm:$0xff]
    %vm368 = vcmask 64512
    %v370 = vsel %vm368, %v221, 0
    %v373 = vsel %vm368, %v226, 0
    %375 = vmatprep.subr.mxu0 0.0
    %376 = vmatpush1.msra.mxu0 %v346
    %377 = vmatprep.subr.mxu0 0.0
    %378 = vmatpush1.msra.mxu0 0.0
    %379 = vmatprep.subr.mxu0 0.0
    %380 = vmatpush1.msra.mxu0 0.0
    %381 = vmatprep.subr.mxu0 0.0
    %382 = vmatpush1.msra.mxu0 0.0
    %383 = vmatprep.subr.mxu0 0.0
    %384 = vmatpush1.msra.mxu0 0.0
    %385 = vmatprep.subr.mxu0 0.0
    %386 = vmatpush1.msra.mxu0 0.0
    %387 = vmatprep.subr.mxu0 0.0
    %388 = vmatpush1.msra.mxu0 0.0
    %389 = vmatprep.subr.mxu0 0.0
    %390 = vmatpush1.msra.mxu0 0.0
    %391 = vmatprep.subr.mxu0 0.0
    %392 = vmatpush1.msra.mxu0 0.0
    %393 = vmatprep.subr.mxu0 0.0
    %394 = vmatpush1.msra.mxu0 0.0
    %395 = vmatprep.subr.mxu0 0.0
    %396 = vmatpush1.msra.mxu0 0.0
    %397 = vmatprep.subr.mxu0 0.0
    %398 = vmatpush1.msra.mxu0 0.0
    %399 = vmatprep.subr.mxu0 0.0
    %400 = vmatpush1.msra.mxu0 0.0
    %401 = vmatprep.subr.mxu0 0.0
    %402 = vmatpush1.msra.mxu0 0.0
    %403 = vmatprep.subr.mxu0 0.0
    %404 = vmatpush1.msra.mxu0 0.0
    %405 = vmatprep.subr.mxu0 0.0
    %406 = vmatpush1.msra.mxu0 0.0
    %407 = vmatprep.subr.mxu0 0.0
    %408 = vmatpush1.msra.mxu0 0.0
    %409 = vmatprep.subr.mxu0 0.0
    %410 = vmatpush1.msra.mxu0 0.0
    %411 = vmatprep.subr.mxu0 0.0
    %412 = vmatpush1.msra.mxu0 0.0
    %413 = vmatprep.subr.mxu0 0.0
    %414 = vmatpush1.msra.mxu0 0.0
    %415 = vmatprep.subr.mxu0 0.0
    %416 = vmatpush1.msra.mxu0 0.0
    %417 = vmatprep.subr.mxu0 0.0
    %418 = vmatpush1.msra.mxu0 0.0
    %419 = vmatprep.subr.mxu0 0.0
    %420 = vmatpush1.msra.mxu0 0.0
    %421 = vmatprep.subr.mxu0 0.0
    %422 = vmatpush1.msra.mxu0 0.0
    %423 = vmatprep.subr.mxu0 0.0
    %424 = vmatpush1.msra.mxu0 0.0
    %425 = vmatprep.subr.mxu0 0.0
    %426 = vmatpush1.msra.mxu0 0.0
    %427 = vmatprep.subr.mxu0 0.0
    %428 = vmatpush1.msra.mxu0 0.0
    %429 = vmatprep.subr.mxu0 0.0
    %430 = vmatpush1.msra.mxu0 0.0
    %431 = vmatprep.subr.mxu0 0.0
    %432 = vmatpush1.msra.mxu0 0.0
    %433 = vmatprep.subr.mxu0 0.0
    %434 = vmatpush1.msra.mxu0 0.0
    %435 = vmatprep.subr.mxu0 0.0
    %436 = vmatpush1.msra.mxu0 0.0
    %437 = vmatprep.subr.mxu0 0.0
    %438 = vmatpush1.msra.mxu0 0.0
    %439 = vmatprep.mubr.f32.mxu0 0.0
    %440 = vmatmul.mubr.f32.gmra.mrb[0].mxu0 %v370
    %v441 = vpop.f32.mrb[0].mxu0
    %v442 = vadd.f32 0.0, %v441
    %v443 = vpop.f32.mrb[0].mxu0
    %444 = vmatprep.mubr.f32.mxu0 0.0
    %445 = vmatmul.mubr.f32.gmra.mrb[0].mxu0 %v373
    %v446 = vpop.f32.mrb[0].mxu0
    %v447 = vadd.f32 0.0, %v446
    %v448 = vpop.f32.mrb[0].mxu0
    %449 = vdwg.mxu0
    %v450 = vmul.f32 %v442, 0.35355338
    %v451 = vmul.f32 %v447, 0.35355338
    %vm452 = vcmask 130048
    %v453 = vsel %vm452, %v450, -inf
    %454 = vmax.xlane.f32.xlu0 %v453
    %v455 = vpop.xlane.xlu0 %454
    %v456 = vsel %vm452, %v451, -inf
    %457 = vmax.xlane.f32.xlu0 %v456
    %v458 = vpop.xlane.xlu0 %457
    %v459 = vsub.f32 %v450, %v455
    %v460 = vsub.f32 %v451, %v458
    %v461 = vmul.f32 %v459, 1.442695
    %v462 = vpow.pop %v461
    %v463 = vmul.f32 %v460, 1.442695
    %v464 = vpow.pop %v463
    %v465 = vsel %vm452, %v462, 0.0
    %466 = vadd.xlane.f32.xlu0 %v465
    %v467 = vpop.xlane.xlu0 %466
    %v468 = vsel %vm452, %v464, 0.0
    %469 = vadd.xlane.f32.xlu0 %v468
    %v470 = vpop.xlane.xlu0 %469
    %v471 = vrcp.pop %v467
    %v472 = vrcp.pop %v470
    %v473 = vmul.f32 %v462, %v471
    %v474 = vmul.f32 %v464, %v472
    %475 = vrot.lane.b32.xlu0 %v221, 96
    %v476 = vpop.permute.xlu0 %475
    %477 = vrot.lane.b32.xlu0 %v226, 96
    %v478 = vpop.permute.xlu0 %477
    %v482 = vsel %vm452, %v473, 0
    %v485 = vsel %vm452, %v474, 0
    %487 = vmatprep.subr.mxu0 0.0
    %488 = vmatpush1.msra.mxu0 %v476
    %489 = vmatprep.subr.mxu0 0.0
    %490 = vmatpush1.msra.mxu0 %v478
    %491 = vmatprep.subr.mxu0 0.0
    %492 = vmatpush1.msra.mxu0 0.0
    %493 = vmatprep.subr.mxu0 0.0
    %494 = vmatpush1.msra.mxu0 0.0
    %495 = vmatprep.subr.mxu0 0.0
    %496 = vmatpush1.msra.mxu0 0.0
    %497 = vmatprep.subr.mxu0 0.0
    %498 = vmatpush1.msra.mxu0 0.0
    %499 = vmatprep.subr.mxu0 0.0
    %500 = vmatpush1.msra.mxu0 0.0
    %501 = vmatprep.subr.mxu0 0.0
    %502 = vmatpush1.msra.mxu0 0.0
    %503 = vmatprep.subr.mxu0 0.0
    %504 = vmatpush1.msra.mxu0 0.0
    %505 = vmatprep.subr.mxu0 0.0
    %506 = vmatpush1.msra.mxu0 0.0
    %507 = vmatprep.subr.mxu0 0.0
    %508 = vmatpush1.msra.mxu0 0.0
    %509 = vmatprep.subr.mxu0 0.0
    %510 = vmatpush1.msra.mxu0 0.0
    %511 = vmatprep.subr.mxu0 0.0
    %512 = vmatpush1.msra.mxu0 0.0
    %513 = vmatprep.subr.mxu0 0.0
    %514 = vmatpush1.msra.mxu0 0.0
    %515 = vmatprep.subr.mxu0 0.0
    %516 = vmatpush1.msra.mxu0 0.0
    %517 = vmatprep.subr.mxu0 0.0
    %518 = vmatpush1.msra.mxu0 0.0
    %519 = vmatprep.subr.mxu0 0.0
    %520 = vmatpush1.msra.mxu0 0.0
    %521 = vmatprep.subr.mxu0 0.0
    %522 = vmatpush1.msra.mxu0 0.0
    %523 = vmatprep.subr.mxu0 0.0
    %524 = vmatpush1.msra.mxu0 0.0
    %525 = vmatprep.subr.mxu0 0.0
    %526 = vmatpush1.msra.mxu0 0.0
    %527 = vmatprep.subr.mxu0 0.0
    %528 = vmatpush1.msra.mxu0 0.0
    %529 = vmatprep.subr.mxu0 0.0
    %530 = vmatpush1.msra.mxu0 0.0
    %531 = vmatprep.subr.mxu0 0.0
    %532 = vmatpush1.msra.mxu0 0.0
    %533 = vmatprep.subr.mxu0 0.0
    %534 = vmatpush1.msra.mxu0 0.0
    %535 = vmatprep.subr.mxu0 0.0
    %536 = vmatpush1.msra.mxu0 0.0
    %537 = vmatprep.subr.mxu0 0.0
    %538 = vmatpush1.msra.mxu0 0.0
    %539 = vmatprep.subr.mxu0 0.0
    %540 = vmatpush1.msra.mxu0 0.0
    %541 = vmatprep.subr.mxu0 0.0
    %542 = vmatpush1.msra.mxu0 0.0
    %543 = vmatprep.subr.mxu0 0.0
    %544 = vmatpush1.msra.mxu0 0.0
    %545 = vmatprep.subr.mxu0 0.0
    %546 = vmatpush1.msra.mxu0 0.0
    %547 = vmatprep.subr.mxu0 0.0
    %548 = vmatpush1.msra.mxu0 0.0
    %549 = vmatprep.subr.mxu0 0.0
    %550 = vmatpush1.msra.mxu0 0.0
    %551 = vmatprep.mubr.f32.mxu0 0.0
    %552 = vmatmul.mubr.f32.gmra.mrb[0].mxu0 %v482
    %v553 = vpop.f32.mrb[0].mxu0
    %v554 = vadd.f32 0.0, %v553
    %v555 = vpop.f32.mrb[0].mxu0
    %556 = vmatprep.mubr.f32.mxu0 0.0
    %557 = vmatmul.mubr.f32.gmra.mrb[0].mxu0 %v485
    %v558 = vpop.f32.mrb[0].mxu0
    %v559 = vadd.f32 0.0, %v558
    %v560 = vpop.f32.mrb[0].mxu0
    %561 = vdwg.mxu0
    %562 = vrot.lane.b32.xlu0 %v221, 120
    %v563 = vpop.permute.xlu0 %562
    %564 = vrot.lane.b32.xlu0 %v226, 120
    %v565 = vpop.permute.xlu0 %564
    %v566 = vsel %vm368, %v563, 0
    %v568 = vsel %vm368, %v565, 0
    %570 = vmatprep.subr.mxu0 0.0
    %571 = vmatpush1.msra.mxu0 %v351
    %572 = vmatprep.subr.mxu0 0.0
    %573 = vmatpush1.msra.mxu0 0.0
    %574 = vmatprep.subr.mxu0 0.0
    %575 = vmatpush1.msra.mxu0 0.0
    %576 = vmatprep.subr.mxu0 0.0
    %577 = vmatpush1.msra.mxu0 0.0
    %578 = vmatprep.subr.mxu0 0.0
    %579 = vmatpush1.msra.mxu0 0.0
    %580 = vmatprep.subr.mxu0 0.0
    %581 = vmatpush1.msra.mxu0 0.0
    %582 = vmatprep.subr.mxu0 0.0
    %583 = vmatpush1.msra.mxu0 0.0
    %584 = vmatprep.subr.mxu0 0.0
    %585 = vmatpush1.msra.mxu0 0.0
    %586 = vmatprep.subr.mxu0 0.0
    %587 = vmatpush1.msra.mxu0 0.0
    %588 = vmatprep.subr.mxu0 0.0
    %589 = vmatpush1.msra.mxu0 0.0
    %590 = vmatprep.subr.mxu0 0.0
    %591 = vmatpush1.msra.mxu0 0.0
    %592 = vmatprep.subr.mxu0 0.0
    %593 = vmatpush1.msra.mxu0 0.0
    %594 = vmatprep.subr.mxu0 0.0
    %595 = vmatpush1.msra.mxu0 0.0
    %596 = vmatprep.subr.mxu0 0.0
    %597 = vmatpush1.msra.mxu0 0.0
    %598 = vmatprep.subr.mxu0 0.0
    %599 = vmatpush1.msra.mxu0 0.0
    %600 = vmatprep.subr.mxu0 0.0
    %601 = vmatpush1.msra.mxu0 0.0
    %602 = vmatprep.subr.mxu0 0.0
    %603 = vmatpush1.msra.mxu0 0.0
    %604 = vmatprep.subr.mxu0 0.0
    %605 = vmatpush1.msra.mxu0 0.0
    %606 = vmatprep.subr.mxu0 0.0
    %607 = vmatpush1.msra.mxu0 0.0
    %608 = vmatprep.subr.mxu0 0.0
    %609 = vmatpush1.msra.mxu0 0.0
    %610 = vmatprep.subr.mxu0 0.0
    %611 = vmatpush1.msra.mxu0 0.0
    %612 = vmatprep.subr.mxu0 0.0
    %613 = vmatpush1.msra.mxu0 0.0
    %614 = vmatprep.subr.mxu0 0.0
    %615 = vmatpush1.msra.mxu0 0.0
    %616 = vmatprep.subr.mxu0 0.0
    %617 = vmatpush1.msra.mxu0 0.0
    %618 = vmatprep.subr.mxu0 0.0
    %619 = vmatpush1.msra.mxu0 0.0
    %620 = vmatprep.subr.mxu0 0.0
    %621 = vmatpush1.msra.mxu0 0.0
    %622 = vmatprep.subr.mxu0 0.0
    %623 = vmatpush1.msra.mxu0 0.0
    %624 = vmatprep.subr.mxu0 0.0
    %625 = vmatpush1.msra.mxu0 0.0
    %626 = vmatprep.subr.mxu0 0.0
    %627 = vmatpush1.msra.mxu0 0.0
    %628 = vmatprep.subr.mxu0 0.0
    %629 = vmatpush1.msra.mxu0 0.0
    %630 = vmatprep.subr.mxu0 0.0
    %631 = vmatpush1.msra.mxu0 0.0
    %632 = vmatprep.subr.mxu0 0.0
    %633 = vmatpush1.msra.mxu0 0.0
    %634 = vmatprep.mubr.f32.mxu0 0.0
    %635 = vmatmul.mubr.f32.gmra.mrb[0].mxu0 %v566
    %v636 = vpop.f32.mrb[0].mxu0
    %v637 = vadd.f32 0.0, %v636
    %v638 = vpop.f32.mrb[0].mxu0
    %639 = vmatprep.mubr.f32.mxu0 0.0
    %640 = vmatmul.mubr.f32.gmra.mrb[0].mxu0 %v568
    %v641 = vpop.f32.mrb[0].mxu0
    %v642 = vadd.f32 0.0, %v641
    %v643 = vpop.f32.mrb[0].mxu0
    %644 = vdwg.mxu0
    %v645 = vmul.f32 %v637, 0.35355338
    %v646 = vmul.f32 %v642, 0.35355338
    %v647 = vsel %vm452, %v645, -inf
    %648 = vmax.xlane.f32.xlu0 %v647
    %v649 = vpop.xlane.xlu0 %648
    %v650 = vsel %vm452, %v646, -inf
    %651 = vmax.xlane.f32.xlu0 %v650
    %v652 = vpop.xlane.xlu0 %651
    %v653 = vsub.f32 %v645, %v649
    %v654 = vsub.f32 %v646, %v652
    %v655 = vmul.f32 %v653, 1.442695
    %v656 = vpow.pop %v655
    %v657 = vmul.f32 %v654, 1.442695
    %v658 = vpow.pop %v657
    %v659 = vsel %vm452, %v656, 0.0
    %660 = vadd.xlane.f32.xlu0 %v659
    %v661 = vpop.xlane.xlu0 %660
    %v662 = vsel %vm452, %v658, 0.0
    %663 = vadd.xlane.f32.xlu0 %v662
    %v664 = vpop.xlane.xlu0 %663
    %v665 = vrcp.pop %v661
    %v666 = vrcp.pop %v664
    %v667 = vmul.f32 %v656, %v665
    %v668 = vmul.f32 %v658, %v666
    %669 = vrot.lane.b32.xlu0 %v221, 88
    %v670 = vpop.permute.xlu0 %669
    %671 = vrot.lane.b32.xlu0 %v226, 88
    %v672 = vpop.permute.xlu0 %671
    %v676 = vsel %vm452, %v667, 0
    %v679 = vsel %vm452, %v668, 0
    %681 = vmatprep.subr.mxu0 0.0
    %682 = vmatpush1.msra.mxu0 %v670
    %683 = vmatprep.subr.mxu0 0.0
    %684 = vmatpush1.msra.mxu0 %v672
    %685 = vmatprep.subr.mxu0 0.0
    %686 = vmatpush1.msra.mxu0 0.0
    %687 = vmatprep.subr.mxu0 0.0
    %688 = vmatpush1.msra.mxu0 0.0
    %689 = vmatprep.subr.mxu0 0.0
    %690 = vmatpush1.msra.mxu0 0.0
    %691 = vmatprep.subr.mxu0 0.0
    %692 = vmatpush1.msra.mxu0 0.0
    %693 = vmatprep.subr.mxu0 0.0
    %694 = vmatpush1.msra.mxu0 0.0
    %695 = vmatprep.subr.mxu0 0.0
    %696 = vmatpush1.msra.mxu0 0.0
    %697 = vmatprep.subr.mxu0 0.0
    %698 = vmatpush1.msra.mxu0 0.0
    %699 = vmatprep.subr.mxu0 0.0
    %700 = vmatpush1.msra.mxu0 0.0
    %701 = vmatprep.subr.mxu0 0.0
    %702 = vmatpush1.msra.mxu0 0.0
    %703 = vmatprep.subr.mxu0 0.0
    %704 = vmatpush1.msra.mxu0 0.0
    %705 = vmatprep.subr.mxu0 0.0
    %706 = vmatpush1.msra.mxu0 0.0
    %707 = vmatprep.subr.mxu0 0.0
    %708 = vmatpush1.msra.mxu0 0.0
    %709 = vmatprep.subr.mxu0 0.0
    %710 = vmatpush1.msra.mxu0 0.0
    %711 = vmatprep.subr.mxu0 0.0
    %712 = vmatpush1.msra.mxu0 0.0
    %713 = vmatprep.subr.mxu0 0.0
    %714 = vmatpush1.msra.mxu0 0.0
    %715 = vmatprep.subr.mxu0 0.0
    %716 = vmatpush1.msra.mxu0 0.0
    %717 = vmatprep.subr.mxu0 0.0
    %718 = vmatpush1.msra.mxu0 0.0
    %719 = vmatprep.subr.mxu0 0.0
    %720 = vmatpush1.msra.mxu0 0.0
    %721 = vmatprep.subr.mxu0 0.0
    %722 = vmatpush1.msra.mxu0 0.0
    %723 = vmatprep.subr.mxu0 0.0
    %724 = vmatpush1.msra.mxu0 0.0
    %725 = vmatprep.subr.mxu0 0.0
    %726 = vmatpush1.msra.mxu0 0.0
    %727 = vmatprep.subr.mxu0 0.0
    %728 = vmatpush1.msra.mxu0 0.0
    %729 = vmatprep.subr.mxu0 0.0
    %730 = vmatpush1.msra.mxu0 0.0
    %731 = vmatprep.subr.mxu0 0.0
    %732 = vmatpush1.msra.mxu0 0.0
    %733 = vmatprep.subr.mxu0 0.0
    %734 = vmatpush1.msra.mxu0 0.0
    %735 = vmatprep.subr.mxu0 0.0
    %736 = vmatpush1.msra.mxu0 0.0
    %737 = vmatprep.subr.mxu0 0.0
    %738 = vmatpush1.msra.mxu0 0.0
    %739 = vmatprep.subr.mxu0 0.0
    %740 = vmatpush1.msra.mxu0 0.0
    %741 = vmatprep.subr.mxu0 0.0
    %742 = vmatpush1.msra.mxu0 0.0
    %743 = vmatprep.subr.mxu0 0.0
    %744 = vmatpush1.msra.mxu0 0.0
    %745 = vmatprep.mubr.f32.mxu0 0.0
    %746 = vmatmul.mubr.f32.gmra.mrb[0].mxu0 %v676
    %v747 = vpop.f32.mrb[0].mxu0
    %v748 = vadd.f32 0.0, %v747
    %v749 = vpop.f32.mrb[0].mxu0
    %750 = vmatprep.mubr.f32.mxu0 0.0
    %751 = vmatmul.mubr.f32.gmra.mrb[0].mxu0 %v679
    %v752 = vpop.f32.mrb[0].mxu0
    %v753 = vadd.f32 0.0, %v752
    %v754 = vpop.f32.mrb[0].mxu0
    %755 = vdwg.mxu0
    %v757 = vsel %vm368, %v748, 0
    %v760 = vsel %vm368, %v753, 0
    %762 = vmatprep.subr.mxu0 0.0
    %763 = vmatpush1.msra.mxu0 %v365
    %764 = vmatprep.subr.mxu0 0.0
    %765 = vmatpush1.msra.mxu0 0.0
    %766 = vmatprep.subr.mxu0 0.0
    %767 = vmatpush1.msra.mxu0 0.0
    %768 = vmatprep.subr.mxu0 0.0
    %769 = vmatpush1.msra.mxu0 0.0
    %770 = vmatprep.subr.mxu0 0.0
    %771 = vmatpush1.msra.mxu0 0.0
    %772 = vmatprep.subr.mxu0 0.0
    %773 = vmatpush1.msra.mxu0 0.0
    %774 = vmatprep.subr.mxu0 0.0
    %775 = vmatpush1.msra.mxu0 0.0
    %776 = vmatprep.subr.mxu0 0.0
    %777 = vmatpush1.msra.mxu0 0.0
    %778 = vmatprep.subr.mxu0 0.0
    %779 = vmatpush1.msra.mxu0 0.0
    %780 = vmatprep.subr.mxu0 0.0
    %781 = vmatpush1.msra.mxu0 0.0
    %782 = vmatprep.subr.mxu0 0.0
    %783 = vmatpush1.msra.mxu0 0.0
    %784 = vmatprep.subr.mxu0 0.0
    %785 = vmatpush1.msra.mxu0 0.0
    %786 = vmatprep.subr.mxu0 0.0
    %787 = vmatpush1.msra.mxu0 0.0
    %788 = vmatprep.subr.mxu0 0.0
    %789 = vmatpush1.msra.mxu0 0.0
    %790 = vmatprep.subr.mxu0 0.0
    %791 = vmatpush1.msra.mxu0 0.0
    %792 = vmatprep.subr.mxu0 0.0
    %793 = vmatpush1.msra.mxu0 0.0
    %794 = vmatprep.subr.mxu0 0.0
    %795 = vmatpush1.msra.mxu0 0.0
    %796 = vmatprep.subr.mxu0 0.0
    %797 = vmatpush1.msra.mxu0 0.0
    %798 = vmatprep.subr.mxu0 0.0
    %799 = vmatpush1.msra.mxu0 0.0
    %800 = vmatprep.subr.mxu0 0.0
    %801 = vmatpush1.msra.mxu0 0.0
    %802 = vmatprep.subr.mxu0 0.0
    %803 = vmatpush1.msra.mxu0 0.0
    %804 = vmatprep.subr.mxu0 0.0
    %805 = vmatpush1.msra.mxu0 0.0
    %806 = vmatprep.subr.mxu0 0.0
    %807 = vmatpush1.msra.mxu0 0.0
    %808 = vmatprep.subr.mxu0 0.0
    %809 = vmatpush1.msra.mxu0 0.0
    %810 = vmatprep.subr.mxu0 0.0
    %811 = vmatpush1.msra.mxu0 0.0
    %812 = vmatprep.subr.mxu0 0.0
    %813 = vmatpush1.msra.mxu0 0.0
    %814 = vmatprep.subr.mxu0 0.0
    %815 = vmatpush1.msra.mxu0 0.0
    %816 = vmatprep.subr.mxu0 0.0
    %817 = vmatpush1.msra.mxu0 0.0
    %818 = vmatprep.subr.mxu0 0.0
    %819 = vmatpush1.msra.mxu0 0.0
    %820 = vmatprep.subr.mxu0 0.0
    %821 = vmatpush1.msra.mxu0 0.0
    %822 = vmatprep.subr.mxu0 0.0
    %823 = vmatpush1.msra.mxu0 0.0
    %824 = vmatprep.subr.mxu0 0.0
    %825 = vmatpush1.msra.mxu0 0.0
    %826 = vmatprep.mubr.f32.mxu0 0.0
    %827 = vmatmul.mubr.f32.gmra.mrb[0].mxu0 %v757
    %v828 = vpop.f32.mrb[0].mxu0
    %v829 = vadd.f32 0.0, %v828
    %v830 = vpop.f32.mrb[0].mxu0
    %831 = vmatprep.mubr.f32.mxu0 0.0
    %832 = vmatmul.mubr.f32.gmra.mrb[0].mxu0 %v760
    %v833 = vpop.f32.mrb[0].mxu0
    %v834 = vadd.f32 0.0, %v833
    %v835 = vpop.f32.mrb[0].mxu0
    %836 = vdwg.mxu0
    %v838 = vsel %vm368, %v554, 0
    %v841 = vsel %vm368, %v559, 0
    %843 = vmatprep.subr.mxu0 0.0
    %844 = vmatpush1.msra.mxu0 %v364
    %845 = vmatprep.subr.mxu0 0.0
    %846 = vmatpush1.msra.mxu0 0.0
    %847 = vmatprep.subr.mxu0 0.0
    %848 = vmatpush1.msra.mxu0 0.0
    %849 = vmatprep.subr.mxu0 0.0
    %850 = vmatpush1.msra.mxu0 0.0
    %851 = vmatprep.subr.mxu0 0.0
    %852 = vmatpush1.msra.mxu0 0.0
    %853 = vmatprep.subr.mxu0 0.0
    %854 = vmatpush1.msra.mxu0 0.0
    %855 = vmatprep.subr.mxu0 0.0
    %856 = vmatpush1.msra.mxu0 0.0
    %857 = vmatprep.subr.mxu0 0.0
    %858 = vmatpush1.msra.mxu0 0.0
    %859 = vmatprep.subr.mxu0 0.0
    %860 = vmatpush1.msra.mxu0 0.0
    %861 = vmatprep.subr.mxu0 0.0
    %862 = vmatpush1.msra.mxu0 0.0
    %863 = vmatprep.subr.mxu0 0.0
    %864 = vmatpush1.msra.mxu0 0.0
    %865 = vmatprep.subr.mxu0 0.0
    %866 = vmatpush1.msra.mxu0 0.0
    %867 = vmatprep.subr.mxu0 0.0
    %868 = vmatpush1.msra.mxu0 0.0
    %869 = vmatprep.subr.mxu0 0.0
    %870 = vmatpush1.msra.mxu0 0.0
    %871 = vmatprep.subr.mxu0 0.0
    %872 = vmatpush1.msra.mxu0 0.0
    %873 = vmatprep.subr.mxu0 0.0
    %874 = vmatpush1.msra.mxu0 0.0
    %875 = vmatprep.subr.mxu0 0.0
    %876 = vmatpush1.msra.mxu0 0.0
    %877 = vmatprep.subr.mxu0 0.0
    %878 = vmatpush1.msra.mxu0 0.0
    %879 = vmatprep.subr.mxu0 0.0
    %880 = vmatpush1.msra.mxu0 0.0
    %881 = vmatprep.subr.mxu0 0.0
    %882 = vmatpush1.msra.mxu0 0.0
    %883 = vmatprep.subr.mxu0 0.0
    %884 = vmatpush1.msra.mxu0 0.0
    %885 = vmatprep.subr.mxu0 0.0
    %886 = vmatpush1.msra.mxu0 0.0
    %887 = vmatprep.subr.mxu0 0.0
    %888 = vmatpush1.msra.mxu0 0.0
    %889 = vmatprep.subr.mxu0 0.0
    %890 = vmatpush1.msra.mxu0 0.0
    %891 = vmatprep.subr.mxu0 0.0
    %892 = vmatpush1.msra.mxu0 0.0
    %893 = vmatprep.subr.mxu0 0.0
    %894 = vmatpush1.msra.mxu0 0.0
    %895 = vmatprep.subr.mxu0 0.0
    %896 = vmatpush1.msra.mxu0 0.0
    %897 = vmatprep.subr.mxu0 0.0
    %898 = vmatpush1.msra.mxu0 0.0
    %899 = vmatprep.subr.mxu0 0.0
    %900 = vmatpush1.msra.mxu0 0.0
    %901 = vmatprep.subr.mxu0 0.0
    %902 = vmatpush1.msra.mxu0 0.0
    %903 = vmatprep.subr.mxu0 0.0
    %904 = vmatpush1.msra.mxu0 0.0
    %905 = vmatprep.subr.mxu0 0.0
    %906 = vmatpush1.msra.mxu0 0.0
    %907 = vmatprep.mubr.f32.mxu0 0.0
    %908 = vmatmul.mubr.f32.gmra.mrb[0].mxu0 %v838
    %v909 = vpop.f32.mrb[0].mxu0
    %v910 = vadd.f32 %v829, %v909
    %v911 = vpop.f32.mrb[0].mxu0
    %912 = vmatprep.mubr.f32.mxu0 0.0
    %913 = vmatmul.mubr.f32.gmra.mrb[0].mxu0 %v841
    %v914 = vpop.f32.mrb[0].mxu0
    %v915 = vadd.f32 %v834, %v914
    %v916 = vpop.f32.mrb[0].mxu0
    %917 = vdwg.mxu0
    %918 = vrot.lane.b32.xlu0 %v221, 112
    %v919 = vpop.permute.xlu0 %918
    %920 = vrot.lane.b32.xlu0 %v226, 112
    %v921 = vpop.permute.xlu0 %920
    %v922 = vsel %vm368, %v919, 0
    %v924 = vsel %vm368, %v921, 0
    %926 = vmatprep.subr.mxu0 0.0
    %927 = vmatpush1.msra.mxu0 %v356
    %928 = vmatprep.subr.mxu0 0.0
    %929 = vmatpush1.msra.mxu0 0.0
    %930 = vmatprep.subr.mxu0 0.0
    %931 = vmatpush1.msra.mxu0 0.0
    %932 = vmatprep.subr.mxu0 0.0
    %933 = vmatpush1.msra.mxu0 0.0
    %934 = vmatprep.subr.mxu0 0.0
    %935 = vmatpush1.msra.mxu0 0.0
    %936 = vmatprep.subr.mxu0 0.0
    %937 = vmatpush1.msra.mxu0 0.0
    %938 = vmatprep.subr.mxu0 0.0
    %939 = vmatpush1.msra.mxu0 0.0
    %940 = vmatprep.subr.mxu0 0.0
    %941 = vmatpush1.msra.mxu0 0.0
    %942 = vmatprep.subr.mxu0 0.0
    %943 = vmatpush1.msra.mxu0 0.0
    %944 = vmatprep.subr.mxu0 0.0
    %945 = vmatpush1.msra.mxu0 0.0
    %946 = vmatprep.subr.mxu0 0.0
    %947 = vmatpush1.msra.mxu0 0.0
    %948 = vmatprep.subr.mxu0 0.0
    %949 = vmatpush1.msra.mxu0 0.0
    %950 = vmatprep.subr.mxu0 0.0
    %951 = vmatpush1.msra.mxu0 0.0
    %952 = vmatprep.subr.mxu0 0.0
    %953 = vmatpush1.msra.mxu0 0.0
    %954 = vmatprep.subr.mxu0 0.0
    %955 = vmatpush1.msra.mxu0 0.0
    %956 = vmatprep.subr.mxu0 0.0
    %957 = vmatpush1.msra.mxu0 0.0
    %958 = vmatprep.subr.mxu0 0.0
    %959 = vmatpush1.msra.mxu0 0.0
    %960 = vmatprep.subr.mxu0 0.0
    %961 = vmatpush1.msra.mxu0 0.0
    %962 = vmatprep.subr.mxu0 0.0
    %963 = vmatpush1.msra.mxu0 0.0
    %964 = vmatprep.subr.mxu0 0.0
    %965 = vmatpush1.msra.mxu0 0.0
    %966 = vmatprep.subr.mxu0 0.0
    %967 = vmatpush1.msra.mxu0 0.0
    %968 = vmatprep.subr.mxu0 0.0
    %969 = vmatpush1.msra.mxu0 0.0
    %970 = vmatprep.subr.mxu0 0.0
    %971 = vmatpush1.msra.mxu0 0.0
    %972 = vmatprep.subr.mxu0 0.0
    %973 = vmatpush1.msra.mxu0 0.0
    %974 = vmatprep.subr.mxu0 0.0
    %975 = vmatpush1.msra.mxu0 0.0
    %976 = vmatprep.subr.mxu0 0.0
    %977 = vmatpush1.msra.mxu0 0.0
    %978 = vmatprep.subr.mxu0 0.0
    %979 = vmatpush1.msra.mxu0 0.0
    %980 = vmatprep.subr.mxu0 0.0
    %981 = vmatpush1.msra.mxu0 0.0
    %982 = vmatprep.subr.mxu0 0.0
    %983 = vmatpush1.msra.mxu0 0.0
    %984 = vmatprep.subr.mxu0 0.0
    %985 = vmatpush1.msra.mxu0 0.0
    %986 = vmatprep.subr.mxu0 0.0
    %987 = vmatpush1.msra.mxu0 0.0
    %988 = vmatprep.subr.mxu0 0.0
    %989 = vmatpush1.msra.mxu0 0.0
    %990 = vmatprep.mubr.f32.mxu0 0.0
    %991 = vmatmul.mubr.f32.gmra.mrb[0].mxu0 %v922
    %v992 = vpop.f32.mrb[0].mxu0
    %v993 = vadd.f32 0.0, %v992
    %v994 = vpop.f32.mrb[0].mxu0
    %995 = vmatprep.mubr.f32.mxu0 0.0
    %996 = vmatmul.mubr.f32.gmra.mrb[0].mxu0 %v924
    %v997 = vpop.f32.mrb[0].mxu0
    %v998 = vadd.f32 0.0, %v997
    %v999 = vpop.f32.mrb[0].mxu0
    %1000 = vdwg.mxu0
    %v1001 = vmul.f32 %v993, 0.35355338
    %v1002 = vmul.f32 %v998, 0.35355338
    %v1003 = vsel %vm452, %v1001, -inf
    %1004 = vmax.xlane.f32.xlu0 %v1003
    %v1005 = vpop.xlane.xlu0 %1004
    %v1006 = vsel %vm452, %v1002, -inf
    %1007 = vmax.xlane.f32.xlu0 %v1006
    %v1008 = vpop.xlane.xlu0 %1007
    %v1009 = vsub.f32 %v1001, %v1005
    %v1010 = vsub.f32 %v1002, %v1008
    %v1011 = vmul.f32 %v1009, 1.442695
    %v1012 = vpow.pop %v1011
    %v1013 = vmul.f32 %v1010, 1.442695
    %v1014 = vpow.pop %v1013
    %v1015 = vsel %vm452, %v1012, 0.0
    %1016 = vadd.xlane.f32.xlu0 %v1015
    %v1017 = vpop.xlane.xlu0 %1016
    %v1018 = vsel %vm452, %v1014, 0.0
    %1019 = vadd.xlane.f32.xlu0 %v1018
    %v1020 = vpop.xlane.xlu0 %1019
    %v1021 = vrcp.pop %v1017
    %v1022 = vrcp.pop %v1020
    %v1023 = vmul.f32 %v1012, %v1021
    %v1024 = vmul.f32 %v1014, %v1022
    %1025 = vrot.lane.b32.xlu0 %v221, 80
    %v1026 = vpop.permute.xlu0 %1025
    %1027 = vrot.lane.b32.xlu0 %v226, 80
    %v1028 = vpop.permute.xlu0 %1027
    %v1032 = vsel %vm452, %v1023, 0
    %v1035 = vsel %vm452, %v1024, 0
    %1037 = vmatprep.subr.mxu0 0.0
    %1038 = vmatpush1.msra.mxu0 %v1026
    %1039 = vmatprep.subr.mxu0 0.0
    %1040 = vmatpush1.msra.mxu0 %v1028
    %1041 = vmatprep.subr.mxu0 0.0
    %1042 = vmatpush1.msra.mxu0 0.0
    %1043 = vmatprep.subr.mxu0 0.0
    %1044 = vmatpush1.msra.mxu0 0.0
    %1045 = vmatprep.subr.mxu0 0.0
    %1046 = vmatpush1.msra.mxu0 0.0
    %1047 = vmatprep.subr.mxu0 0.0
    %1048 = vmatpush1.msra.mxu0 0.0
    %1049 = vmatprep.subr.mxu0 0.0
    %1050 = vmatpush1.msra.mxu0 0.0
    %1051 = vmatprep.subr.mxu0 0.0
    %1052 = vmatpush1.msra.mxu0 0.0
    %1053 = vmatprep.subr.mxu0 0.0
    %1054 = vmatpush1.msra.mxu0 0.0
    %1055 = vmatprep.subr.mxu0 0.0
    %1056 = vmatpush1.msra.mxu0 0.0
    %1057 = vmatprep.subr.mxu0 0.0
    %1058 = vmatpush1.msra.mxu0 0.0
    %1059 = vmatprep.subr.mxu0 0.0
    %1060 = vmatpush1.msra.mxu0 0.0
    %1061 = vmatprep.subr.mxu0 0.0
    %1062 = vmatpush1.msra.mxu0 0.0
    %1063 = vmatprep.subr.mxu0 0.0
    %1064 = vmatpush1.msra.mxu0 0.0
    %1065 = vmatprep.subr.mxu0 0.0
    %1066 = vmatpush1.msra.mxu0 0.0
    %1067 = vmatprep.subr.mxu0 0.0
    %1068 = vmatpush1.msra.mxu0 0.0
    %1069 = vmatprep.subr.mxu0 0.0
    %1070 = vmatpush1.msra.mxu0 0.0
    %1071 = vmatprep.subr.mxu0 0.0
    %1072 = vmatpush1.msra.mxu0 0.0
    %1073 = vmatprep.subr.mxu0 0.0
    %1074 = vmatpush1.msra.mxu0 0.0
    %1075 = vmatprep.subr.mxu0 0.0
    %1076 = vmatpush1.msra.mxu0 0.0
    %1077 = vmatprep.subr.mxu0 0.0
    %1078 = vmatpush1.msra.mxu0 0.0
    %1079 = vmatprep.subr.mxu0 0.0
    %1080 = vmatpush1.msra.mxu0 0.0
    %1081 = vmatprep.subr.mxu0 0.0
    %1082 = vmatpush1.msra.mxu0 0.0
    %1083 = vmatprep.subr.mxu0 0.0
    %1084 = vmatpush1.msra.mxu0 0.0
    %1085 = vmatprep.subr.mxu0 0.0
    %1086 = vmatpush1.msra.mxu0 0.0
    %1087 = vmatprep.subr.mxu0 0.0
    %1088 = vmatpush1.msra.mxu0 0.0
    %1089 = vmatprep.subr.mxu0 0.0
    %1090 = vmatpush1.msra.mxu0 0.0
    %1091 = vmatprep.subr.mxu0 0.0
    %1092 = vmatpush1.msra.mxu0 0.0
    %1093 = vmatprep.subr.mxu0 0.0
    %1094 = vmatpush1.msra.mxu0 0.0
    %1095 = vmatprep.subr.mxu0 0.0
    %1096 = vmatpush1.msra.mxu0 0.0
    %1097 = vmatprep.subr.mxu0 0.0
    %1098 = vmatpush1.msra.mxu0 0.0
    %1099 = vmatprep.subr.mxu0 0.0
    %1100 = vmatpush1.msra.mxu0 0.0
    %1101 = vmatprep.mubr.f32.mxu0 0.0
    %1102 = vmatmul.mubr.f32.gmra.mrb[0].mxu0 %v1032
    %v1103 = vpop.f32.mrb[0].mxu0
    %v1104 = vadd.f32 0.0, %v1103
    %v1105 = vpop.f32.mrb[0].mxu0
    %1106 = vmatprep.mubr.f32.mxu0 0.0
    %1107 = vmatmul.mubr.f32.gmra.mrb[0].mxu0 %v1035
    %v1108 = vpop.f32.mrb[0].mxu0
    %v1109 = vadd.f32 0.0, %v1108
    %v1110 = vpop.f32.mrb[0].mxu0
    %1111 = vdwg.mxu0
    %v1113 = vsel %vm368, %v1104, 0
    %v1116 = vsel %vm368, %v1109, 0
    %1118 = vmatprep.subr.mxu0 0.0
    %1119 = vmatpush1.msra.mxu0 %v366
    %1120 = vmatprep.subr.mxu0 0.0
    %1121 = vmatpush1.msra.mxu0 0.0
    %1122 = vmatprep.subr.mxu0 0.0
    %1123 = vmatpush1.msra.mxu0 0.0
    %1124 = vmatprep.subr.mxu0 0.0
    %1125 = vmatpush1.msra.mxu0 0.0
    %1126 = vmatprep.subr.mxu0 0.0
    %1127 = vmatpush1.msra.mxu0 0.0
    %1128 = vmatprep.subr.mxu0 0.0
    %1129 = vmatpush1.msra.mxu0 0.0
    %1130 = vmatprep.subr.mxu0 0.0
    %1131 = vmatpush1.msra.mxu0 0.0
    %1132 = vmatprep.subr.mxu0 0.0
    %1133 = vmatpush1.msra.mxu0 0.0
    %1134 = vmatprep.subr.mxu0 0.0
    %1135 = vmatpush1.msra.mxu0 0.0
    %1136 = vmatprep.subr.mxu0 0.0
    %1137 = vmatpush1.msra.mxu0 0.0
    %1138 = vmatprep.subr.mxu0 0.0
    %1139 = vmatpush1.msra.mxu0 0.0
    %1140 = vmatprep.subr.mxu0 0.0
    %1141 = vmatpush1.msra.mxu0 0.0
    %1142 = vmatprep.subr.mxu0 0.0
    %1143 = vmatpush1.msra.mxu0 0.0
    %1144 = vmatprep.subr.mxu0 0.0
    %1145 = vmatpush1.msra.mxu0 0.0
    %1146 = vmatprep.subr.mxu0 0.0
    %1147 = vmatpush1.msra.mxu0 0.0
    %1148 = vmatprep.subr.mxu0 0.0
    %1149 = vmatpush1.msra.mxu0 0.0
    %1150 = vmatprep.subr.mxu0 0.0
    %1151 = vmatpush1.msra.mxu0 0.0
    %1152 = vmatprep.subr.mxu0 0.0
    %1153 = vmatpush1.msra.mxu0 0.0
    %1154 = vmatprep.subr.mxu0 0.0
    %1155 = vmatpush1.msra.mxu0 0.0
    %1156 = vmatprep.subr.mxu0 0.0
    %1157 = vmatpush1.msra.mxu0 0.0
    %1158 = vmatprep.subr.mxu0 0.0
    %1159 = vmatpush1.msra.mxu0 0.0
    %1160 = vmatprep.subr.mxu0 0.0
    %1161 = vmatpush1.msra.mxu0 0.0
    %1162 = vmatprep.subr.mxu0 0.0
    %1163 = vmatpush1.msra.mxu0 0.0
    %1164 = vmatprep.subr.mxu0 0.0
    %1165 = vmatpush1.msra.mxu0 0.0
    %1166 = vmatprep.subr.mxu0 0.0
    %1167 = vmatpush1.msra.mxu0 0.0
    %1168 = vmatprep.subr.mxu0 0.0
    %1169 = vmatpush1.msra.mxu0 0.0
    %1170 = vmatprep.subr.mxu0 0.0
    %1171 = vmatpush1.msra.mxu0 0.0
    %1172 = vmatprep.subr.mxu0 0.0
    %1173 = vmatpush1.msra.mxu0 0.0
    %1174 = vmatprep.subr.mxu0 0.0
    %1175 = vmatpush1.msra.mxu0 0.0
    %1176 = vmatprep.subr.mxu0 0.0
    %1177 = vmatpush1.msra.mxu0 0.0
    %1178 = vmatprep.subr.mxu0 0.0
    %1179 = vmatpush1.msra.mxu0 0.0
    %1180 = vmatprep.subr.mxu0 0.0
    %1181 = vmatpush1.msra.mxu0 0.0
    %1182 = vmatprep.mubr.f32.mxu0 0.0
    %1183 = vmatmul.mubr.f32.gmra.mrb[0].mxu0 %v1113
    %v1184 = vpop.f32.mrb[0].mxu0
    %v1185 = vadd.f32 0.0, %v1184
    %v1186 = vpop.f32.mrb[0].mxu0
    %1187 = vmatprep.mubr.f32.mxu0 0.0
    %1188 = vmatmul.mubr.f32.gmra.mrb[0].mxu0 %v1116
    %v1189 = vpop.f32.mrb[0].mxu0
    %v1190 = vadd.f32 0.0, %v1189
    %v1191 = vpop.f32.mrb[0].mxu0
    %1192 = vdwg.mxu0
    %v1193 = vadd.f32 %v910, %v1185
    %v1194 = vadd.f32 %v915, %v1190
    %1195 = vrot.lane.b32.xlu0 %v221, 104
    %v1196 = vpop.permute.xlu0 %1195
    %1197 = vrot.lane.b32.xlu0 %v226, 104
    %v1198 = vpop.permute.xlu0 %1197
    %v1199 = vsel %vm368, %v1196, 0
    %v1201 = vsel %vm368, %v1198, 0
    %1203 = vmatprep.subr.mxu0 0.0
    %1204 = vmatpush1.msra.mxu0 %v361
    %1205 = vmatprep.subr.mxu0 0.0
    %1206 = vmatpush1.msra.mxu0 0.0
    %1207 = vmatprep.subr.mxu0 0.0
    %1208 = vmatpush1.msra.mxu0 0.0
    %1209 = vmatprep.subr.mxu0 0.0
    %1210 = vmatpush1.msra.mxu0 0.0
    %1211 = vmatprep.subr.mxu0 0.0
    %1212 = vmatpush1.msra.mxu0 0.0
    %1213 = vmatprep.subr.mxu0 0.0
    %1214 = vmatpush1.msra.mxu0 0.0
    %1215 = vmatprep.subr.mxu0 0.0
    %1216 = vmatpush1.msra.mxu0 0.0
    %1217 = vmatprep.subr.mxu0 0.0
    %1218 = vmatpush1.msra.mxu0 0.0
    %1219 = vmatprep.subr.mxu0 0.0
    %1220 = vmatpush1.msra.mxu0 0.0
    %1221 = vmatprep.subr.mxu0 0.0
    %1222 = vmatpush1.msra.mxu0 0.0
    %1223 = vmatprep.subr.mxu0 0.0
    %1224 = vmatpush1.msra.mxu0 0.0
    %1225 = vmatprep.subr.mxu0 0.0
    %1226 = vmatpush1.msra.mxu0 0.0
    %1227 = vmatprep.subr.mxu0 0.0
    %1228 = vmatpush1.msra.mxu0 0.0
    %1229 = vmatprep.subr.mxu0 0.0
    %1230 = vmatpush1.msra.mxu0 0.0
    %1231 = vmatprep.subr.mxu0 0.0
    %1232 = vmatpush1.msra.mxu0 0.0
    %1233 = vmatprep.subr.mxu0 0.0
    %1234 = vmatpush1.msra.mxu0 0.0
    %1235 = vmatprep.subr.mxu0 0.0
    %1236 = vmatpush1.msra.mxu0 0.0
    %1237 = vmatprep.subr.mxu0 0.0
    %1238 = vmatpush1.msra.mxu0 0.0
    %1239 = vmatprep.subr.mxu0 0.0
    %1240 = vmatpush1.msra.mxu0 0.0
    %1241 = vmatprep.subr.mxu0 0.0
    %1242 = vmatpush1.msra.mxu0 0.0
    %1243 = vmatprep.subr.mxu0 0.0
    %1244 = vmatpush1.msra.mxu0 0.0
    %1245 = vmatprep.subr.mxu0 0.0
    %1246 = vmatpush1.msra.mxu0 0.0
    %1247 = vmatprep.subr.mxu0 0.0
    %1248 = vmatpush1.msra.mxu0 0.0
    %1249 = vmatprep.subr.mxu0 0.0
    %1250 = vmatpush1.msra.mxu0 0.0
    %1251 = vmatprep.subr.mxu0 0.0
    %1252 = vmatpush1.msra.mxu0 0.0
    %1253 = vmatprep.subr.mxu0 0.0
    %1254 = vmatpush1.msra.mxu0 0.0
    %1255 = vmatprep.subr.mxu0 0.0
    %1256 = vmatpush1.msra.mxu0 0.0
    %1257 = vmatprep.subr.mxu0 0.0
    %1258 = vmatpush1.msra.mxu0 0.0
    %1259 = vmatprep.subr.mxu0 0.0
    %1260 = vmatpush1.msra.mxu0 0.0
    %1261 = vmatprep.subr.mxu0 0.0
    %1262 = vmatpush1.msra.mxu0 0.0
    %1263 = vmatprep.subr.mxu0 0.0
    %1264 = vmatpush1.msra.mxu0 0.0
    %1265 = vmatprep.subr.mxu0 0.0
    %1266 = vmatpush1.msra.mxu0 0.0
    %1267 = vmatprep.mubr.f32.mxu0 0.0
    %1268 = vmatmul.mubr.f32.gmra.mrb[0].mxu0 %v1199
    %v1269 = vpop.f32.mrb[0].mxu0
    %v1270 = vadd.f32 0.0, %v1269
    %v1271 = vpop.f32.mrb[0].mxu0
    %1272 = vmatprep.mubr.f32.mxu0 0.0
    %1273 = vmatmul.mubr.f32.gmra.mrb[0].mxu0 %v1201
    %v1274 = vpop.f32.mrb[0].mxu0
    %v1275 = vadd.f32 0.0, %v1274
    %v1276 = vpop.f32.mrb[0].mxu0
    %1277 = vdwg.mxu0
    %v1278 = vmul.f32 %v1270, 0.35355338
    %v1279 = vmul.f32 %v1275, 0.35355338
    %v1280 = vsel %vm452, %v1278, -inf
    %1281 = vmax.xlane.f32.xlu0 %v1280
    %v1282 = vpop.xlane.xlu0 %1281
    %v1283 = vsel %vm452, %v1279, -inf
    %1284 = vmax.xlane.f32.xlu0 %v1283
    %v1285 = vpop.xlane.xlu0 %1284
    %v1286 = vsub.f32 %v1278, %v1282
    %v1287 = vsub.f32 %v1279, %v1285
    %v1288 = vmul.f32 %v1286, 1.442695
    %v1289 = vpow.pop %v1288
    %v1290 = vmul.f32 %v1287, 1.442695
    %v1291 = vpow.pop %v1290
    %v1292 = vsel %vm452, %v1289, 0.0
    %1293 = vadd.xlane.f32.xlu0 %v1292
    %v1294 = vpop.xlane.xlu0 %1293
    %v1295 = vsel %vm452, %v1291, 0.0
    %1296 = vadd.xlane.f32.xlu0 %v1295
    %v1297 = vpop.xlane.xlu0 %1296
    %v1298 = vrcp.pop %v1294
    %v1299 = vrcp.pop %v1297
    %v1300 = vmul.f32 %v1289, %v1298
    %v1301 = vmul.f32 %v1291, %v1299
    %1302 = vrot.lane.b32.xlu0 %v221, 72
    %v1303 = vpop.permute.xlu0 %1302
    %1304 = vrot.lane.b32.xlu0 %v226, 72
    %v1305 = vpop.permute.xlu0 %1304
    %v1309 = vsel %vm452, %v1300, 0
    %v1312 = vsel %vm452, %v1301, 0
    %1314 = vmatprep.subr.mxu0 0.0
    %1315 = vmatpush1.msra.mxu0 %v1303
    %1316 = vmatprep.subr.mxu0 0.0
    %1317 = vmatpush1.msra.mxu0 %v1305
    %1318 = vmatprep.subr.mxu0 0.0
    %1319 = vmatpush1.msra.mxu0 0.0
    %1320 = vmatprep.subr.mxu0 0.0
    %1321 = vmatpush1.msra.mxu0 0.0
    %1322 = vmatprep.subr.mxu0 0.0
    %1323 = vmatpush1.msra.mxu0 0.0
    %1324 = vmatprep.subr.mxu0 0.0
    %1325 = vmatpush1.msra.mxu0 0.0
    %1326 = vmatprep.subr.mxu0 0.0
    %1327 = vmatpush1.msra.mxu0 0.0
    %1328 = vmatprep.subr.mxu0 0.0
    %1329 = vmatpush1.msra.mxu0 0.0
    %1330 = vmatprep.subr.mxu0 0.0
    %1331 = vmatpush1.msra.mxu0 0.0
    %1332 = vmatprep.subr.mxu0 0.0
    %1333 = vmatpush1.msra.mxu0 0.0
    %1334 = vmatprep.subr.mxu0 0.0
    %1335 = vmatpush1.msra.mxu0 0.0
    %1336 = vmatprep.subr.mxu0 0.0
    %1337 = vmatpush1.msra.mxu0 0.0
    %1338 = vmatprep.subr.mxu0 0.0
    %1339 = vmatpush1.msra.mxu0 0.0
    %1340 = vmatprep.subr.mxu0 0.0
    %1341 = vmatpush1.msra.mxu0 0.0
    %1342 = vmatprep.subr.mxu0 0.0
    %1343 = vmatpush1.msra.mxu0 0.0
    %1344 = vmatprep.subr.mxu0 0.0
    %1345 = vmatpush1.msra.mxu0 0.0
    %1346 = vmatprep.subr.mxu0 0.0
    %1347 = vmatpush1.msra.mxu0 0.0
    %1348 = vmatprep.subr.mxu0 0.0
    %1349 = vmatpush1.msra.mxu0 0.0
    %1350 = vmatprep.subr.mxu0 0.0
    %1351 = vmatpush1.msra.mxu0 0.0
    %1352 = vmatprep.subr.mxu0 0.0
    %1353 = vmatpush1.msra.mxu0 0.0
    %1354 = vmatprep.subr.mxu0 0.0
    %1355 = vmatpush1.msra.mxu0 0.0
    %1356 = vmatprep.subr.mxu0 0.0
    %1357 = vmatpush1.msra.mxu0 0.0
    %1358 = vmatprep.subr.mxu0 0.0
    %1359 = vmatpush1.msra.mxu0 0.0
    %1360 = vmatprep.subr.mxu0 0.0
    %1361 = vmatpush1.msra.mxu0 0.0
    %1362 = vmatprep.subr.mxu0 0.0
    %1363 = vmatpush1.msra.mxu0 0.0
    %1364 = vmatprep.subr.mxu0 0.0
    %1365 = vmatpush1.msra.mxu0 0.0
    %1366 = vmatprep.subr.mxu0 0.0
    %1367 = vmatpush1.msra.mxu0 0.0
    %1368 = vmatprep.subr.mxu0 0.0
    %1369 = vmatpush1.msra.mxu0 0.0
    %1370 = vmatprep.subr.mxu0 0.0
    %1371 = vmatpush1.msra.mxu0 0.0
    %1372 = vmatprep.subr.mxu0 0.0
    %1373 = vmatpush1.msra.mxu0 0.0
    %1374 = vmatprep.subr.mxu0 0.0
    %1375 = vmatpush1.msra.mxu0 0.0
    %1376 = vmatprep.subr.mxu0 0.0
    %1377 = vmatpush1.msra.mxu0 0.0
    %1378 = vmatprep.mubr.f32.mxu0 0.0
    %1379 = vmatmul.mubr.f32.gmra.mrb[0].mxu0 %v1309
    %v1380 = vpop.f32.mrb[0].mxu0
    %v1381 = vadd.f32 0.0, %v1380
    %v1382 = vpop.f32.mrb[0].mxu0
    %1383 = vmatprep.mubr.f32.mxu0 0.0
    %1384 = vmatmul.mubr.f32.gmra.mrb[0].mxu0 %v1312
    %v1385 = vpop.f32.mrb[0].mxu0
    %v1386 = vadd.f32 0.0, %v1385
    %v1387 = vpop.f32.mrb[0].mxu0
    %1388 = vdwg.mxu0
    %v1390 = vsel %vm368, %v1381, 0
    %v1393 = vsel %vm368, %v1386, 0
    %1395 = vmatprep.subr.mxu0 0.0
    %1396 = vmatpush1.msra.mxu0 %v367
    %1397 = vmatprep.subr.mxu0 0.0
    %1398 = vmatpush1.msra.mxu0 0.0
    %1399 = vmatprep.subr.mxu0 0.0
    %1400 = vmatpush1.msra.mxu0 0.0
    %1401 = vmatprep.subr.mxu0 0.0
    %1402 = vmatpush1.msra.mxu0 0.0
    %1403 = vmatprep.subr.mxu0 0.0
    %1404 = vmatpush1.msra.mxu0 0.0
    %1405 = vmatprep.subr.mxu0 0.0
    %1406 = vmatpush1.msra.mxu0 0.0
    %1407 = vmatprep.subr.mxu0 0.0
    %1408 = vmatpush1.msra.mxu0 0.0
    %1409 = vmatprep.subr.mxu0 0.0
    %1410 = vmatpush1.msra.mxu0 0.0
    %1411 = vmatprep.subr.mxu0 0.0
    %1412 = vmatpush1.msra.mxu0 0.0
    %1413 = vmatprep.subr.mxu0 0.0
    %1414 = vmatpush1.msra.mxu0 0.0
    %1415 = vmatprep.subr.mxu0 0.0
    %1416 = vmatpush1.msra.mxu0 0.0
    %1417 = vmatprep.subr.mxu0 0.0
    %1418 = vmatpush1.msra.mxu0 0.0
    %1419 = vmatprep.subr.mxu0 0.0
    %1420 = vmatpush1.msra.mxu0 0.0
    %1421 = vmatprep.subr.mxu0 0.0
    %1422 = vmatpush1.msra.mxu0 0.0
    %1423 = vmatprep.subr.mxu0 0.0
    %1424 = vmatpush1.msra.mxu0 0.0
    %1425 = vmatprep.subr.mxu0 0.0
    %1426 = vmatpush1.msra.mxu0 0.0
    %1427 = vmatprep.subr.mxu0 0.0
    %1428 = vmatpush1.msra.mxu0 0.0
    %1429 = vmatprep.subr.mxu0 0.0
    %1430 = vmatpush1.msra.mxu0 0.0
    %1431 = vmatprep.subr.mxu0 0.0
    %1432 = vmatpush1.msra.mxu0 0.0
    %1433 = vmatprep.subr.mxu0 0.0
    %1434 = vmatpush1.msra.mxu0 0.0
    %1435 = vmatprep.subr.mxu0 0.0
    %1436 = vmatpush1.msra.mxu0 0.0
    %1437 = vmatprep.subr.mxu0 0.0
    %1438 = vmatpush1.msra.mxu0 0.0
    %1439 = vmatprep.subr.mxu0 0.0
    %1440 = vmatpush1.msra.mxu0 0.0
    %1441 = vmatprep.subr.mxu0 0.0
    %1442 = vmatpush1.msra.mxu0 0.0
    %1443 = vmatprep.subr.mxu0 0.0
    %1444 = vmatpush1.msra.mxu0 0.0
    %1445 = vmatprep.subr.mxu0 0.0
    %1446 = vmatpush1.msra.mxu0 0.0
    %1447 = vmatprep.subr.mxu0 0.0
    %1448 = vmatpush1.msra.mxu0 0.0
    %1449 = vmatprep.subr.mxu0 0.0
    %1450 = vmatpush1.msra.mxu0 0.0
    %1451 = vmatprep.subr.mxu0 0.0
    %1452 = vmatpush1.msra.mxu0 0.0
    %1453 = vmatprep.subr.mxu0 0.0
    %1454 = vmatpush1.msra.mxu0 0.0
    %1455 = vmatprep.subr.mxu0 0.0
    %1456 = vmatpush1.msra.mxu0 0.0
    %1457 = vmatprep.subr.mxu0 0.0
    %1458 = vmatpush1.msra.mxu0 0.0
    %1459 = vmatprep.mubr.f32.mxu0 0.0
    %1460 = vmatmul.mubr.f32.gmra.mrb[0].mxu0 %v1390
    %v1461 = vpop.f32.mrb[0].mxu0
    %v1462 = vadd.f32 0.0, %v1461
    %v1463 = vpop.f32.mrb[0].mxu0
    %1464 = vmatprep.mubr.f32.mxu0 0.0
    %1465 = vmatmul.mubr.f32.gmra.mrb[0].mxu0 %v1393
    %v1466 = vpop.f32.mrb[0].mxu0
    %v1467 = vadd.f32 0.0, %v1466
    %v1468 = vpop.f32.mrb[0].mxu0
    %1469 = vdwg.mxu0
    %v1470 = vadd.f32 %v1193, %v1462
    %v1471 = vadd.f32 %v1194, %v1467
    %1473 = vrot.lane.b32.xlu0 %v346, 112
    %v1474 = vpop.permute.xlu0 %1473
    %v1477 = vsel %vm368, %v231, 0
    %v1480 = vsel %vm368, %v236, 0
    %1482 = vmatprep.subr.mxu0 0.0
    %1483 = vmatpush1.msra.mxu0 %v1474
    %1484 = vmatprep.subr.mxu0 0.0
    %1485 = vmatpush1.msra.mxu0 0.0
    %1486 = vmatprep.subr.mxu0 0.0
    %1487 = vmatpush1.msra.mxu0 0.0
    %1488 = vmatprep.subr.mxu0 0.0
    %1489 = vmatpush1.msra.mxu0 0.0
    %1490 = vmatprep.subr.mxu0 0.0
    %1491 = vmatpush1.msra.mxu0 0.0
    %1492 = vmatprep.subr.mxu0 0.0
    %1493 = vmatpush1.msra.mxu0 0.0
    %1494 = vmatprep.subr.mxu0 0.0
    %1495 = vmatpush1.msra.mxu0 0.0
    %1496 = vmatprep.subr.mxu0 0.0
    %1497 = vmatpush1.msra.mxu0 0.0
    %1498 = vmatprep.subr.mxu0 0.0
    %1499 = vmatpush1.msra.mxu0 0.0
    %1500 = vmatprep.subr.mxu0 0.0
    %1501 = vmatpush1.msra.mxu0 0.0
    %1502 = vmatprep.subr.mxu0 0.0
    %1503 = vmatpush1.msra.mxu0 0.0
    %1504 = vmatprep.subr.mxu0 0.0
    %1505 = vmatpush1.msra.mxu0 0.0
    %1506 = vmatprep.subr.mxu0 0.0
    %1507 = vmatpush1.msra.mxu0 0.0
    %1508 = vmatprep.subr.mxu0 0.0
    %1509 = vmatpush1.msra.mxu0 0.0
    %1510 = vmatprep.subr.mxu0 0.0
    %1511 = vmatpush1.msra.mxu0 0.0
    %1512 = vmatprep.subr.mxu0 0.0
    %1513 = vmatpush1.msra.mxu0 0.0
    %1514 = vmatprep.subr.mxu0 0.0
    %1515 = vmatpush1.msra.mxu0 0.0
    %1516 = vmatprep.subr.mxu0 0.0
    %1517 = vmatpush1.msra.mxu0 0.0
    %1518 = vmatprep.subr.mxu0 0.0
    %1519 = vmatpush1.msra.mxu0 0.0
    %1520 = vmatprep.subr.mxu0 0.0
    %1521 = vmatpush1.msra.mxu0 0.0
    %1522 = vmatprep.subr.mxu0 0.0
    %1523 = vmatpush1.msra.mxu0 0.0
    %1524 = vmatprep.subr.mxu0 0.0
    %1525 = vmatpush1.msra.mxu0 0.0
    %1526 = vmatprep.subr.mxu0 0.0
    %1527 = vmatpush1.msra.mxu0 0.0
    %1528 = vmatprep.subr.mxu0 0.0
    %1529 = vmatpush1.msra.mxu0 0.0
    %1530 = vmatprep.subr.mxu0 0.0
    %1531 = vmatpush1.msra.mxu0 0.0
    %1532 = vmatprep.subr.mxu0 0.0
    %1533 = vmatpush1.msra.mxu0 0.0
    %1534 = vmatprep.subr.mxu0 0.0
    %1535 = vmatpush1.msra.mxu0 0.0
    %1536 = vmatprep.subr.mxu0 0.0
    %1537 = vmatpush1.msra.mxu0 0.0
    %1538 = vmatprep.subr.mxu0 0.0
    %1539 = vmatpush1.msra.mxu0 0.0
    %1540 = vmatprep.subr.mxu0 0.0
    %1541 = vmatpush1.msra.mxu0 0.0
    %1542 = vmatprep.subr.mxu0 0.0
    %1543 = vmatpush1.msra.mxu0 0.0
    %1544 = vmatprep.subr.mxu0 0.0
    %1545 = vmatpush1.msra.mxu0 0.0
    %1546 = vmatprep.mubr.f32.mxu0 0.0
    %1547 = vmatmul.mubr.f32.gmra.mrb[0].mxu0 %v1477
    %v1548 = vpop.f32.mrb[0].mxu0
    %v1549 = vadd.f32 0.0, %v1548
    %v1550 = vpop.f32.mrb[0].mxu0
    %1551 = vmatprep.mubr.f32.mxu0 0.0
    %1552 = vmatmul.mubr.f32.gmra.mrb[0].mxu0 %v1480
    %v1553 = vpop.f32.mrb[0].mxu0
    %v1554 = vadd.f32 0.0, %v1553
    %v1555 = vpop.f32.mrb[0].mxu0
    %1556 = vdwg.mxu0
    %v1557 = vmul.f32 %v1549, 0.35355338
    %v1558 = vmul.f32 %v1554, 0.35355338
    %v1559 = vsel %vm452, %v1557, -inf
    %1560 = vmax.xlane.f32.xlu0 %v1559
    %v1561 = vpop.xlane.xlu0 %1560
    %v1562 = vsel %vm452, %v1558, -inf
    %1563 = vmax.xlane.f32.xlu0 %v1562
    %v1564 = vpop.xlane.xlu0 %1563
    %v1565 = vsub.f32 %v1557, %v1561
    %v1566 = vsub.f32 %v1558, %v1564
    %v1567 = vmul.f32 %v1565, 1.442695
    %v1568 = vpow.pop %v1567
    %v1569 = vmul.f32 %v1566, 1.442695
    %v1570 = vpow.pop %v1569
    %v1571 = vsel %vm452, %v1568, 0.0
    %1572 = vadd.xlane.f32.xlu0 %v1571
    %v1573 = vpop.xlane.xlu0 %1572
    %v1574 = vsel %vm452, %v1570, 0.0
    %1575 = vadd.xlane.f32.xlu0 %v1574
    %v1576 = vpop.xlane.xlu0 %1575
    %v1577 = vrcp.pop %v1573
    %v1578 = vrcp.pop %v1576
    %v1579 = vmul.f32 %v1568, %v1577
    %v1580 = vmul.f32 %v1570, %v1578
    %1581 = vrot.lane.b32.xlu0 %v231, 96
    %v1582 = vpop.permute.xlu0 %1581
    %1583 = vrot.lane.b32.xlu0 %v236, 96
    %v1584 = vpop.permute.xlu0 %1583
    %v1588 = vsel %vm452, %v1579, 0
    %v1591 = vsel %vm452, %v1580, 0
    %1593 = vmatprep.subr.mxu0 0.0
    %1594 = vmatpush1.msra.mxu0 %v1582
    %1595 = vmatprep.subr.mxu0 0.0
    %1596 = vmatpush1.msra.mxu0 %v1584
    %1597 = vmatprep.subr.mxu0 0.0
    %1598 = vmatpush1.msra.mxu0 0.0
    %1599 = vmatprep.subr.mxu0 0.0
    %1600 = vmatpush1.msra.mxu0 0.0
    %1601 = vmatprep.subr.mxu0 0.0
    %1602 = vmatpush1.msra.mxu0 0.0
    %1603 = vmatprep.subr.mxu0 0.0
    %1604 = vmatpush1.msra.mxu0 0.0
    %1605 = vmatprep.subr.mxu0 0.0
    %1606 = vmatpush1.msra.mxu0 0.0
    %1607 = vmatprep.subr.mxu0 0.0
    %1608 = vmatpush1.msra.mxu0 0.0
    %1609 = vmatprep.subr.mxu0 0.0
    %1610 = vmatpush1.msra.mxu0 0.0
    %1611 = vmatprep.subr.mxu0 0.0
    %1612 = vmatpush1.msra.mxu0 0.0
    %1613 = vmatprep.subr.mxu0 0.0
    %1614 = vmatpush1.msra.mxu0 0.0
    %1615 = vmatprep.subr.mxu0 0.0
    %1616 = vmatpush1.msra.mxu0 0.0
    %1617 = vmatprep.subr.mxu0 0.0
    %1618 = vmatpush1.msra.mxu0 0.0
    %1619 = vmatprep.subr.mxu0 0.0
    %1620 = vmatpush1.msra.mxu0 0.0
    %1621 = vmatprep.subr.mxu0 0.0
    %1622 = vmatpush1.msra.mxu0 0.0
    %1623 = vmatprep.subr.mxu0 0.0
    %1624 = vmatpush1.msra.mxu0 0.0
    %1625 = vmatprep.subr.mxu0 0.0
    %1626 = vmatpush1.msra.mxu0 0.0
    %1627 = vmatprep.subr.mxu0 0.0
    %1628 = vmatpush1.msra.mxu0 0.0
    %1629 = vmatprep.subr.mxu0 0.0
    %1630 = vmatpush1.msra.mxu0 0.0
    %1631 = vmatprep.subr.mxu0 0.0
    %1632 = vmatpush1.msra.mxu0 0.0
    %1633 = vmatprep.subr.mxu0 0.0
    %1634 = vmatpush1.msra.mxu0 0.0
    %1635 = vmatprep.subr.mxu0 0.0
    %1636 = vmatpush1.msra.mxu0 0.0
    %1637 = vmatprep.subr.mxu0 0.0
    %1638 = vmatpush1.msra.mxu0 0.0
    %1639 = vmatprep.subr.mxu0 0.0
    %1640 = vmatpush1.msra.mxu0 0.0
    %1641 = vmatprep.subr.mxu0 0.0
    %1642 = vmatpush1.msra.mxu0 0.0
    %1643 = vmatprep.subr.mxu0 0.0
    %1644 = vmatpush1.msra.mxu0 0.0
    %1645 = vmatprep.subr.mxu0 0.0
    %1646 = vmatpush1.msra.mxu0 0.0
    %1647 = vmatprep.subr.mxu0 0.0
    %1648 = vmatpush1.msra.mxu0 0.0
    %1649 = vmatprep.subr.mxu0 0.0
    %1650 = vmatpush1.msra.mxu0 0.0
    %1651 = vmatprep.subr.mxu0 0.0
    %1652 = vmatpush1.msra.mxu0 0.0
    %1653 = vmatprep.subr.mxu0 0.0
    %1654 = vmatpush1.msra.mxu0 0.0
    %1655 = vmatprep.subr.mxu0 0.0
    %1656 = vmatpush1.msra.mxu0 0.0
    %1657 = vmatprep.mubr.f32.mxu0 0.0
    %1658 = vmatmul.mubr.f32.gmra.mrb[0].mxu0 %v1588
    %v1659 = vpop.f32.mrb[0].mxu0
    %v1660 = vadd.f32 0.0, %v1659
    %v1661 = vpop.f32.mrb[0].mxu0
    %1662 = vmatprep.mubr.f32.mxu0 0.0
    %1663 = vmatmul.mubr.f32.gmra.mrb[0].mxu0 %v1591
    %v1664 = vpop.f32.mrb[0].mxu0
    %v1665 = vadd.f32 0.0, %v1664
    %v1666 = vpop.f32.mrb[0].mxu0
    %1667 = vdwg.mxu0
    %1668 = vrot.lane.b32.xlu0 %v231, 120
    %v1669 = vpop.permute.xlu0 %1668
    %1670 = vrot.lane.b32.xlu0 %v236, 120
    %v1671 = vpop.permute.xlu0 %1670
    %1673 = vrot.lane.b32.xlu0 %v351, 112
    %v1674 = vpop.permute.xlu0 %1673
    %v1676 = vsel %vm368, %v1669, 0
    %v1678 = vsel %vm368, %v1671, 0
    %1680 = vmatprep.subr.mxu0 0.0
    %1681 = vmatpush1.msra.mxu0 %v1674
    %1682 = vmatprep.subr.mxu0 0.0
    %1683 = vmatpush1.msra.mxu0 0.0
    %1684 = vmatprep.subr.mxu0 0.0
    %1685 = vmatpush1.msra.mxu0 0.0
    %1686 = vmatprep.subr.mxu0 0.0
    %1687 = vmatpush1.msra.mxu0 0.0
    %1688 = vmatprep.subr.mxu0 0.0
    %1689 = vmatpush1.msra.mxu0 0.0
    %1690 = vmatprep.subr.mxu0 0.0
    %1691 = vmatpush1.msra.mxu0 0.0
    %1692 = vmatprep.subr.mxu0 0.0
    %1693 = vmatpush1.msra.mxu0 0.0
    %1694 = vmatprep.subr.mxu0 0.0
    %1695 = vmatpush1.msra.mxu0 0.0
    %1696 = vmatprep.subr.mxu0 0.0
    %1697 = vmatpush1.msra.mxu0 0.0
    %1698 = vmatprep.subr.mxu0 0.0
    %1699 = vmatpush1.msra.mxu0 0.0
    %1700 = vmatprep.subr.mxu0 0.0
    %1701 = vmatpush1.msra.mxu0 0.0
    %1702 = vmatprep.subr.mxu0 0.0
    %1703 = vmatpush1.msra.mxu0 0.0
    %1704 = vmatprep.subr.mxu0 0.0
    %1705 = vmatpush1.msra.mxu0 0.0
    %1706 = vmatprep.subr.mxu0 0.0
    %1707 = vmatpush1.msra.mxu0 0.0
    %1708 = vmatprep.subr.mxu0 0.0
    %1709 = vmatpush1.msra.mxu0 0.0
    %1710 = vmatprep.subr.mxu0 0.0
    %1711 = vmatpush1.msra.mxu0 0.0
    %1712 = vmatprep.subr.mxu0 0.0
    %1713 = vmatpush1.msra.mxu0 0.0
    %1714 = vmatprep.subr.mxu0 0.0
    %1715 = vmatpush1.msra.mxu0 0.0
    %1716 = vmatprep.subr.mxu0 0.0
    %1717 = vmatpush1.msra.mxu0 0.0
    %1718 = vmatprep.subr.mxu0 0.0
    %1719 = vmatpush1.msra.mxu0 0.0
    %1720 = vmatprep.subr.mxu0 0.0
    %1721 = vmatpush1.msra.mxu0 0.0
    %1722 = vmatprep.subr.mxu0 0.0
    %1723 = vmatpush1.msra.mxu0 0.0
    %1724 = vmatprep.subr.mxu0 0.0
    %1725 = vmatpush1.msra.mxu0 0.0
    %1726 = vmatprep.subr.mxu0 0.0
    %1727 = vmatpush1.msra.mxu0 0.0
    %1728 = vmatprep.subr.mxu0 0.0
    %1729 = vmatpush1.msra.mxu0 0.0
    %1730 = vmatprep.subr.mxu0 0.0
    %1731 = vmatpush1.msra.mxu0 0.0
    %1732 = vmatprep.subr.mxu0 0.0
    %1733 = vmatpush1.msra.mxu0 0.0
    %1734 = vmatprep.subr.mxu0 0.0
    %1735 = vmatpush1.msra.mxu0 0.0
    %1736 = vmatprep.subr.mxu0 0.0
    %1737 = vmatpush1.msra.mxu0 0.0
    %1738 = vmatprep.subr.mxu0 0.0
    %1739 = vmatpush1.msra.mxu0 0.0
    %1740 = vmatprep.subr.mxu0 0.0
    %1741 = vmatpush1.msra.mxu0 0.0
    %1742 = vmatprep.subr.mxu0 0.0
    %1743 = vmatpush1.msra.mxu0 0.0
    %1744 = vmatprep.mubr.f32.mxu0 0.0
    %1745 = vmatmul.mubr.f32.gmra.mrb[0].mxu0 %v1676
    %v1746 = vpop.f32.mrb[0].mxu0
    %v1747 = vadd.f32 0.0, %v1746
    %v1748 = vpop.f32.mrb[0].mxu0
    %1749 = vmatprep.mubr.f32.mxu0 0.0
    %1750 = vmatmul.mubr.f32.gmra.mrb[0].mxu0 %v1678
    %v1751 = vpop.f32.mrb[0].mxu0
    %v1752 = vadd.f32 0.0, %v1751
    %v1753 = vpop.f32.mrb[0].mxu0
    %1754 = vdwg.mxu0
    %v1755 = vmul.f32 %v1747, 0.35355338
    %v1756 = vmul.f32 %v1752, 0.35355338
    %v1757 = vsel %vm452, %v1755, -inf
    %1758 = vmax.xlane.f32.xlu0 %v1757
    %v1759 = vpop.xlane.xlu0 %1758
    %v1760 = vsel %vm452, %v1756, -inf
    %1761 = vmax.xlane.f32.xlu0 %v1760
    %v1762 = vpop.xlane.xlu0 %1761
    %v1763 = vsub.f32 %v1755, %v1759
    %v1764 = vsub.f32 %v1756, %v1762
    %v1765 = vmul.f32 %v1763, 1.442695
    %v1766 = vpow.pop %v1765
    %v1767 = vmul.f32 %v1764, 1.442695
    %v1768 = vpow.pop %v1767
    %v1769 = vsel %vm452, %v1766, 0.0
    %1770 = vadd.xlane.f32.xlu0 %v1769
    %v1771 = vpop.xlane.xlu0 %1770
    %v1772 = vsel %vm452, %v1768, 0.0
    %1773 = vadd.xlane.f32.xlu0 %v1772
    %v1774 = vpop.xlane.xlu0 %1773
    %v1775 = vrcp.pop %v1771
    %v1776 = vrcp.pop %v1774
    %v1777 = vmul.f32 %v1766, %v1775
    %v1778 = vmul.f32 %v1768, %v1776
    %1779 = vrot.lane.b32.xlu0 %v231, 88
    %v1780 = vpop.permute.xlu0 %1779
    %1781 = vrot.lane.b32.xlu0 %v236, 88
    %v1782 = vpop.permute.xlu0 %1781
    %v1786 = vsel %vm452, %v1777, 0
    %v1789 = vsel %vm452, %v1778, 0
    %1791 = vmatprep.subr.mxu0 0.0
    %1792 = vmatpush1.msra.mxu0 %v1780
    %1793 = vmatprep.subr.mxu0 0.0
    %1794 = vmatpush1.msra.mxu0 %v1782
    %1795 = vmatprep.subr.mxu0 0.0
    %1796 = vmatpush1.msra.mxu0 0.0
    %1797 = vmatprep.subr.mxu0 0.0
    %1798 = vmatpush1.msra.mxu0 0.0
    %1799 = vmatprep.subr.mxu0 0.0
    %1800 = vmatpush1.msra.mxu0 0.0
    %1801 = vmatprep.subr.mxu0 0.0
    %1802 = vmatpush1.msra.mxu0 0.0
    %1803 = vmatprep.subr.mxu0 0.0
    %1804 = vmatpush1.msra.mxu0 0.0
    %1805 = vmatprep.subr.mxu0 0.0
    %1806 = vmatpush1.msra.mxu0 0.0
    %1807 = vmatprep.subr.mxu0 0.0
    %1808 = vmatpush1.msra.mxu0 0.0
    %1809 = vmatprep.subr.mxu0 0.0
    %1810 = vmatpush1.msra.mxu0 0.0
    %1811 = vmatprep.subr.mxu0 0.0
    %1812 = vmatpush1.msra.mxu0 0.0
    %1813 = vmatprep.subr.mxu0 0.0
    %1814 = vmatpush1.msra.mxu0 0.0
    %1815 = vmatprep.subr.mxu0 0.0
    %1816 = vmatpush1.msra.mxu0 0.0
    %1817 = vmatprep.subr.mxu0 0.0
    %1818 = vmatpush1.msra.mxu0 0.0
    %1819 = vmatprep.subr.mxu0 0.0
    %1820 = vmatpush1.msra.mxu0 0.0
    %1821 = vmatprep.subr.mxu0 0.0
    %1822 = vmatpush1.msra.mxu0 0.0
    %1823 = vmatprep.subr.mxu0 0.0
    %1824 = vmatpush1.msra.mxu0 0.0
    %1825 = vmatprep.subr.mxu0 0.0
    %1826 = vmatpush1.msra.mxu0 0.0
    %1827 = vmatprep.subr.mxu0 0.0
    %1828 = vmatpush1.msra.mxu0 0.0
    %1829 = vmatprep.subr.mxu0 0.0
    %1830 = vmatpush1.msra.mxu0 0.0
    %1831 = vmatprep.subr.mxu0 0.0
    %1832 = vmatpush1.msra.mxu0 0.0
    %1833 = vmatprep.subr.mxu0 0.0
    %1834 = vmatpush1.msra.mxu0 0.0
    %1835 = vmatprep.subr.mxu0 0.0
    %1836 = vmatpush1.msra.mxu0 0.0
    %1837 = vmatprep.subr.mxu0 0.0
    %1838 = vmatpush1.msra.mxu0 0.0
    %1839 = vmatprep.subr.mxu0 0.0
    %1840 = vmatpush1.msra.mxu0 0.0
    %1841 = vmatprep.subr.mxu0 0.0
    %1842 = vmatpush1.msra.mxu0 0.0
    %1843 = vmatprep.subr.mxu0 0.0
    %1844 = vmatpush1.msra.mxu0 0.0
    %1845 = vmatprep.subr.mxu0 0.0
    %1846 = vmatpush1.msra.mxu0 0.0
    %1847 = vmatprep.subr.mxu0 0.0
    %1848 = vmatpush1.msra.mxu0 0.0
    %1849 = vmatprep.subr.mxu0 0.0
    %1850 = vmatpush1.msra.mxu0 0.0
    %1851 = vmatprep.subr.mxu0 0.0
    %1852 = vmatpush1.msra.mxu0 0.0
    %1853 = vmatprep.subr.mxu0 0.0
    %1854 = vmatpush1.msra.mxu0 0.0
    %1855 = vmatprep.mubr.f32.mxu0 0.0
    %1856 = vmatmul.mubr.f32.gmra.mrb[0].mxu0 %v1786
    %v1857 = vpop.f32.mrb[0].mxu0
    %v1858 = vadd.f32 0.0, %v1857
    %v1859 = vpop.f32.mrb[0].mxu0
    %1860 = vmatprep.mubr.f32.mxu0 0.0
    %1861 = vmatmul.mubr.f32.gmra.mrb[0].mxu0 %v1789
    %v1862 = vpop.f32.mrb[0].mxu0
    %v1863 = vadd.f32 0.0, %v1862
    %v1864 = vpop.f32.mrb[0].mxu0
    %1865 = vdwg.mxu0
    %v1867 = vsel %vm368, %v1858, 0
    %v1870 = vsel %vm368, %v1863, 0
    %1872 = vmatprep.subr.mxu0 0.0
    %1873 = vmatpush1.msra.mxu0 %v365
    %1874 = vmatprep.subr.mxu0 0.0
    %1875 = vmatpush1.msra.mxu0 0.0
    %1876 = vmatprep.subr.mxu0 0.0
    %1877 = vmatpush1.msra.mxu0 0.0
    %1878 = vmatprep.subr.mxu0 0.0
    %1879 = vmatpush1.msra.mxu0 0.0
    %1880 = vmatprep.subr.mxu0 0.0
    %1881 = vmatpush1.msra.mxu0 0.0
    %1882 = vmatprep.subr.mxu0 0.0
    %1883 = vmatpush1.msra.mxu0 0.0
    %1884 = vmatprep.subr.mxu0 0.0
    %1885 = vmatpush1.msra.mxu0 0.0
    %1886 = vmatprep.subr.mxu0 0.0
    %1887 = vmatpush1.msra.mxu0 0.0
    %1888 = vmatprep.subr.mxu0 0.0
    %1889 = vmatpush1.msra.mxu0 0.0
    %1890 = vmatprep.subr.mxu0 0.0
    %1891 = vmatpush1.msra.mxu0 0.0
    %1892 = vmatprep.subr.mxu0 0.0
    %1893 = vmatpush1.msra.mxu0 0.0
    %1894 = vmatprep.subr.mxu0 0.0
    %1895 = vmatpush1.msra.mxu0 0.0
    %1896 = vmatprep.subr.mxu0 0.0
    %1897 = vmatpush1.msra.mxu0 0.0
    %1898 = vmatprep.subr.mxu0 0.0
    %1899 = vmatpush1.msra.mxu0 0.0
    %1900 = vmatprep.subr.mxu0 0.0
    %1901 = vmatpush1.msra.mxu0 0.0
    %1902 = vmatprep.subr.mxu0 0.0
    %1903 = vmatpush1.msra.mxu0 0.0
    %1904 = vmatprep.subr.mxu0 0.0
    %1905 = vmatpush1.msra.mxu0 0.0
    %1906 = vmatprep.subr.mxu0 0.0
    %1907 = vmatpush1.msra.mxu0 0.0
    %1908 = vmatprep.subr.mxu0 0.0
    %1909 = vmatpush1.msra.mxu0 0.0
    %1910 = vmatprep.subr.mxu0 0.0
    %1911 = vmatpush1.msra.mxu0 0.0
    %1912 = vmatprep.subr.mxu0 0.0
    %1913 = vmatpush1.msra.mxu0 0.0
    %1914 = vmatprep.subr.mxu0 0.0
    %1915 = vmatpush1.msra.mxu0 0.0
    %1916 = vmatprep.subr.mxu0 0.0
    %1917 = vmatpush1.msra.mxu0 0.0
    %1918 = vmatprep.subr.mxu0 0.0
    %1919 = vmatpush1.msra.mxu0 0.0
    %1920 = vmatprep.subr.mxu0 0.0
    %1921 = vmatpush1.msra.mxu0 0.0
    %1922 = vmatprep.subr.mxu0 0.0
    %1923 = vmatpush1.msra.mxu0 0.0
    %1924 = vmatprep.subr.mxu0 0.0
    %1925 = vmatpush1.msra.mxu0 0.0
    %1926 = vmatprep.subr.mxu0 0.0
    %1927 = vmatpush1.msra.mxu0 0.0
    %1928 = vmatprep.subr.mxu0 0.0
    %1929 = vmatpush1.msra.mxu0 0.0
    %1930 = vmatprep.subr.mxu0 0.0
    %1931 = vmatpush1.msra.mxu0 0.0
    %1932 = vmatprep.subr.mxu0 0.0
    %1933 = vmatpush1.msra.mxu0 0.0
    %1934 = vmatprep.subr.mxu0 0.0
    %1935 = vmatpush1.msra.mxu0 0.0
    %1936 = vmatprep.mubr.f32.mxu0 0.0
    %1937 = vmatmul.mubr.f32.gmra.mrb[0].mxu0 %v1867
    %v1938 = vpop.f32.mrb[0].mxu0
    %v1939 = vadd.f32 0.0, %v1938
    %v1940 = vpop.f32.mrb[0].mxu0
    %1941 = vmatprep.mubr.f32.mxu0 0.0
    %1942 = vmatmul.mubr.f32.gmra.mrb[0].mxu0 %v1870
    %v1943 = vpop.f32.mrb[0].mxu0
    %v1944 = vadd.f32 0.0, %v1943
    %v1945 = vpop.f32.mrb[0].mxu0
    %1946 = vdwg.mxu0
    %v1948 = vsel %vm368, %v1660, 0
    %v1951 = vsel %vm368, %v1665, 0
    %1953 = vmatprep.subr.mxu0 0.0
    %1954 = vmatpush1.msra.mxu0 %v364
    %1955 = vmatprep.subr.mxu0 0.0
    %1956 = vmatpush1.msra.mxu0 0.0
    %1957 = vmatprep.subr.mxu0 0.0
    %1958 = vmatpush1.msra.mxu0 0.0
    %1959 = vmatprep.subr.mxu0 0.0
    %1960 = vmatpush1.msra.mxu0 0.0
    %1961 = vmatprep.subr.mxu0 0.0
    %1962 = vmatpush1.msra.mxu0 0.0
    %1963 = vmatprep.subr.mxu0 0.0
    %1964 = vmatpush1.msra.mxu0 0.0
    %1965 = vmatprep.subr.mxu0 0.0
    %1966 = vmatpush1.msra.mxu0 0.0
    %1967 = vmatprep.subr.mxu0 0.0
    %1968 = vmatpush1.msra.mxu0 0.0
    %1969 = vmatprep.subr.mxu0 0.0
    %1970 = vmatpush1.msra.mxu0 0.0
    %1971 = vmatprep.subr.mxu0 0.0
    %1972 = vmatpush1.msra.mxu0 0.0
    %1973 = vmatprep.subr.mxu0 0.0
    %1974 = vmatpush1.msra.mxu0 0.0
    %1975 = vmatprep.subr.mxu0 0.0
    %1976 = vmatpush1.msra.mxu0 0.0
    %1977 = vmatprep.subr.mxu0 0.0
    %1978 = vmatpush1.msra.mxu0 0.0
    %1979 = vmatprep.subr.mxu0 0.0
    %1980 = vmatpush1.msra.mxu0 0.0
    %1981 = vmatprep.subr.mxu0 0.0
    %1982 = vmatpush1.msra.mxu0 0.0
    %1983 = vmatprep.subr.mxu0 0.0
    %1984 = vmatpush1.msra.mxu0 0.0
    %1985 = vmatprep.subr.mxu0 0.0
    %1986 = vmatpush1.msra.mxu0 0.0
    %1987 = vmatprep.subr.mxu0 0.0
    %1988 = vmatpush1.msra.mxu0 0.0
    %1989 = vmatprep.subr.mxu0 0.0
    %1990 = vmatpush1.msra.mxu0 0.0
    %1991 = vmatprep.subr.mxu0 0.0
    %1992 = vmatpush1.msra.mxu0 0.0
    %1993 = vmatprep.subr.mxu0 0.0
    %1994 = vmatpush1.msra.mxu0 0.0
    %1995 = vmatprep.subr.mxu0 0.0
    %1996 = vmatpush1.msra.mxu0 0.0
    %1997 = vmatprep.subr.mxu0 0.0
    %1998 = vmatpush1.msra.mxu0 0.0
    %1999 = vmatprep.subr.mxu0 0.0
    %2000 = vmatpush1.msra.mxu0 0.0
    %2001 = vmatprep.subr.mxu0 0.0
    %2002 = vmatpush1.msra.mxu0 0.0
    %2003 = vmatprep.subr.mxu0 0.0
    %2004 = vmatpush1.msra.mxu0 0.0
    %2005 = vmatprep.subr.mxu0 0.0
    %2006 = vmatpush1.msra.mxu0 0.0
    %2007 = vmatprep.subr.mxu0 0.0
    %2008 = vmatpush1.msra.mxu0 0.0
    %2009 = vmatprep.subr.mxu0 0.0
    %2010 = vmatpush1.msra.mxu0 0.0
    %2011 = vmatprep.subr.mxu0 0.0
    %2012 = vmatpush1.msra.mxu0 0.0
    %2013 = vmatprep.subr.mxu0 0.0
    %2014 = vmatpush1.msra.mxu0 0.0
    %2015 = vmatprep.subr.mxu0 0.0
    %2016 = vmatpush1.msra.mxu0 0.0
    %2017 = vmatprep.mubr.f32.mxu0 0.0
    %2018 = vmatmul.mubr.f32.gmra.mrb[0].mxu0 %v1948
    %v2019 = vpop.f32.mrb[0].mxu0
    %v2020 = vadd.f32 %v1939, %v2019
    %v2021 = vpop.f32.mrb[0].mxu0
    %2022 = vmatprep.mubr.f32.mxu0 0.0
    %2023 = vmatmul.mubr.f32.gmra.mrb[0].mxu0 %v1951
    %v2024 = vpop.f32.mrb[0].mxu0
    %v2025 = vadd.f32 %v1944, %v2024
    %v2026 = vpop.f32.mrb[0].mxu0
    %2027 = vdwg.mxu0
    %2028 = vrot.lane.b32.xlu0 %v231, 112
    %v2029 = vpop.permute.xlu0 %2028
    %2030 = vrot.lane.b32.xlu0 %v236, 112
    %v2031 = vpop.permute.xlu0 %2030
    %2033 = vrot.lane.b32.xlu0 %v356, 112
    %v2034 = vpop.permute.xlu0 %2033
    %v2036 = vsel %vm368, %v2029, 0
    %v2038 = vsel %vm368, %v2031, 0
    %2040 = vmatprep.subr.mxu0 0.0
    %2041 = vmatpush1.msra.mxu0 %v2034
    %2042 = vmatprep.subr.mxu0 0.0
    %2043 = vmatpush1.msra.mxu0 0.0
    %2044 = vmatprep.subr.mxu0 0.0
    %2045 = vmatpush1.msra.mxu0 0.0
    %2046 = vmatprep.subr.mxu0 0.0
    %2047 = vmatpush1.msra.mxu0 0.0
    %2048 = vmatprep.subr.mxu0 0.0
    %2049 = vmatpush1.msra.mxu0 0.0
    %2050 = vmatprep.subr.mxu0 0.0
    %2051 = vmatpush1.msra.mxu0 0.0
    %2052 = vmatprep.subr.mxu0 0.0
    %2053 = vmatpush1.msra.mxu0 0.0
    %2054 = vmatprep.subr.mxu0 0.0
    %2055 = vmatpush1.msra.mxu0 0.0
    %2056 = vmatprep.subr.mxu0 0.0
    %2057 = vmatpush1.msra.mxu0 0.0
    %2058 = vmatprep.subr.mxu0 0.0
    %2059 = vmatpush1.msra.mxu0 0.0
    %2060 = vmatprep.subr.mxu0 0.0
    %2061 = vmatpush1.msra.mxu0 0.0
    %2062 = vmatprep.subr.mxu0 0.0
    %2063 = vmatpush1.msra.mxu0 0.0
    %2064 = vmatprep.subr.mxu0 0.0
    %2065 = vmatpush1.msra.mxu0 0.0
    %2066 = vmatprep.subr.mxu0 0.0
    %2067 = vmatpush1.msra.mxu0 0.0
    %2068 = vmatprep.subr.mxu0 0.0
    %2069 = vmatpush1.msra.mxu0 0.0
    %2070 = vmatprep.subr.mxu0 0.0
    %2071 = vmatpush1.msra.mxu0 0.0
    %2072 = vmatprep.subr.mxu0 0.0
    %2073 = vmatpush1.msra.mxu0 0.0
    %2074 = vmatprep.subr.mxu0 0.0
    %2075 = vmatpush1.msra.mxu0 0.0
    %2076 = vmatprep.subr.mxu0 0.0
    %2077 = vmatpush1.msra.mxu0 0.0
    %2078 = vmatprep.subr.mxu0 0.0
    %2079 = vmatpush1.msra.mxu0 0.0
    %2080 = vmatprep.subr.mxu0 0.0
    %2081 = vmatpush1.msra.mxu0 0.0
    %2082 = vmatprep.subr.mxu0 0.0
    %2083 = vmatpush1.msra.mxu0 0.0
    %2084 = vmatprep.subr.mxu0 0.0
    %2085 = vmatpush1.msra.mxu0 0.0
    %2086 = vmatprep.subr.mxu0 0.0
    %2087 = vmatpush1.msra.mxu0 0.0
    %2088 = vmatprep.subr.mxu0 0.0
    %2089 = vmatpush1.msra.mxu0 0.0
    %2090 = vmatprep.subr.mxu0 0.0
    %2091 = vmatpush1.msra.mxu0 0.0
    %2092 = vmatprep.subr.mxu0 0.0
    %2093 = vmatpush1.msra.mxu0 0.0
    %2094 = vmatprep.subr.mxu0 0.0
    %2095 = vmatpush1.msra.mxu0 0.0
    %2096 = vmatprep.subr.mxu0 0.0
    %2097 = vmatpush1.msra.mxu0 0.0
    %2098 = vmatprep.subr.mxu0 0.0
    %2099 = vmatpush1.msra.mxu0 0.0
    %2100 = vmatprep.subr.mxu0 0.0
    %2101 = vmatpush1.msra.mxu0 0.0
    %2102 = vmatprep.subr.mxu0 0.0
    %2103 = vmatpush1.msra.mxu0 0.0
    %2104 = vmatprep.mubr.f32.mxu0 0.0
    %2105 = vmatmul.mubr.f32.gmra.mrb[0].mxu0 %v2036
    %v2106 = vpop.f32.mrb[0].mxu0
    %v2107 = vadd.f32 0.0, %v2106
    %v2108 = vpop.f32.mrb[0].mxu0
    %2109 = vmatprep.mubr.f32.mxu0 0.0
    %2110 = vmatmul.mubr.f32.gmra.mrb[0].mxu0 %v2038
    %v2111 = vpop.f32.mrb[0].mxu0
    %v2112 = vadd.f32 0.0, %v2111
    %v2113 = vpop.f32.mrb[0].mxu0
    %2114 = vdwg.mxu0
    %v2115 = vmul.f32 %v2107, 0.35355338
    %v2116 = vmul.f32 %v2112, 0.35355338
    %v2117 = vsel %vm452, %v2115, -inf
    %2118 = vmax.xlane.f32.xlu0 %v2117
    %v2119 = vpop.xlane.xlu0 %2118
    %v2120 = vsel %vm452, %v2116, -inf
    %2121 = vmax.xlane.f32.xlu0 %v2120
    %v2122 = vpop.xlane.xlu0 %2121
    %v2123 = vsub.f32 %v2115, %v2119
    %v2124 = vsub.f32 %v2116, %v2122
    %v2125 = vmul.f32 %v2123, 1.442695
    %v2126 = vpow.pop %v2125
    %v2127 = vmul.f32 %v2124, 1.442695
    %v2128 = vpow.pop %v2127
    %v2129 = vsel %vm452, %v2126, 0.0
    %2130 = vadd.xlane.f32.xlu0 %v2129
    %v2131 = vpop.xlane.xlu0 %2130
    %v2132 = vsel %vm452, %v2128, 0.0
    %2133 = vadd.xlane.f32.xlu0 %v2132
    %v2134 = vpop.xlane.xlu0 %2133
    %v2135 = vrcp.pop %v2131
    %v2136 = vrcp.pop %v2134
    %v2137 = vmul.f32 %v2126, %v2135
    %v2138 = vmul.f32 %v2128, %v2136
    %2139 = vrot.lane.b32.xlu0 %v231, 80
    %v2140 = vpop.permute.xlu0 %2139
    %2141 = vrot.lane.b32.xlu0 %v236, 80
    %v2142 = vpop.permute.xlu0 %2141
    %v2146 = vsel %vm452, %v2137, 0
    %v2149 = vsel %vm452, %v2138, 0
    %2151 = vmatprep.subr.mxu0 0.0
    %2152 = vmatpush1.msra.mxu0 %v2140
    %2153 = vmatprep.subr.mxu0 0.0
    %2154 = vmatpush1.msra.mxu0 %v2142
    %2155 = vmatprep.subr.mxu0 0.0
    %2156 = vmatpush1.msra.mxu0 0.0
    %2157 = vmatprep.subr.mxu0 0.0
    %2158 = vmatpush1.msra.mxu0 0.0
    %2159 = vmatprep.subr.mxu0 0.0
    %2160 = vmatpush1.msra.mxu0 0.0
    %2161 = vmatprep.subr.mxu0 0.0
    %2162 = vmatpush1.msra.mxu0 0.0
    %2163 = vmatprep.subr.mxu0 0.0
    %2164 = vmatpush1.msra.mxu0 0.0
    %2165 = vmatprep.subr.mxu0 0.0
    %2166 = vmatpush1.msra.mxu0 0.0
    %2167 = vmatprep.subr.mxu0 0.0
    %2168 = vmatpush1.msra.mxu0 0.0
    %2169 = vmatprep.subr.mxu0 0.0
    %2170 = vmatpush1.msra.mxu0 0.0
    %2171 = vmatprep.subr.mxu0 0.0
    %2172 = vmatpush1.msra.mxu0 0.0
    %2173 = vmatprep.subr.mxu0 0.0
    %2174 = vmatpush1.msra.mxu0 0.0
    %2175 = vmatprep.subr.mxu0 0.0
    %2176 = vmatpush1.msra.mxu0 0.0
    %2177 = vmatprep.subr.mxu0 0.0
    %2178 = vmatpush1.msra.mxu0 0.0
    %2179 = vmatprep.subr.mxu0 0.0
    %2180 = vmatpush1.msra.mxu0 0.0
    %2181 = vmatprep.subr.mxu0 0.0
    %2182 = vmatpush1.msra.mxu0 0.0
    %2183 = vmatprep.subr.mxu0 0.0
    %2184 = vmatpush1.msra.mxu0 0.0
    %2185 = vmatprep.subr.mxu0 0.0
    %2186 = vmatpush1.msra.mxu0 0.0
    %2187 = vmatprep.subr.mxu0 0.0
    %2188 = vmatpush1.msra.mxu0 0.0
    %2189 = vmatprep.subr.mxu0 0.0
    %2190 = vmatpush1.msra.mxu0 0.0
    %2191 = vmatprep.subr.mxu0 0.0
    %2192 = vmatpush1.msra.mxu0 0.0
    %2193 = vmatprep.subr.mxu0 0.0
    %2194 = vmatpush1.msra.mxu0 0.0
    %2195 = vmatprep.subr.mxu0 0.0
    %2196 = vmatpush1.msra.mxu0 0.0
    %2197 = vmatprep.subr.mxu0 0.0
    %2198 = vmatpush1.msra.mxu0 0.0
    %2199 = vmatprep.subr.mxu0 0.0
    %2200 = vmatpush1.msra.mxu0 0.0
    %2201 = vmatprep.subr.mxu0 0.0
    %2202 = vmatpush1.msra.mxu0 0.0
    %2203 = vmatprep.subr.mxu0 0.0
    %2204 = vmatpush1.msra.mxu0 0.0
    %2205 = vmatprep.subr.mxu0 0.0
    %2206 = vmatpush1.msra.mxu0 0.0
    %2207 = vmatprep.subr.mxu0 0.0
    %2208 = vmatpush1.msra.mxu0 0.0
    %2209 = vmatprep.subr.mxu0 0.0
    %2210 = vmatpush1.msra.mxu0 0.0
    %2211 = vmatprep.subr.mxu0 0.0
    %2212 = vmatpush1.msra.mxu0 0.0
    %2213 = vmatprep.subr.mxu0 0.0
    %2214 = vmatpush1.msra.mxu0 0.0
    %2215 = vmatprep.mubr.f32.mxu0 0.0
    %2216 = vmatmul.mubr.f32.gmra.mrb[0].mxu0 %v2146
    %v2217 = vpop.f32.mrb[0].mxu0
    %v2218 = vadd.f32 0.0, %v2217
    %v2219 = vpop.f32.mrb[0].mxu0
    %2220 = vmatprep.mubr.f32.mxu0 0.0
    %2221 = vmatmul.mubr.f32.gmra.mrb[0].mxu0 %v2149
    %v2222 = vpop.f32.mrb[0].mxu0
    %v2223 = vadd.f32 0.0, %v2222
    %v2224 = vpop.f32.mrb[0].mxu0
    %2225 = vdwg.mxu0
    %v2227 = vsel %vm368, %v2218, 0
    %v2230 = vsel %vm368, %v2223, 0
    %2232 = vmatprep.subr.mxu0 0.0
    %2233 = vmatpush1.msra.mxu0 %v366
    %2234 = vmatprep.subr.mxu0 0.0
    %2235 = vmatpush1.msra.mxu0 0.0
    %2236 = vmatprep.subr.mxu0 0.0
    %2237 = vmatpush1.msra.mxu0 0.0
    %2238 = vmatprep.subr.mxu0 0.0
    %2239 = vmatpush1.msra.mxu0 0.0
    %2240 = vmatprep.subr.mxu0 0.0
    %2241 = vmatpush1.msra.mxu0 0.0
    %2242 = vmatprep.subr.mxu0 0.0
    %2243 = vmatpush1.msra.mxu0 0.0
    %2244 = vmatprep.subr.mxu0 0.0
    %2245 = vmatpush1.msra.mxu0 0.0
    %2246 = vmatprep.subr.mxu0 0.0
    %2247 = vmatpush1.msra.mxu0 0.0
    %2248 = vmatprep.subr.mxu0 0.0
    %2249 = vmatpush1.msra.mxu0 0.0
    %2250 = vmatprep.subr.mxu0 0.0
    %2251 = vmatpush1.msra.mxu0 0.0
    %2252 = vmatprep.subr.mxu0 0.0
    %2253 = vmatpush1.msra.mxu0 0.0
    %2254 = vmatprep.subr.mxu0 0.0
    %2255 = vmatpush1.msra.mxu0 0.0
    %2256 = vmatprep.subr.mxu0 0.0
    %2257 = vmatpush1.msra.mxu0 0.0
    %2258 = vmatprep.subr.mxu0 0.0
    %2259 = vmatpush1.msra.mxu0 0.0
    %2260 = vmatprep.subr.mxu0 0.0
    %2261 = vmatpush1.msra.mxu0 0.0
    %2262 = vmatprep.subr.mxu0 0.0
    %2263 = vmatpush1.msra.mxu0 0.0
    %2264 = vmatprep.subr.mxu0 0.0
    %2265 = vmatpush1.msra.mxu0 0.0
    %2266 = vmatprep.subr.mxu0 0.0
    %2267 = vmatpush1.msra.mxu0 0.0
    %2268 = vmatprep.subr.mxu0 0.0
    %2269 = vmatpush1.msra.mxu0 0.0
    %2270 = vmatprep.subr.mxu0 0.0
    %2271 = vmatpush1.msra.mxu0 0.0
    %2272 = vmatprep.subr.mxu0 0.0
    %2273 = vmatpush1.msra.mxu0 0.0
    %2274 = vmatprep.subr.mxu0 0.0
    %2275 = vmatpush1.msra.mxu0 0.0
    %2276 = vmatprep.subr.mxu0 0.0
    %2277 = vmatpush1.msra.mxu0 0.0
    %2278 = vmatprep.subr.mxu0 0.0
    %2279 = vmatpush1.msra.mxu0 0.0
    %2280 = vmatprep.subr.mxu0 0.0
    %2281 = vmatpush1.msra.mxu0 0.0
    %2282 = vmatprep.subr.mxu0 0.0
    %2283 = vmatpush1.msra.mxu0 0.0
    %2284 = vmatprep.subr.mxu0 0.0
    %2285 = vmatpush1.msra.mxu0 0.0
    %2286 = vmatprep.subr.mxu0 0.0
    %2287 = vmatpush1.msra.mxu0 0.0
    %2288 = vmatprep.subr.mxu0 0.0
    %2289 = vmatpush1.msra.mxu0 0.0
    %2290 = vmatprep.subr.mxu0 0.0
    %2291 = vmatpush1.msra.mxu0 0.0
    %2292 = vmatprep.subr.mxu0 0.0
    %2293 = vmatpush1.msra.mxu0 0.0
    %2294 = vmatprep.subr.mxu0 0.0
    %2295 = vmatpush1.msra.mxu0 0.0
    %2296 = vmatprep.mubr.f32.mxu0 0.0
    %2297 = vmatmul.mubr.f32.gmra.mrb[0].mxu0 %v2227
    %v2298 = vpop.f32.mrb[0].mxu0
    %v2299 = vadd.f32 0.0, %v2298
    %v2300 = vpop.f32.mrb[0].mxu0
    %2301 = vmatprep.mubr.f32.mxu0 0.0
    %2302 = vmatmul.mubr.f32.gmra.mrb[0].mxu0 %v2230
    %v2303 = vpop.f32.mrb[0].mxu0
    %v2304 = vadd.f32 0.0, %v2303
    %v2305 = vpop.f32.mrb[0].mxu0
    %2306 = vdwg.mxu0
    %v2307 = vadd.f32 %v2020, %v2299
    %v2308 = vadd.f32 %v2025, %v2304
    %2309 = vrot.lane.b32.xlu0 %v231, 104
    %v2310 = vpop.permute.xlu0 %2309
    %2311 = vrot.lane.b32.xlu0 %v236, 104
    %v2312 = vpop.permute.xlu0 %2311
    %2314 = vrot.lane.b32.xlu0 %v361, 112
    %v2315 = vpop.permute.xlu0 %2314
    %v2317 = vsel %vm368, %v2310, 0
    %v2319 = vsel %vm368, %v2312, 0
    %2321 = vmatprep.subr.mxu0 0.0
    %2322 = vmatpush1.msra.mxu0 %v2315
    %2323 = vmatprep.subr.mxu0 0.0
    %2324 = vmatpush1.msra.mxu0 0.0
    %2325 = vmatprep.subr.mxu0 0.0
    %2326 = vmatpush1.msra.mxu0 0.0
    %2327 = vmatprep.subr.mxu0 0.0
    %2328 = vmatpush1.msra.mxu0 0.0
    %2329 = vmatprep.subr.mxu0 0.0
    %2330 = vmatpush1.msra.mxu0 0.0
    %2331 = vmatprep.subr.mxu0 0.0
    %2332 = vmatpush1.msra.mxu0 0.0
    %2333 = vmatprep.subr.mxu0 0.0
    %2334 = vmatpush1.msra.mxu0 0.0
    %2335 = vmatprep.subr.mxu0 0.0
    %2336 = vmatpush1.msra.mxu0 0.0
    %2337 = vmatprep.subr.mxu0 0.0
    %2338 = vmatpush1.msra.mxu0 0.0
    %2339 = vmatprep.subr.mxu0 0.0
    %2340 = vmatpush1.msra.mxu0 0.0
    %2341 = vmatprep.subr.mxu0 0.0
    %2342 = vmatpush1.msra.mxu0 0.0
    %2343 = vmatprep.subr.mxu0 0.0
    %2344 = vmatpush1.msra.mxu0 0.0
    %2345 = vmatprep.subr.mxu0 0.0
    %2346 = vmatpush1.msra.mxu0 0.0
    %2347 = vmatprep.subr.mxu0 0.0
    %2348 = vmatpush1.msra.mxu0 0.0
    %2349 = vmatprep.subr.mxu0 0.0
    %2350 = vmatpush1.msra.mxu0 0.0
    %2351 = vmatprep.subr.mxu0 0.0
    %2352 = vmatpush1.msra.mxu0 0.0
    %2353 = vmatprep.subr.mxu0 0.0
    %2354 = vmatpush1.msra.mxu0 0.0
    %2355 = vmatprep.subr.mxu0 0.0
    %2356 = vmatpush1.msra.mxu0 0.0
    %2357 = vmatprep.subr.mxu0 0.0
    %2358 = vmatpush1.msra.mxu0 0.0
    %2359 = vmatprep.subr.mxu0 0.0
    %2360 = vmatpush1.msra.mxu0 0.0
    %2361 = vmatprep.subr.mxu0 0.0
    %2362 = vmatpush1.msra.mxu0 0.0
    %2363 = vmatprep.subr.mxu0 0.0
    %2364 = vmatpush1.msra.mxu0 0.0
    %2365 = vmatprep.subr.mxu0 0.0
    %2366 = vmatpush1.msra.mxu0 0.0
    %2367 = vmatprep.subr.mxu0 0.0
    %2368 = vmatpush1.msra.mxu0 0.0
    %2369 = vmatprep.subr.mxu0 0.0
    %2370 = vmatpush1.msra.mxu0 0.0
    %2371 = vmatprep.subr.mxu0 0.0
    %2372 = vmatpush1.msra.mxu0 0.0
    %2373 = vmatprep.subr.mxu0 0.0
    %2374 = vmatpush1.msra.mxu0 0.0
    %2375 = vmatprep.subr.mxu0 0.0
    %2376 = vmatpush1.msra.mxu0 0.0
    %2377 = vmatprep.subr.mxu0 0.0
    %2378 = vmatpush1.msra.mxu0 0.0
    %2379 = vmatprep.subr.mxu0 0.0
    %2380 = vmatpush1.msra.mxu0 0.0
    %2381 = vmatprep.subr.mxu0 0.0
    %2382 = vmatpush1.msra.mxu0 0.0
    %2383 = vmatprep.subr.mxu0 0.0
    %2384 = vmatpush1.msra.mxu0 0.0
    %2385 = vmatprep.mubr.f32.mxu0 0.0
    %2386 = vmatmul.mubr.f32.gmra.mrb[0].mxu0 %v2317
    %v2387 = vpop.f32.mrb[0].mxu0
    %v2388 = vadd.f32 0.0, %v2387
    %v2389 = vpop.f32.mrb[0].mxu0
    %2390 = vmatprep.mubr.f32.mxu0 0.0
    %2391 = vmatmul.mubr.f32.gmra.mrb[0].mxu0 %v2319
    %v2392 = vpop.f32.mrb[0].mxu0
    %v2393 = vadd.f32 0.0, %v2392
    %v2394 = vpop.f32.mrb[0].mxu0
    %2395 = vdwg.mxu0
    %v2396 = vmul.f32 %v2388, 0.35355338
    %v2397 = vmul.f32 %v2393, 0.35355338
    %v2398 = vsel %vm452, %v2396, -inf
    %2399 = vmax.xlane.f32.xlu0 %v2398
    %v2400 = vpop.xlane.xlu0 %2399
    %v2401 = vsel %vm452, %v2397, -inf
    %2402 = vmax.xlane.f32.xlu0 %v2401
    %v2403 = vpop.xlane.xlu0 %2402
    %v2404 = vsub.f32 %v2396, %v2400
    %v2405 = vsub.f32 %v2397, %v2403
    %v2406 = vmul.f32 %v2404, 1.442695
    %v2407 = vpow.pop %v2406
    %v2408 = vmul.f32 %v2405, 1.442695
    %v2409 = vpow.pop %v2408
    %v2410 = vsel %vm452, %v2407, 0.0
    %2411 = vadd.xlane.f32.xlu0 %v2410
    %v2412 = vpop.xlane.xlu0 %2411
    %v2413 = vsel %vm452, %v2409, 0.0
    %2414 = vadd.xlane.f32.xlu0 %v2413
    %v2415 = vpop.xlane.xlu0 %2414
    %v2416 = vrcp.pop %v2412
    %v2417 = vrcp.pop %v2415
    %v2418 = vmul.f32 %v2407, %v2416
    %v2419 = vmul.f32 %v2409, %v2417
    %2420 = vrot.lane.b32.xlu0 %v231, 72
    %v2421 = vpop.permute.xlu0 %2420
    %2422 = vrot.lane.b32.xlu0 %v236, 72
    %v2423 = vpop.permute.xlu0 %2422
    %v2427 = vsel %vm452, %v2418, 0
    %v2430 = vsel %vm452, %v2419, 0
    %2432 = vmatprep.subr.mxu0 0.0
    %2433 = vmatpush1.msra.mxu0 %v2421
    %2434 = vmatprep.subr.mxu0 0.0
    %2435 = vmatpush1.msra.mxu0 %v2423
    %2436 = vmatprep.subr.mxu0 0.0
    %2437 = vmatpush1.msra.mxu0 0.0
    %2438 = vmatprep.subr.mxu0 0.0
    %2439 = vmatpush1.msra.mxu0 0.0
    %2440 = vmatprep.subr.mxu0 0.0
    %2441 = vmatpush1.msra.mxu0 0.0
    %2442 = vmatprep.subr.mxu0 0.0
    %2443 = vmatpush1.msra.mxu0 0.0
    %2444 = vmatprep.subr.mxu0 0.0
    %2445 = vmatpush1.msra.mxu0 0.0
    %2446 = vmatprep.subr.mxu0 0.0
    %2447 = vmatpush1.msra.mxu0 0.0
    %2448 = vmatprep.subr.mxu0 0.0
    %2449 = vmatpush1.msra.mxu0 0.0
    %2450 = vmatprep.subr.mxu0 0.0
    %2451 = vmatpush1.msra.mxu0 0.0
    %2452 = vmatprep.subr.mxu0 0.0
    %2453 = vmatpush1.msra.mxu0 0.0
    %2454 = vmatprep.subr.mxu0 0.0
    %2455 = vmatpush1.msra.mxu0 0.0
    %2456 = vmatprep.subr.mxu0 0.0
    %2457 = vmatpush1.msra.mxu0 0.0
    %2458 = vmatprep.subr.mxu0 0.0
    %2459 = vmatpush1.msra.mxu0 0.0
    %2460 = vmatprep.subr.mxu0 0.0
    %2461 = vmatpush1.msra.mxu0 0.0
    %2462 = vmatprep.subr.mxu0 0.0
    %2463 = vmatpush1.msra.mxu0 0.0
    %2464 = vmatprep.subr.mxu0 0.0
    %2465 = vmatpush1.msra.mxu0 0.0
    %2466 = vmatprep.subr.mxu0 0.0
    %2467 = vmatpush1.msra.mxu0 0.0
    %2468 = vmatprep.subr.mxu0 0.0
    %2469 = vmatpush1.msra.mxu0 0.0
    %2470 = vmatprep.subr.mxu0 0.0
    %2471 = vmatpush1.msra.mxu0 0.0
    %2472 = vmatprep.subr.mxu0 0.0
    %2473 = vmatpush1.msra.mxu0 0.0
    %2474 = vmatprep.subr.mxu0 0.0
    %2475 = vmatpush1.msra.mxu0 0.0
    %2476 = vmatprep.subr.mxu0 0.0
    %2477 = vmatpush1.msra.mxu0 0.0
    %2478 = vmatprep.subr.mxu0 0.0
    %2479 = vmatpush1.msra.mxu0 0.0
    %2480 = vmatprep.subr.mxu0 0.0
    %2481 = vmatpush1.msra.mxu0 0.0
    %2482 = vmatprep.subr.mxu0 0.0
    %2483 = vmatpush1.msra.mxu0 0.0
    %2484 = vmatprep.subr.mxu0 0.0
    %2485 = vmatpush1.msra.mxu0 0.0
    %2486 = vmatprep.subr.mxu0 0.0
    %2487 = vmatpush1.msra.mxu0 0.0
    %2488 = vmatprep.subr.mxu0 0.0
    %2489 = vmatpush1.msra.mxu0 0.0
    %2490 = vmatprep.subr.mxu0 0.0
    %2491 = vmatpush1.msra.mxu0 0.0
    %2492 = vmatprep.subr.mxu0 0.0
    %2493 = vmatpush1.msra.mxu0 0.0
    %2494 = vmatprep.subr.mxu0 0.0
    %2495 = vmatpush1.msra.mxu0 0.0
    %2496 = vmatprep.mubr.f32.mxu0 0.0
    %2497 = vmatmul.mubr.f32.gmra.mrb[0].mxu0 %v2427
    %v2498 = vpop.f32.mrb[0].mxu0
    %v2499 = vadd.f32 0.0, %v2498
    %v2500 = vpop.f32.mrb[0].mxu0
    %2501 = vmatprep.mubr.f32.mxu0 0.0
    %2502 = vmatmul.mubr.f32.gmra.mrb[0].mxu0 %v2430
    %v2503 = vpop.f32.mrb[0].mxu0
    %v2504 = vadd.f32 0.0, %v2503
    %v2505 = vpop.f32.mrb[0].mxu0
    %2506 = vdwg.mxu0
    %v2508 = vsel %vm368, %v2499, 0
    %v2511 = vsel %vm368, %v2504, 0
    %2513 = vmatprep.subr.mxu0 0.0
    %2514 = vmatpush1.msra.mxu0 %v367
    %2515 = vmatprep.subr.mxu0 0.0
    %2516 = vmatpush1.msra.mxu0 0.0
    %2517 = vmatprep.subr.mxu0 0.0
    %2518 = vmatpush1.msra.mxu0 0.0
    %2519 = vmatprep.subr.mxu0 0.0
    %2520 = vmatpush1.msra.mxu0 0.0
    %2521 = vmatprep.subr.mxu0 0.0
    %2522 = vmatpush1.msra.mxu0 0.0
    %2523 = vmatprep.subr.mxu0 0.0
    %2524 = vmatpush1.msra.mxu0 0.0
    %2525 = vmatprep.subr.mxu0 0.0
    %2526 = vmatpush1.msra.mxu0 0.0
    %2527 = vmatprep.subr.mxu0 0.0
    %2528 = vmatpush1.msra.mxu0 0.0
    %2529 = vmatprep.subr.mxu0 0.0
    %2530 = vmatpush1.msra.mxu0 0.0
    %2531 = vmatprep.subr.mxu0 0.0
    %2532 = vmatpush1.msra.mxu0 0.0
    %2533 = vmatprep.subr.mxu0 0.0
    %2534 = vmatpush1.msra.mxu0 0.0
    %2535 = vmatprep.subr.mxu0 0.0
    %2536 = vmatpush1.msra.mxu0 0.0
    %2537 = vmatprep.subr.mxu0 0.0
    %2538 = vmatpush1.msra.mxu0 0.0
    %2539 = vmatprep.subr.mxu0 0.0
    %2540 = vmatpush1.msra.mxu0 0.0
    %2541 = vmatprep.subr.mxu0 0.0
    %2542 = vmatpush1.msra.mxu0 0.0
    %2543 = vmatprep.subr.mxu0 0.0
    %2544 = vmatpush1.msra.mxu0 0.0
    %2545 = vmatprep.subr.mxu0 0.0
    %2546 = vmatpush1.msra.mxu0 0.0
    %2547 = vmatprep.subr.mxu0 0.0
    %2548 = vmatpush1.msra.mxu0 0.0
    %2549 = vmatprep.subr.mxu0 0.0
    %2550 = vmatpush1.msra.mxu0 0.0
    %2551 = vmatprep.subr.mxu0 0.0
    %2552 = vmatpush1.msra.mxu0 0.0
    %2553 = vmatprep.subr.mxu0 0.0
    %2554 = vmatpush1.msra.mxu0 0.0
    %2555 = vmatprep.subr.mxu0 0.0
    %2556 = vmatpush1.msra.mxu0 0.0
    %2557 = vmatprep.subr.mxu0 0.0
    %2558 = vmatpush1.msra.mxu0 0.0
    %2559 = vmatprep.subr.mxu0 0.0
    %2560 = vmatpush1.msra.mxu0 0.0
    %2561 = vmatprep.subr.mxu0 0.0
    %2562 = vmatpush1.msra.mxu0 0.0
    %2563 = vmatprep.subr.mxu0 0.0
    %2564 = vmatpush1.msra.mxu0 0.0
    %2565 = vmatprep.subr.mxu0 0.0
    %2566 = vmatpush1.msra.mxu0 0.0
    %2567 = vmatprep.subr.mxu0 0.0
    %2568 = vmatpush1.msra.mxu0 0.0
    %2569 = vmatprep.subr.mxu0 0.0
    %2570 = vmatpush1.msra.mxu0 0.0
    %2571 = vmatprep.subr.mxu0 0.0
    %2572 = vmatpush1.msra.mxu0 0.0
    %2573 = vmatprep.subr.mxu0 0.0
    %2574 = vmatpush1.msra.mxu0 0.0
    %2575 = vmatprep.subr.mxu0 0.0
    %2576 = vmatpush1.msra.mxu0 0.0
    %2577 = vmatprep.mubr.f32.mxu0 0.0
    %2578 = vmatmul.mubr.f32.gmra.mrb[0].mxu0 %v2508
    %v2579 = vpop.f32.mrb[0].mxu0
    %v2580 = vadd.f32 0.0, %v2579
    %v2581 = vpop.f32.mrb[0].mxu0
    %2582 = vmatprep.mubr.f32.mxu0 0.0
    %2583 = vmatmul.mubr.f32.gmra.mrb[0].mxu0 %v2511
    %v2584 = vpop.f32.mrb[0].mxu0
    %v2585 = vadd.f32 0.0, %v2584
    %v2586 = vpop.f32.mrb[0].mxu0
    %2587 = vdwg.mxu0
    %v2588 = vadd.f32 %v2307, %v2580
    %v2589 = vadd.f32 %v2308, %v2585
    %v2590 = vld [vmem:[%s8] sm:$0x1]
    %v2592 = vlaneseq
    %v2593 = vshrl.u32 %v2592, 7
    %v2594 = vsub.s32 0, %v2593
    %v2595 = vrot.slane %v2590, %v2594
    %v2597 = vadd.f32 %v1470, %v2595
    %v2598 = vadd.f32 %v1471, %v2595
    %v2599 = vadd.f32 %v2588, %v2595
    %v2600 = vadd.f32 %v2589, %v2595
    %v2601 = vadd.f32 %v51, %v2597
    %v2602 = vadd.f32 %v52, %v2598
    %v2603 = vadd.f32 %v53, %v2599
    %v2604 = vadd.f32 %v54, %v2600
    %v2605 = vld [vmem:[%s9] sm:$0x1]
    %v2606 = vld [vmem:[%s10] sm:$0x1]
    %v2607 = vsel %vm57, %v2601, 0.0
    %2608 = vadd.xlane.f32.xlu0 %v2607
    %v2609 = vpop.xlane.xlu0 %2608
    %v2610 = vsel %vm57, %v2602, 0.0
    %2611 = vadd.xlane.f32.xlu0 %v2610
    %v2612 = vpop.xlane.xlu0 %2611
    %v2613 = vsel %vm57, %v2603, 0.0
    %2614 = vadd.xlane.f32.xlu0 %v2613
    %v2615 = vpop.xlane.xlu0 %2614
    %v2616 = vsel %vm57, %v2604, 0.0
    %2617 = vadd.xlane.f32.xlu0 %v2616
    %v2618 = vpop.xlane.xlu0 %2617
    %v2619 = vmul.f32 %v2609, %v70
    %v2620 = vmul.f32 %v2612, %v70
    %v2621 = vmul.f32 %v2615, %v70
    %v2622 = vmul.f32 %v2618, %v70
    %v2623 = vsub.f32 %v2601, %v2619
    %v2624 = vsub.f32 %v2602, %v2620
    %v2625 = vsub.f32 %v2603, %v2621
    %v2626 = vsub.f32 %v2604, %v2622
    %v2627 = vmul.f32 %v2623, %v2623
    %v2628 = vmul.f32 %v2624, %v2624
    %v2629 = vmul.f32 %v2625, %v2625
    %v2630 = vmul.f32 %v2626, %v2626
    %v2631 = vsel %vm57, %v2627, 0.0
    %2632 = vadd.xlane.f32.xlu0 %v2631
    %v2633 = vpop.xlane.xlu0 %2632
    %v2634 = vsel %vm57, %v2628, 0.0
    %2635 = vadd.xlane.f32.xlu0 %v2634
    %v2636 = vpop.xlane.xlu0 %2635
    %v2637 = vsel %vm57, %v2629, 0.0
    %2638 = vadd.xlane.f32.xlu0 %v2637
    %v2639 = vpop.xlane.xlu0 %2638
    %v2640 = vsel %vm57, %v2630, 0.0
    %2641 = vadd.xlane.f32.xlu0 %v2640
    %v2642 = vpop.xlane.xlu0 %2641
    %v2643 = vmul.f32 %v2633, %v70
    %v2644 = vmul.f32 %v2636, %v70
    %v2645 = vmul.f32 %v2639, %v70
    %v2646 = vmul.f32 %v2642, %v70
    %v2647 = vadd.f32 %v2643, 1e-05
    %v2648 = vadd.f32 %v2644, 1e-05
    %v2649 = vadd.f32 %v2645, 1e-05
    %v2650 = vadd.f32 %v2646, 1e-05
    %v2651 = vrsqrt.pop %v2647
    %v2652 = vrsqrt.pop %v2648
    %v2653 = vrsqrt.pop %v2649
    %v2654 = vrsqrt.pop %v2650
    %v2655 = vmul.f32 %v2623, %v2651
    %v2656 = vmul.f32 %v2624, %v2652
    %v2657 = vmul.f32 %v2625, %v2653
    %v2658 = vmul.f32 %v2626, %v2654
    %v2660 = vlaneseq
    %v2661 = vshrl.u32 %v2660, 7
    %v2662 = vsub.s32 0, %v2661
    %v2663 = vrot.slane %v2605, %v2662
    %v2665 = vmul.f32 %v2655, %v2663
    %v2666 = vmul.f32 %v2656, %v2663
    %v2667 = vmul.f32 %v2657, %v2663
    %v2668 = vmul.f32 %v2658, %v2663
    %v2670 = vlaneseq
    %v2671 = vshrl.u32 %v2670, 7
    %v2672 = vsub.s32 0, %v2671
    %v2673 = vrot.slane %v2606, %v2672
    %v2675 = vadd.f32 %v2665, %v2673
    %v2676 = vadd.f32 %v2666, %v2673
    %v2677 = vadd.f32 %v2667, %v2673
    %v2678 = vadd.f32 %v2668, %v2673
    %v2679 = vld [vmem:[%s11] sm:$0xff]
    %v2680 = vld [vmem:[%s11 + $0x8] sm:$0xff]
    %v2681 = vld [vmem:[%s11 + $0x10] sm:$0xff]
    %v2682 = vld [vmem:[%s11 + $0x18] sm:$0xff]
    %v2683 = vld [vmem:[%s12] sm:$0x1]
    %v2685 = vlaneseq
    %v2686 = vshrl.u32 %v2685, 7
    %v2687 = vsub.s32 0, %v2686
    %v2688 = vrot.slane %v2683, %v2687
    %v2691 = vsel %vm57, %v2675, 0
    %v2694 = vsel %vm57, %v2676, 0
    %v2697 = vsel %vm57, %v2677, 0
    %v2700 = vsel %vm57, %v2678, 0
    %2702 = vmatprep.subr.mxu0 0.0
    %2703 = vmatpush1.msra.mxu0 %v2679
    %2704 = vmatprep.subr.mxu0 0.0
    %2705 = vmatpush1.msra.mxu0 %v2680
    %2706 = vmatprep.subr.mxu0 0.0
    %2707 = vmatpush1.msra.mxu0 %v2681
    %2708 = vmatprep.subr.mxu0 0.0
    %2709 = vmatpush1.msra.mxu0 %v2682
    %2710 = vmatprep.subr.mxu0 0.0
    %2711 = vmatpush1.msra.mxu0 0.0
    %2712 = vmatprep.subr.mxu0 0.0
    %2713 = vmatpush1.msra.mxu0 0.0
    %2714 = vmatprep.subr.mxu0 0.0
    %2715 = vmatpush1.msra.mxu0 0.0
    %2716 = vmatprep.subr.mxu0 0.0
    %2717 = vmatpush1.msra.mxu0 0.0
    %2718 = vmatprep.subr.mxu0 0.0
    %2719 = vmatpush1.msra.mxu0 0.0
    %2720 = vmatprep.subr.mxu0 0.0
    %2721 = vmatpush1.msra.mxu0 0.0
    %2722 = vmatprep.subr.mxu0 0.0
    %2723 = vmatpush1.msra.mxu0 0.0
    %2724 = vmatprep.subr.mxu0 0.0
    %2725 = vmatpush1.msra.mxu0 0.0
    %2726 = vmatprep.subr.mxu0 0.0
    %2727 = vmatpush1.msra.mxu0 0.0
    %2728 = vmatprep.subr.mxu0 0.0
    %2729 = vmatpush1.msra.mxu0 0.0
    %2730 = vmatprep.subr.mxu0 0.0
    %2731 = vmatpush1.msra.mxu0 0.0
    %2732 = vmatprep.subr.mxu0 0.0
    %2733 = vmatpush1.msra.mxu0 0.0
    %2734 = vmatprep.subr.mxu0 0.0
    %2735 = vmatpush1.msra.mxu0 0.0
    %2736 = vmatprep.subr.mxu0 0.0
    %2737 = vmatpush1.msra.mxu0 0.0
    %2738 = vmatprep.subr.mxu0 0.0
    %2739 = vmatpush1.msra.mxu0 0.0
    %2740 = vmatprep.subr.mxu0 0.0
    %2741 = vmatpush1.msra.mxu0 0.0
    %2742 = vmatprep.subr.mxu0 0.0
    %2743 = vmatpush1.msra.mxu0 0.0
    %2744 = vmatprep.subr.mxu0 0.0
    %2745 = vmatpush1.msra.mxu0 0.0
    %2746 = vmatprep.subr.mxu0 0.0
    %2747 = vmatpush1.msra.mxu0 0.0
    %2748 = vmatprep.subr.mxu0 0.0
    %2749 = vmatpush1.msra.mxu0 0.0
    %2750 = vmatprep.subr.mxu0 0.0
    %2751 = vmatpush1.msra.mxu0 0.0
    %2752 = vmatprep.subr.mxu0 0.0
    %2753 = vmatpush1.msra.mxu0 0.0
    %2754 = vmatprep.subr.mxu0 0.0
    %2755 = vmatpush1.msra.mxu0 0.0
    %2756 = vmatprep.subr.mxu0 0.0
    %2757 = vmatpush1.msra.mxu0 0.0
    %2758 = vmatprep.subr.mxu0 0.0
    %2759 = vmatpush1.msra.mxu0 0.0
    %2760 = vmatprep.subr.mxu0 0.0
    %2761 = vmatpush1.msra.mxu0 0.0
    %2762 = vmatprep.subr.mxu0 0.0
    %2763 = vmatpush1.msra.mxu0 0.0
    %2764 = vmatprep.subr.mxu0 0.0
    %2765 = vmatpush1.msra.mxu0 0.0
    %2766 = vmatprep.mubr.f32.mxu0 0.0
    %2767 = vmatmul.mubr.f32.gmra.mrb[0].mxu0 %v2691
    %v2768 = vpop.f32.mrb[0].mxu0
    %v2769 = vadd.f32 %v2688, %v2768
    %v2770 = vpop.f32.mrb[0].mxu0
    %2771 = vmatprep.mubr.f32.mxu0 0.0
    %2772 = vmatmul.mubr.f32.gmra.mrb[0].mxu0 %v2694
    %v2773 = vpop.f32.mrb[0].mxu0
    %v2774 = vadd.f32 %v2688, %v2773
    %v2775 = vpop.f32.mrb[0].mxu0
    %2776 = vmatprep.mubr.f32.mxu0 0.0
    %2777 = vmatmul.mubr.f32.gmra.mrb[0].mxu0 %v2697
    %v2778 = vpop.f32.mrb[0].mxu0
    %v2779 = vadd.f32 %v2688, %v2778
    %v2780 = vpop.f32.mrb[0].mxu0
    %2781 = vmatprep.mubr.f32.mxu0 0.0
    %2782 = vmatmul.mubr.f32.gmra.mrb[0].mxu0 %v2700
    %v2783 = vpop.f32.mrb[0].mxu0
    %v2784 = vadd.f32 %v2688, %v2783
    %v2785 = vpop.f32.mrb[0].mxu0
    %2786 = vdwg.mxu0
    %v2787 = vmul.f32 %v2769, 0.5
    %v2788 = vmul.f32 %v2774, 0.5
    %v2789 = vmul.f32 %v2779, 0.5
    %v2790 = vmul.f32 %v2784, 0.5
    %v2791 = vmul.f32 %v2769, 0.70710677
    %v2792 = vmul.f32 %v2774, 0.70710677
    %v2793 = vmul.f32 %v2779, 0.70710677
    %v2794 = vmul.f32 %v2784, 0.70710677
    %v2795 = vand.u32 2147483647, %v2791
    %v2796 = vand.u32 2147483647, %v2792
    %v2797 = vand.u32 2147483647, %v2793
    %v2798 = vand.u32 2147483647, %v2794
    %v2799 = vmul.f32 %v2795, 0.3275911
    %v2800 = vmul.f32 %v2796, 0.3275911
    %v2801 = vmul.f32 %v2797, 0.3275911
    %v2802 = vmul.f32 %v2798, 0.3275911
    %v2803 = vadd.f32 %v2799, 1.0
    %v2804 = vadd.f32 %v2800, 1.0
    %v2805 = vadd.f32 %v2801, 1.0
    %v2806 = vadd.f32 %v2802, 1.0
    %v2807 = vrcp.pop %v2803
    %v2808 = vmul.f32 1.0, %v2807
    %v2809 = vrcp.pop %v2804
    %v2810 = vmul.f32 1.0, %v2809
    %v2811 = vrcp.pop %v2805
    %v2812 = vmul.f32 1.0, %v2811
    %v2813 = vrcp.pop %v2806
    %v2814 = vmul.f32 1.0, %v2813
    %v2815 = vmul.f32 %v2808, 1.0614054
    %v2816 = vmul.f32 %v2810, 1.0614054
    %v2817 = vmul.f32 %v2812, 1.0614054
    %v2818 = vmul.f32 %v2814, 1.0614054
    %v2819 = vadd.f32 %v2815, -1.4531521
    %v2820 = vadd.f32 %v2816, -1.4531521
    %v2821 = vadd.f32 %v2817, -1.4531521
    %v2822 = vadd.f32 %v2818, -1.4531521
    %v2823 = vmul.f32 %v2819, %v2808
    %v2824 = vmul.f32 %v2820, %v2810
    %v2825 = vmul.f32 %v2821, %v2812
    %v2826 = vmul.f32 %v2822, %v2814
    %v2827 = vadd.f32 %v2823, 1.4214138
    %v2828 = vadd.f32 %v2824, 1.4214138
    %v2829 = vadd.f32 %v2825, 1.4214138
    %v2830 = vadd.f32 %v2826, 1.4214138
    %v2831 = vmul.f32 %v2827, %v2808
    %v2832 = vmul.f32 %v2828, %v2810
    %v2833 = vmul.f32 %v2829, %v2812
    %v2834 = vmul.f32 %v2830, %v2814
    %v2835 = vadd.f32 %v2831, -0.28449672
    %v2836 = vadd.f32 %v2832, -0.28449672
    %v2837 = vadd.f32 %v2833, -0.28449672
    %v2838 = vadd.f32 %v2834, -0.28449672
    %v2839 = vmul.f32 %v2835, %v2808
    %v2840 = vmul.f32 %v2836, %v2810
    %v2841 = vmul.f32 %v2837, %v2812
    %v2842 = vmul.f32 %v2838, %v2814
    %v2843 = vadd.f32 %v2839, 0.2548296
    %v2844 = vadd.f32 %v2840, 0.2548296
    %v2845 = vadd.f32 %v2841, 0.2548296
    %v2846 = vadd.f32 %v2842, 0.2548296
    %v2847 = vmul.f32 %v2843, %v2808
    %v2848 = vmul.f32 %v2844, %v2810
    %v2849 = vmul.f32 %v2845, %v2812
    %v2850 = vmul.f32 %v2846, %v2814
    %v2851 = vsub.f32 0.0, %v2795
    %v2852 = vsub.f32 0.0, %v2796
    %v2853 = vsub.f32 0.0, %v2797
    %v2854 = vsub.f32 0.0, %v2798
    %v2855 = vmul.f32 %v2851, %v2795
    %v2856 = vmul.f32 %v2852, %v2796
    %v2857 = vmul.f32 %v2853, %v2797
    %v2858 = vmul.f32 %v2854, %v2798
    %v2859 = vmul.f32 %v2855, 1.442695
    %v2860 = vpow.pop %v2859
    %v2861 = vmul.f32 %v2856, 1.442695
    %v2862 = vpow.pop %v2861
    %v2863 = vmul.f32 %v2857, 1.442695
    %v2864 = vpow.pop %v2863
    %v2865 = vmul.f32 %v2858, 1.442695
    %v2866 = vpow.pop %v2865
    %v2867 = vmul.f32 %v2847, %v2860
    %v2868 = vmul.f32 %v2848, %v2862
    %v2869 = vmul.f32 %v2849, %v2864
    %v2870 = vmul.f32 %v2850, %v2866
    %v2871 = vsub.f32 1.0, %v2867
    %v2872 = vsub.f32 1.0, %v2868
    %v2873 = vsub.f32 1.0, %v2869
    %v2874 = vsub.f32 1.0, %v2870
    %vm2875 = vcmp.ge.f32.partialorder %v2791, 0.0
    %vm2876 = vcmp.ge.f32.partialorder %v2792, 0.0
    %vm2877 = vcmp.ge.f32.partialorder %v2793, 0.0
    %vm2878 = vcmp.ge.f32.partialorder %v2794, 0.0
    %v2879 = vsub.f32 0.0, %v2871
    %v2880 = vsub.f32 0.0, %v2872
    %v2881 = vsub.f32 0.0, %v2873
    %v2882 = vsub.f32 0.0, %v2874
    %v2883 = vsel %vm2875, %v2871, %v2879
    %v2884 = vsel %vm2876, %v2872, %v2880
    %v2885 = vsel %vm2877, %v2873, %v2881
    %v2886 = vsel %vm2878, %v2874, %v2882
    %v2887 = vadd.f32 %v2883, 1.0
    %v2888 = vadd.f32 %v2884, 1.0
    %v2889 = vadd.f32 %v2885, 1.0
    %v2890 = vadd.f32 %v2886, 1.0
    %v2891 = vmul.f32 %v2787, %v2887
    %v2892 = vmul.f32 %v2788, %v2888
    %v2893 = vmul.f32 %v2789, %v2889
    %v2894 = vmul.f32 %v2790, %v2890
    %v2895 = vld [vmem:[%s13] sm:$0xff]
    %v2896 = vld [vmem:[%s13 + $0x8] sm:$0xff]
    %v2897 = vld [vmem:[%s13 + $0x10] sm:$0xff]
    %v2898 = vld [vmem:[%s13 + $0x18] sm:$0xff]
    %v2899 = vld [vmem:[%s13 + $0x20] sm:$0xff]
    %v2900 = vld [vmem:[%s13 + $0x28] sm:$0xff]
    %v2901 = vld [vmem:[%s13 + $0x30] sm:$0xff]
    %v2902 = vld [vmem:[%s13 + $0x38] sm:$0xff]
    %v2903 = vld [vmem:[%s14] sm:$0x1]
    %v2905 = vlaneseq
    %v2906 = vshrl.u32 %v2905, 7
    %v2907 = vsub.s32 0, %v2906
    %v2908 = vrot.slane %v2903, %v2907
    %vm2910 = vcmask 523264
    %v2912 = vsel %vm2910, %v2891, 0
    %v2915 = vsel %vm2910, %v2892, 0
    %v2918 = vsel %vm2910, %v2893, 0
    %v2921 = vsel %vm2910, %v2894, 0
    %2923 = vmatprep.subr.mxu0 0.0
    %2924 = vmatpush1.msra.mxu0 %v2895
    %2925 = vmatprep.subr.mxu0 0.0
    %2926 = vmatpush1.msra.mxu0 %v2896
    %2927 = vmatprep.subr.mxu0 0.0
    %2928 = vmatpush1.msra.mxu0 %v2897
    %2929 = vmatprep.subr.mxu0 0.0
    %2930 = vmatpush1.msra.mxu0 %v2898
    %2931 = vmatprep.subr.mxu0 0.0
    %2932 = vmatpush1.msra.mxu0 %v2899
    %2933 = vmatprep.subr.mxu0 0.0
    %2934 = vmatpush1.msra.mxu0 %v2900
    %2935 = vmatprep.subr.mxu0 0.0
    %2936 = vmatpush1.msra.mxu0 %v2901
    %2937 = vmatprep.subr.mxu0 0.0
    %2938 = vmatpush1.msra.mxu0 %v2902
    %2939 = vmatprep.subr.mxu0 0.0
    %2940 = vmatpush1.msra.mxu0 0.0
    %2941 = vmatprep.subr.mxu0 0.0
    %2942 = vmatpush1.msra.mxu0 0.0
    %2943 = vmatprep.subr.mxu0 0.0
    %2944 = vmatpush1.msra.mxu0 0.0
    %2945 = vmatprep.subr.mxu0 0.0
    %2946 = vmatpush1.msra.mxu0 0.0
    %2947 = vmatprep.subr.mxu0 0.0
    %2948 = vmatpush1.msra.mxu0 0.0
    %2949 = vmatprep.subr.mxu0 0.0
    %2950 = vmatpush1.msra.mxu0 0.0
    %2951 = vmatprep.subr.mxu0 0.0
    %2952 = vmatpush1.msra.mxu0 0.0
    %2953 = vmatprep.subr.mxu0 0.0
    %2954 = vmatpush1.msra.mxu0 0.0
    %2955 = vmatprep.subr.mxu0 0.0
    %2956 = vmatpush1.msra.mxu0 0.0
    %2957 = vmatprep.subr.mxu0 0.0
    %2958 = vmatpush1.msra.mxu0 0.0
    %2959 = vmatprep.subr.mxu0 0.0
    %2960 = vmatpush1.msra.mxu0 0.0
    %2961 = vmatprep.subr.mxu0 0.0
    %2962 = vmatpush1.msra.mxu0 0.0
    %2963 = vmatprep.subr.mxu0 0.0
    %2964 = vmatpush1.msra.mxu0 0.0
    %2965 = vmatprep.subr.mxu0 0.0
    %2966 = vmatpush1.msra.mxu0 0.0
    %2967 = vmatprep.subr.mxu0 0.0
    %2968 = vmatpush1.msra.mxu0 0.0
    %2969 = vmatprep.subr.mxu0 0.0
    %2970 = vmatpush1.msra.mxu0 0.0
    %2971 = vmatprep.subr.mxu0 0.0
    %2972 = vmatpush1.msra.mxu0 0.0
    %2973 = vmatprep.subr.mxu0 0.0
    %2974 = vmatpush1.msra.mxu0 0.0
    %2975 = vmatprep.subr.mxu0 0.0
    %2976 = vmatpush1.msra.mxu0 0.0
    %2977 = vmatprep.subr.mxu0 0.0
    %2978 = vmatpush1.msra.mxu0 0.0
    %2979 = vmatprep.subr.mxu0 0.0
    %2980 = vmatpush1.msra.mxu0 0.0
    %2981 = vmatprep.subr.mxu0 0.0
    %2982 = vmatpush1.msra.mxu0 0.0
    %2983 = vmatprep.subr.mxu0 0.0
    %2984 = vmatpush1.msra.mxu0 0.0
    %2985 = vmatprep.subr.mxu0 0.0
    %2986 = vmatpush1.msra.mxu0 0.0
    %2987 = vmatprep.mubr.f32.mxu0 0.0
    %2988 = vmatmul.mubr.f32.gmra.mrb[0].mxu0 %v2912
    %v2989 = vpop.f32.mrb[0].mxu0
    %v2990 = vadd.f32 %v2908, %v2989
    %v2991 = vpop.f32.mrb[0].mxu0
    %2992 = vmatprep.mubr.f32.mxu0 0.0
    %2993 = vmatmul.mubr.f32.gmra.mrb[0].mxu0 %v2915
    %v2994 = vpop.f32.mrb[0].mxu0
    %v2995 = vadd.f32 %v2908, %v2994
    %v2996 = vpop.f32.mrb[0].mxu0
    %2997 = vmatprep.mubr.f32.mxu0 0.0
    %2998 = vmatmul.mubr.f32.gmra.mrb[0].mxu0 %v2918
    %v2999 = vpop.f32.mrb[0].mxu0
    %v3000 = vadd.f32 %v2908, %v2999
    %v3001 = vpop.f32.mrb[0].mxu0
    %3002 = vmatprep.mubr.f32.mxu0 0.0
    %3003 = vmatmul.mubr.f32.gmra.mrb[0].mxu0 %v2921
    %v3004 = vpop.f32.mrb[0].mxu0
    %v3005 = vadd.f32 %v2908, %v3004
    %v3006 = vpop.f32.mrb[0].mxu0
    %3007 = vdwg.mxu0
    %v3008 = vadd.f32 %v2601, %v2990
    %v3009 = vadd.f32 %v2602, %v2995
    %v3010 = vadd.f32 %v2603, %v3000
    %v3011 = vadd.f32 %v2604, %v3005
    %3012 = vst.msk [vmem:[#allocation2] sm:$0xff] %vm57, %v3008
    %3013 = vst.msk [vmem:[#allocation2 + $0x8] sm:$0xff] %vm57, %v3009
    %3014 = vst.msk [vmem:[#allocation2 + $0x10] sm:$0xff] %vm57, %v3010
    %3015 = vst.msk [vmem:[#allocation2 + $0x18] sm:$0xff] %vm57, %v3011
    // Predicated region
    $region62: #{basic_transformer_block.1} parent=1 // pred_check
      _
    $region63: #{basic_transformer_block.1} parent=1 // pred_check_branch
      %3017 = sbr.rel (0) target = $region65
    $region64: #{basic_transformer_block.1} parent=1 // pred_region
      %s3019 = ssub.s32 512, 512
      %3020 = vsyncadd [#allocation3], %s3019
      %s3021 = sshll.u32 [#allocation2], 4
      %s3022 = int_to_ptr.vmem [resolvable:$true] %s3021
      %3027 = dma.vmem_to_hbm [thread:$0]  %s3022, 512, %s15, [#allocation3], 128, 128, 8
    $region65: #{basic_transformer_block.1} parent=1 // pred_fallthru
      _
    // Predicated region
    $region66: #{basic_transformer_block.1} parent=1 // pred_check
      _
    $region67: #{basic_transformer_block.1} parent=1 // pred_check_branch
      %3029 = sbr.rel (0) target = $region69
    $region68: #{basic_transformer_block.1} parent=1 // pred_region
      %3030 = dma.done [#allocation3], 512
    $region69: #{basic_transformer_block.1} parent=1 // pred_fallthru
      _
    %3031 = vsyncpa [#allocation3], 1

</llo_original>
